<compile_context>
chip_gen: v6e
topology: v6e:2x2x1
jax: 0.10.0
libtpu: 0.0.40
codegen_flags: <defaults>
</compile_context>

<pallas_src>
import functools

import jax
import jax.numpy as jnp
from jax.experimental import pallas as pl
from jax.experimental.pallas import tpu as pltpu

F32 = jnp.float32

# VMEM memory-space handle (new API exposes pltpu.MemorySpace; older exposes
# the enum member directly as pltpu.VMEM).
_VMEM = getattr(pltpu, "MemorySpace", pltpu).VMEM


# ----------------------------------------------------------------------------
# One-hot helper matrices for the flat per-edge contraction (host-side, tiny)
# ----------------------------------------------------------------------------
def _repeat_matrix(d):
    # R[i, j] = 1 iff j // d == i  ->  (xs @ R)[e, i*d+f] = xs[e, i]
    i = jnp.arange(d)[:, None]
    j = jnp.arange(d * d)[None, :]
    return (j // d == i).astype(F32)


def _sum_matrix(d):
    # P[j, f] = 1 iff j % d == f   ->  (prod @ P)[e, f] = sum_i prod[e, i*d+f]
    j = jnp.arange(d * d)[:, None]
    f = jnp.arange(d)[None, :]
    return (j % d == f).astype(F32)


# ----------------------------------------------------------------------------
# Fused Pallas kernel: whole DynamicGCN5 forward
# ----------------------------------------------------------------------------
def _fused_forward_kernel(*refs, meta):
    hidden_dims = meta["hidden_dims"]
    n_w = meta["n_wblobs"]

    x_ref, ea_ref, scat_ref, invdeg_ref, grow_ref, gcol_ref = refs[:6]
    wblob_refs = refs[6:6 + n_w]
    bblob_ref = refs[6 + n_w]
    o_ref = refs[-1]

    def W(name):  # static-offset slice out of the packed weight blobs
        gi, off, c = meta["widx"][name]
        return wblob_refs[gi][:, off:off + c]

    def B(name):  # static-offset slice out of the packed (1, total) bias row
        off, c = meta["bidx"][name]
        return bblob_ref[:, off:off + c]

    ea = ea_ref[...]                       # (E, Ce)
    scat = scat_ref[...]                   # (N, E)  exact 0/1 target scatter
    inv_deg = invdeg_ref[...]              # (N, 1)  1 / max(in_degree, 1)
    grow = grow_ref[...]                   # (E, N)  one-hot source gather
    gsum = grow + gcol_ref[...]            # (E, N)  h[row] + h[col] gather

    h = x_ref[...]                         # (N, C)

    # ---- edge_nn for all layers at once (independent of h) ------------------
    # e1_all: one lane-dense (E, L*H) matmul; e2_all: one block-diagonal matmul
    # producing every layer's flat theta (E, sum_l D_l^2).
    e1_all = jnp.maximum(
        jnp.dot(ea, W("we1_cat"), preferred_element_type=F32) + B("be1_cat"),
        0.0)
    e2_all = jnp.dot(e1_all, W("we2_blk"),
                     preferred_element_type=F32) + B("be2_cat")

    off2 = 0
    for l, d in enumerate(hidden_dims):
        # ---- input projection ------------------------------------------------
        xp = jnp.dot(h, W(f"wp_{l}"), preferred_element_type=F32) + B(f"bp_{l}")

        # ---- per-layer flat theta (E, d*d) -----------------------------------
        theta = e2_all[:, off2:off2 + d * d]
        off2 += d * d

        # ---- gather source node features: xs = x_proj[row] -------------------
        xs = jnp.dot(grow, xp, preferred_element_type=F32)          # (E, d)

        # ---- per-edge message via MXU, flat layout (no (E,d,d) temporary):
        #   xs_rep[e, i*d+f] = xs[e, i];  msg[e, f] = sum_i xs_rep*theta
        xs_rep = jnp.dot(xs, W(f"R_{d}"), preferred_element_type=F32)
        msg = jnp.dot(xs_rep * theta, W(f"P_{d}"),
                      preferred_element_type=F32)                   # (E, d)

        # ---- mean aggregation at target nodes (exact 0/1 S, f32 inv_deg) -----
        agg = jnp.dot(scat, msg, preferred_element_type=F32) * inv_deg

        # ---- NNConv root transform + bias, ReLU, skip add ---------------------
        root = jnp.dot(xp, W(f"wr_{l}"), preferred_element_type=F32)
        h = jnp.maximum(agg + root + B(f"bconv_{l}"), 0.0) + xp     # (N, d)

    # ---- edge representation + edge MLP --------------------------------------
    edge_repr = jnp.dot(gsum, h, preferred_element_type=F32)        # (E, D_last)
    m1 = jnp.maximum(
        jnp.dot(edge_repr, W("wm1"), preferred_element_type=F32) + B("bm1"),
        0.0)
    out = jnp.dot(m1, W("wm2"), preferred_element_type=F32) + B("bm2")
    o_ref[...] = out.astype(o_ref.dtype)


# ----------------------------------------------------------------------------
# Parameter construction (deterministic, f32)
# ----------------------------------------------------------------------------
def init_params(key, in_channels, in_edge_channels, hidden_dims,
                edge_nn_hidden, edge_mlp_hidden, out_channels):
    def lin_init(k, fan_in, fan_out):
        kw, kb = jax.random.split(k)
        lim = 1.0 / jnp.sqrt(jnp.float32(fan_in))
        w = jax.random.uniform(kw, (fan_in, fan_out), F32, -lim, lim)
        b = jax.random.uniform(kb, (1, fan_out), F32, -lim, lim)
        return w, b

    keys = iter(jax.random.split(key, 4 * len(hidden_dims) + 2))
    layers = []
    for i, d in enumerate(hidden_dims):
        in_dim = in_channels if i == 0 else hidden_dims[i - 1]
        wp, bp = lin_init(next(keys), in_dim, d)                   # input_projs[i]
        we1, be1 = lin_init(next(keys), in_edge_channels, edge_nn_hidden)
        we2, be2 = lin_init(next(keys), edge_nn_hidden, d * d)     # edge_nn
        wr, _ = lin_init(next(keys), d, d)                         # NNConv root (no bias)
        bconv = jnp.zeros((1, d), F32)                             # NNConv bias
        layers.append(dict(wp=wp, bp=bp, we1=we1, be1=be1, we2=we2, be2=be2,
                           wr=wr, bconv=bconv))
    wm1, bm1 = lin_init(next(keys), hidden_dims[-1], edge_mlp_hidden)
    wm2, bm2 = lin_init(next(keys), edge_mlp_hidden, out_channels)
    return dict(layers=layers, wm1=wm1, bm1=bm1, wm2=wm2, bm2=bm2)


# ----------------------------------------------------------------------------
# One-time packing: fuse edge_nn weights, dedupe R/P, group by fan-in
# ----------------------------------------------------------------------------
def pack_params(params):
    layers = params["layers"]
    hidden_dims = [int(l["wp"].shape[1]) for l in layers]
    L = len(layers)
    H = int(layers[0]["we1"].shape[1])

    we1_cat = jnp.concatenate([l["we1"] for l in layers], axis=1)   # (Ce, L*H)
    be1_cat = jnp.concatenate([l["be1"] for l in layers], axis=1)
    total_cols = sum(d * d for d in hidden_dims)
    we2_blk = jnp.zeros((L * H, total_cols), F32)                   # block-diag
    col_off = 0
    for i, l in enumerate(layers):
        d = hidden_dims[i]
        we2_blk = we2_blk.at[i * H:(i + 1) * H,
                             col_off:col_off + d * d].set(l["we2"])
        col_off += d * d
    be2_cat = jnp.concatenate([l["be2"] for l in layers], axis=1)

    named_w = [("we1_cat", we1_cat), ("we2_blk", we2_blk)]
    named_b = [("be1_cat", be1_cat), ("be2_cat", be2_cat)]
    for i, l in enumerate(layers):
        named_w += [(f"wp_{i}", l["wp"]), (f"wr_{i}", l["wr"])]
        named_b += [(f"bp_{i}", l["bp"]), (f"bconv_{i}", l["bconv"])]
    named_w += [("wm1", params["wm1"]), ("wm2", params["wm2"])]
    named_b += [("bm1", params["bm1"]), ("bm2", params["bm2"])]
    for d in sorted(set(hidden_dims)):                              # dedupe R/P
        named_w += [(f"R_{d}", _repeat_matrix(d)), (f"P_{d}", _sum_matrix(d))]

    # Group weights by fan-in and concatenate along the lane axis.
    groups = {}
    for name, w in named_w:
        groups.setdefault(int(w.shape[0]), []).append((name, w))
    wblobs, widx = [], {}
    for gi, r in enumerate(sorted(groups)):
        off, mats = 0, []
        for name, w in groups[r]:
            widx[name] = (gi, off, int(w.shape[1]))
            mats.append(w)
            off += int(w.shape[1])
        wblobs.append(jnp.concatenate(mats, axis=1))

    # All biases packed into a single (1, total) row.
    bidx, off, brow = {}, 0, []
    for name, b in named_b:
        bidx[name] = (off, int(b.shape[1]))
        brow.append(b)
        off += int(b.shape[1])
    bblob = jnp.concatenate(brow, axis=1)

    meta = dict(hidden_dims=tuple(hidden_dims), widx=widx, bidx=bidx,
                n_wblobs=len(wblobs), out_channels=int(params["wm2"].shape[1]))
    return wblobs, bblob, meta


# ----------------------------------------------------------------------------
# Dense graph operators (built once; cacheable when edge_index is static)
# ----------------------------------------------------------------------------
def build_graph_ops(edge_index, num_nodes):
    # TODO(synk): for large N/E replace these dense O(N*E) one-hots with
    # scalar-prefetched row/col indices (PrefetchScalarGridSpec + pl.Element /
    # manual DMA gather) and tile the edge/node axes per-chip VMEM budgets.
    row, col = edge_index[0], edge_index[1]            # PyG: row=source, col=target
    g_row = jax.nn.one_hot(row, num_nodes, dtype=F32)  # (E, N)
    g_col = jax.nn.one_hot(col, num_nodes, dtype=F32)  # (E, N)
    deg = jnp.sum(g_col, axis=0)                       # in-degree per target node
    inv_deg = (1.0 / jnp.maximum(deg, 1.0)).reshape(num_nodes, 1)
    return dict(scat=g_col.T, inv_deg=inv_deg, g_row=g_row, g_col=g_col)


# ----------------------------------------------------------------------------
# Forward pass: one fused pallas_call (no grid, whole-array VMEM blocks)
# ----------------------------------------------------------------------------
def make_forward(meta):
    kern = functools.partial(_fused_forward_kernel, meta=meta)

    def forward(wblobs, bblob, graph, x, edge_attr):
        E = edge_attr.shape[0]
        inputs = [x, edge_attr, graph["scat"], graph["inv_deg"],
                  graph["g_row"], graph["g_col"], *wblobs, bblob]
        # TODO(synk): if graphs/time-steps are batched, raise matmul M toward
        # the MXU height, make the output lane-dense (>=128 last dim) and add
        # a "parallel" grid axis so v7x's second TensorCore is used.
        return pl.pallas_call(
            kern,
            out_shape=jax.ShapeDtypeStruct((E, meta["out_channels"]), F32),
            in_specs=[pl.BlockSpec(memory_space=_VMEM) for _ in inputs],
            out_specs=pl.BlockSpec(memory_space=_VMEM),
        )(*inputs)

    return forward


# ----------------------------------------------------------------------------
# Pure-JAX reference (for correctness check only)
# ----------------------------------------------------------------------------
def reference_forward(params, x, edge_attr, edge_index, num_nodes):
    row, col = edge_index[0], edge_index[1]
    h = x
    for l in params["layers"]:
        d = l["wp"].shape[1]
        xp = h @ l["wp"] + l["bp"]
        e1 = jnp.maximum(edge_attr @ l["we1"] + l["be1"], 0.0)
        theta = (e1 @ l["we2"] + l["be2"]).reshape(-1, d, d)
        msg = jnp.einsum("ed,edf->ef", xp[row], theta)
        s = jax.ops.segment_sum(msg, col, num_segments=num_nodes)
        cnt = jax.ops.segment_sum(jnp.ones((msg.shape[0],), F32), col,
                                  num_segments=num_nodes)
        agg = s / jnp.maximum(cnt, 1.0)[:, None]
        h = jnp.maximum(agg + xp @ l["wr"] + l["bconv"], 0.0) + xp
    er = h[row] + h[col]
    m1 = jnp.maximum(er @ params["wm1"] + params["bm1"], 0.0)
    return m1 @ params["wm2"] + params["bm2"]


# ----------------------------------------------------------------------------
if __name__ == "__main__":
    N_NODES = 16
    N_EDGES = 32
    IN_CHANNELS = 4
    IN_EDGE_CHANNELS = 4
    HIDDEN_DIMS = [16, 16, 8, 8]
    EDGE_NN_HIDDEN = 32
    EDGE_MLP_HIDDEN = 16
    OUT_CHANNELS = 1

    key = jax.random.PRNGKey(0)
    k_x, k_e, k_src, k_dst, k_par = jax.random.split(key, 5)

    x = jax.random.normal(k_x, (N_NODES, IN_CHANNELS), F32)
    edge_attr = jax.random.normal(k_e, (N_EDGES, IN_EDGE_CHANNELS), F32)
    row = jax.random.randint(k_src, (N_EDGES,), 0, N_NODES)
    col = jax.random.randint(k_dst, (N_EDGES,), 0, N_NODES)
    edge_index = jnp.stack([row, col], axis=0)

    params = init_params(k_par, IN_CHANNELS, IN_EDGE_CHANNELS, HIDDEN_DIMS,
                         EDGE_NN_HIDDEN, EDGE_MLP_HIDDEN, OUT_CHANNELS)

    # One-time packing + graph-operator construction (hoisted out of the
    # per-call path; reusable across calls with the same edge_index).
    wblobs, bblob, meta = pack_params(params)
    graph = build_graph_ops(edge_index, N_NODES)

    fwd = jax.jit(make_forward(meta))
    out = jax.block_until_ready(fwd(wblobs, bblob, graph, x, edge_attr))

    assert out.shape == (N_EDGES, OUT_CHANNELS)
    assert jnp.all(jnp.isfinite(out))

    ref = reference_forward(params, x, edge_attr, edge_index, N_NODES)
    assert jnp.allclose(out, ref, rtol=2e-3, atol=2e-3), (
        float(jnp.max(jnp.abs(out - ref))))
    print("KERNEL_OK")
</pallas_src>

<mosaic_0001>
module attributes {stable_mosaic.version = 11 : i64} {
  func.func @_fused_forward_kernel(%arg0: memref<16x4xf32, #tpu.memory_space<vmem>>, %arg1: memref<32x4xf32, #tpu.memory_space<vmem>>, %arg2: memref<16x32xf32, #tpu.memory_space<vmem>>, %arg3: memref<16x1xf32, #tpu.memory_space<vmem>>, %arg4: memref<32x16xf32, #tpu.memory_space<vmem>>, %arg5: memref<32x16xf32, #tpu.memory_space<vmem>>, %arg6: memref<4x144xf32, #tpu.memory_space<vmem>>, %arg7: memref<8x104xf32, #tpu.memory_space<vmem>>, %arg8: memref<16x313xf32, #tpu.memory_space<vmem>>, %arg9: memref<64x8xf32, #tpu.memory_space<vmem>>, %arg10: memref<128x640xf32, #tpu.memory_space<vmem>>, %arg11: memref<256x16xf32, #tpu.memory_space<vmem>>, %arg12: memref<1x881xf32, #tpu.memory_space<vmem>>, %arg13: memref<32x1xf32, #tpu.memory_space<vmem>>) attributes {dimension_semantics = [], scalar_prefetch = 0 : i64, scratch_operands = 0 : i64, tpu.core_type = #tpu.core_type<tc>} {
    %c0 = arith.constant 0 : index
    %c0_0 = arith.constant 0 : index
    %0 = vector.load %arg1[%c0, %c0_0] : memref<32x4xf32, #tpu.memory_space<vmem>>, vector<32x4xf32>
    %c0_1 = arith.constant 0 : index
    %c0_2 = arith.constant 0 : index
    %1 = vector.load %arg2[%c0_1, %c0_2] : memref<16x32xf32, #tpu.memory_space<vmem>>, vector<16x32xf32>
    %c0_3 = arith.constant 0 : index
    %c0_4 = arith.constant 0 : index
    %2 = vector.load %arg3[%c0_3, %c0_4] : memref<16x1xf32, #tpu.memory_space<vmem>>, vector<16x1xf32>
    %c0_5 = arith.constant 0 : index
    %c0_6 = arith.constant 0 : index
    %3 = vector.load %arg4[%c0_5, %c0_6] : memref<32x16xf32, #tpu.memory_space<vmem>>, vector<32x16xf32>
    %c0_7 = arith.constant 0 : index
    %c0_8 = arith.constant 0 : index
    %4 = vector.load %arg5[%c0_7, %c0_8] : memref<32x16xf32, #tpu.memory_space<vmem>>, vector<32x16xf32>
    %5 = arith.addf %3, %4 : vector<32x16xf32>
    %c0_9 = arith.constant 0 : index
    %c0_10 = arith.constant 0 : index
    %6 = vector.load %arg0[%c0_9, %c0_10] : memref<16x4xf32, #tpu.memory_space<vmem>>, vector<16x4xf32>
    %c0_11 = arith.constant 0 : index
    %c0_12 = arith.constant 0 : index
    %7 = vector.load %arg6[%c0_11, %c0_12] : memref<4x144xf32, #tpu.memory_space<vmem>>, vector<4x128xf32>
    %cst = arith.constant dense<0.000000e+00> : vector<32x128xf32>
    %8 = tpu.matmul %0, %7, %cst {dimension_numbers = #tpu.dot_dimension_numbers<[1], [0], [0], [1], [0, 0, 1, 1], [], []>} : vector<32x4xf32>, vector<4x128xf32>, vector<32x128xf32> -> vector<32x128xf32>
    %c0_13 = arith.constant 0 : index
    %c0_14 = arith.constant 0 : index
    %9 = vector.load %arg12[%c0_13, %c0_14] : memref<1x881xf32, #tpu.memory_space<vmem>>, vector<1x128xf32>
    %10 = vector.broadcast %9 : vector<1x128xf32> to vector<32x128xf32>
    %11 = arith.addf %8, %10 : vector<32x128xf32>
    %cst_15 = arith.constant 0.000000e+00 : f32
    %12 = vector.broadcast %cst_15 : f32 to vector<32x128xf32>
    %13 = arith.maximumf %11, %12 : vector<32x128xf32>
    %c0_16 = arith.constant 0 : index
    %c0_17 = arith.constant 0 : index
    %14 = vector.load %arg10[%c0_16, %c0_17] : memref<128x640xf32, #tpu.memory_space<vmem>>, vector<128x640xf32>
    %cst_18 = arith.constant dense<0.000000e+00> : vector<32x640xf32>
    %15 = tpu.matmul %13, %14, %cst_18 {dimension_numbers = #tpu.dot_dimension_numbers<[1], [0], [0], [1], [0, 0, 1, 1], [], []>} : vector<32x128xf32>, vector<128x640xf32>, vector<32x640xf32> -> vector<32x640xf32>
    %c0_19 = arith.constant 0 : index
    %c128 = arith.constant 128 : index
    %16 = vector.load %arg12[%c0_19, %c128] : memref<1x881xf32, #tpu.memory_space<vmem>>, vector<1x640xf32>
    %17 = vector.broadcast %16 : vector<1x640xf32> to vector<32x640xf32>
    %18 = arith.addf %15, %17 : vector<32x640xf32>
    %c0_20 = arith.constant 0 : index
    %c128_21 = arith.constant 128 : index
    %19 = vector.load %arg6[%c0_20, %c128_21] : memref<4x144xf32, #tpu.memory_space<vmem>>, vector<4x16xf32>
    %cst_22 = arith.constant dense<0.000000e+00> : vector<16x16xf32>
    %20 = tpu.matmul %6, %19, %cst_22 {dimension_numbers = #tpu.dot_dimension_numbers<[1], [0], [0], [1], [0, 0, 1, 1], [], []>} : vector<16x4xf32>, vector<4x16xf32>, vector<16x16xf32> -> vector<16x16xf32>
    %c0_23 = arith.constant 0 : index
    %c768 = arith.constant 768 : index
    %21 = vector.load %arg12[%c0_23, %c768] : memref<1x881xf32, #tpu.memory_space<vmem>>, vector<1x16xf32>
    %22 = vector.broadcast %21 : vector<1x16xf32> to vector<16x16xf32>
    %23 = arith.addf %20, %22 : vector<16x16xf32>
    %24 = vector.extract_strided_slice %18 {offsets = [0, 0], sizes = [32, 256], strides = [1, 1]} : vector<32x640xf32> to vector<32x256xf32>
    %cst_24 = arith.constant dense<0.000000e+00> : vector<32x16xf32>
    %25 = tpu.matmul %3, %23, %cst_24 {dimension_numbers = #tpu.dot_dimension_numbers<[1], [0], [0], [1], [0, 0, 1, 1], [], []>} : vector<32x16xf32>, vector<16x16xf32>, vector<32x16xf32> -> vector<32x16xf32>
    %c0_25 = arith.constant 0 : index
    %c57 = arith.constant 57 : index
    %26 = vector.load %arg8[%c0_25, %c57] : memref<16x313xf32, #tpu.memory_space<vmem>>, vector<16x256xf32>
    %cst_26 = arith.constant dense<0.000000e+00> : vector<32x256xf32>
    %27 = tpu.matmul %25, %26, %cst_26 {dimension_numbers = #tpu.dot_dimension_numbers<[1], [0], [0], [1], [0, 0, 1, 1], [], []>} : vector<32x16xf32>, vector<16x256xf32>, vector<32x256xf32> -> vector<32x256xf32>
    %28 = arith.mulf %27, %24 : vector<32x256xf32>
    %c0_27 = arith.constant 0 : index
    %c0_28 = arith.constant 0 : index
    %29 = vector.load %arg11[%c0_27, %c0_28] : memref<256x16xf32, #tpu.memory_space<vmem>>, vector<256x16xf32>
    %cst_29 = arith.constant dense<0.000000e+00> : vector<32x16xf32>
    %30 = tpu.matmul %28, %29, %cst_29 {dimension_numbers = #tpu.dot_dimension_numbers<[1], [0], [0], [1], [0, 0, 1, 1], [], []>} : vector<32x256xf32>, vector<256x16xf32>, vector<32x16xf32> -> vector<32x16xf32>
    %cst_30 = arith.constant dense<0.000000e+00> : vector<16x16xf32>
    %31 = tpu.matmul %1, %30, %cst_30 {dimension_numbers = #tpu.dot_dimension_numbers<[1], [0], [0], [1], [0, 0, 1, 1], [], []>} : vector<16x32xf32>, vector<32x16xf32>, vector<16x16xf32> -> vector<16x16xf32>
    %32 = vector.broadcast %2 : vector<16x1xf32> to vector<16x16xf32>
    %33 = arith.mulf %31, %32 : vector<16x16xf32>
    %c0_31 = arith.constant 0 : index
    %c0_32 = arith.constant 0 : index
    %34 = vector.load %arg8[%c0_31, %c0_32] : memref<16x313xf32, #tpu.memory_space<vmem>>, vector<16x16xf32>
    %cst_33 = arith.constant dense<0.000000e+00> : vector<16x16xf32>
    %35 = tpu.matmul %23, %34, %cst_33 {dimension_numbers = #tpu.dot_dimension_numbers<[1], [0], [0], [1], [0, 0, 1, 1], [], []>} : vector<16x16xf32>, vector<16x16xf32>, vector<16x16xf32> -> vector<16x16xf32>
    %36 = arith.addf %33, %35 : vector<16x16xf32>
    %c0_34 = arith.constant 0 : index
    %c784 = arith.constant 784 : index
    %37 = vector.load %arg12[%c0_34, %c784] : memref<1x881xf32, #tpu.memory_space<vmem>>, vector<1x16xf32>
    %38 = vector.broadcast %37 : vector<1x16xf32> to vector<16x16xf32>
    %39 = arith.addf %36, %38 : vector<16x16xf32>
    %cst_35 = arith.constant 0.000000e+00 : f32
    %40 = vector.broadcast %cst_35 : f32 to vector<16x16xf32>
    %41 = arith.maximumf %39, %40 : vector<16x16xf32>
    %42 = arith.addf %41, %23 : vector<16x16xf32>
    %c0_36 = arith.constant 0 : index
    %c16 = arith.constant 16 : index
    %43 = vector.load %arg8[%c0_36, %c16] : memref<16x313xf32, #tpu.memory_space<vmem>>, vector<16x16xf32>
    %cst_37 = arith.constant dense<0.000000e+00> : vector<16x16xf32>
    %44 = tpu.matmul %42, %43, %cst_37 {dimension_numbers = #tpu.dot_dimension_numbers<[1], [0], [0], [1], [0, 0, 1, 1], [], []>} : vector<16x16xf32>, vector<16x16xf32>, vector<16x16xf32> -> vector<16x16xf32>
    %c0_38 = arith.constant 0 : index
    %c800 = arith.constant 800 : index
    %45 = vector.load %arg12[%c0_38, %c800] : memref<1x881xf32, #tpu.memory_space<vmem>>, vector<1x16xf32>
    %46 = vector.broadcast %45 : vector<1x16xf32> to vector<16x16xf32>
    %47 = arith.addf %44, %46 : vector<16x16xf32>
    %48 = vector.extract_strided_slice %18 {offsets = [0, 256], sizes = [32, 256], strides = [1, 1]} : vector<32x640xf32> to vector<32x256xf32>
    %cst_39 = arith.constant dense<0.000000e+00> : vector<32x16xf32>
    %49 = tpu.matmul %3, %47, %cst_39 {dimension_numbers = #tpu.dot_dimension_numbers<[1], [0], [0], [1], [0, 0, 1, 1], [], []>} : vector<32x16xf32>, vector<16x16xf32>, vector<32x16xf32> -> vector<32x16xf32>
    %c0_40 = arith.constant 0 : index
    %c57_41 = arith.constant 57 : index
    %50 = vector.load %arg8[%c0_40, %c57_41] : memref<16x313xf32, #tpu.memory_space<vmem>>, vector<16x256xf32>
    %cst_42 = arith.constant dense<0.000000e+00> : vector<32x256xf32>
    %51 = tpu.matmul %49, %50, %cst_42 {dimension_numbers = #tpu.dot_dimension_numbers<[1], [0], [0], [1], [0, 0, 1, 1], [], []>} : vector<32x16xf32>, vector<16x256xf32>, vector<32x256xf32> -> vector<32x256xf32>
    %52 = arith.mulf %51, %48 : vector<32x256xf32>
    %c0_43 = arith.constant 0 : index
    %c0_44 = arith.constant 0 : index
    %53 = vector.load %arg11[%c0_43, %c0_44] : memref<256x16xf32, #tpu.memory_space<vmem>>, vector<256x16xf32>
    %cst_45 = arith.constant dense<0.000000e+00> : vector<32x16xf32>
    %54 = tpu.matmul %52, %53, %cst_45 {dimension_numbers = #tpu.dot_dimension_numbers<[1], [0], [0], [1], [0, 0, 1, 1], [], []>} : vector<32x256xf32>, vector<256x16xf32>, vector<32x16xf32> -> vector<32x16xf32>
    %cst_46 = arith.constant dense<0.000000e+00> : vector<16x16xf32>
    %55 = tpu.matmul %1, %54, %cst_46 {dimension_numbers = #tpu.dot_dimension_numbers<[1], [0], [0], [1], [0, 0, 1, 1], [], []>} : vector<16x32xf32>, vector<32x16xf32>, vector<16x16xf32> -> vector<16x16xf32>
    %56 = vector.broadcast %2 : vector<16x1xf32> to vector<16x16xf32>
    %57 = arith.mulf %55, %56 : vector<16x16xf32>
    %c0_47 = arith.constant 0 : index
    %c32 = arith.constant 32 : index
    %58 = vector.load %arg8[%c0_47, %c32] : memref<16x313xf32, #tpu.memory_space<vmem>>, vector<16x16xf32>
    %cst_48 = arith.constant dense<0.000000e+00> : vector<16x16xf32>
    %59 = tpu.matmul %47, %58, %cst_48 {dimension_numbers = #tpu.dot_dimension_numbers<[1], [0], [0], [1], [0, 0, 1, 1], [], []>} : vector<16x16xf32>, vector<16x16xf32>, vector<16x16xf32> -> vector<16x16xf32>
    %60 = arith.addf %57, %59 : vector<16x16xf32>
    %c0_49 = arith.constant 0 : index
    %c816 = arith.constant 816 : index
    %61 = vector.load %arg12[%c0_49, %c816] : memref<1x881xf32, #tpu.memory_space<vmem>>, vector<1x16xf32>
    %62 = vector.broadcast %61 : vector<1x16xf32> to vector<16x16xf32>
    %63 = arith.addf %60, %62 : vector<16x16xf32>
    %cst_50 = arith.constant 0.000000e+00 : f32
    %64 = vector.broadcast %cst_50 : f32 to vector<16x16xf32>
    %65 = arith.maximumf %63, %64 : vector<16x16xf32>
    %66 = arith.addf %65, %47 : vector<16x16xf32>
    %c0_51 = arith.constant 0 : index
    %c48 = arith.constant 48 : index
    %67 = vector.load %arg8[%c0_51, %c48] : memref<16x313xf32, #tpu.memory_space<vmem>>, vector<16x8xf32>
    %cst_52 = arith.constant dense<0.000000e+00> : vector<16x8xf32>
    %68 = tpu.matmul %66, %67, %cst_52 {dimension_numbers = #tpu.dot_dimension_numbers<[1], [0], [0], [1], [0, 0, 1, 1], [], []>} : vector<16x16xf32>, vector<16x8xf32>, vector<16x8xf32> -> vector<16x8xf32>
    %c0_53 = arith.constant 0 : index
    %c832 = arith.constant 832 : index
    %69 = vector.load %arg12[%c0_53, %c832] : memref<1x881xf32, #tpu.memory_space<vmem>>, vector<1x8xf32>
    %70 = vector.broadcast %69 : vector<1x8xf32> to vector<16x8xf32>
    %71 = arith.addf %68, %70 : vector<16x8xf32>
    %72 = vector.extract_strided_slice %18 {offsets = [0, 512], sizes = [32, 64], strides = [1, 1]} : vector<32x640xf32> to vector<32x64xf32>
    %cst_54 = arith.constant dense<0.000000e+00> : vector<32x8xf32>
    %73 = tpu.matmul %3, %71, %cst_54 {dimension_numbers = #tpu.dot_dimension_numbers<[1], [0], [0], [1], [0, 0, 1, 1], [], []>} : vector<32x16xf32>, vector<16x8xf32>, vector<32x8xf32> -> vector<32x8xf32>
    %c0_55 = arith.constant 0 : index
    %c40 = arith.constant 40 : index
    %74 = vector.load %arg7[%c0_55, %c40] : memref<8x104xf32, #tpu.memory_space<vmem>>, vector<8x64xf32>
    %cst_56 = arith.constant dense<0.000000e+00> : vector<32x64xf32>
    %75 = tpu.matmul %73, %74, %cst_56 {dimension_numbers = #tpu.dot_dimension_numbers<[1], [0], [0], [1], [0, 0, 1, 1], [], []>} : vector<32x8xf32>, vector<8x64xf32>, vector<32x64xf32> -> vector<32x64xf32>
    %76 = arith.mulf %75, %72 : vector<32x64xf32>
    %c0_57 = arith.constant 0 : index
    %c0_58 = arith.constant 0 : index
    %77 = vector.load %arg9[%c0_57, %c0_58] : memref<64x8xf32, #tpu.memory_space<vmem>>, vector<64x8xf32>
    %cst_59 = arith.constant dense<0.000000e+00> : vector<32x8xf32>
    %78 = tpu.matmul %76, %77, %cst_59 {dimension_numbers = #tpu.dot_dimension_numbers<[1], [0], [0], [1], [0, 0, 1, 1], [], []>} : vector<32x64xf32>, vector<64x8xf32>, vector<32x8xf32> -> vector<32x8xf32>
    %cst_60 = arith.constant dense<0.000000e+00> : vector<16x8xf32>
    %79 = tpu.matmul %1, %78, %cst_60 {dimension_numbers = #tpu.dot_dimension_numbers<[1], [0], [0], [1], [0, 0, 1, 1], [], []>} : vector<16x32xf32>, vector<32x8xf32>, vector<16x8xf32> -> vector<16x8xf32>
    %80 = vector.broadcast %2 : vector<16x1xf32> to vector<16x8xf32>
    %81 = arith.mulf %79, %80 : vector<16x8xf32>
    %c0_61 = arith.constant 0 : index
    %c0_62 = arith.constant 0 : index
    %82 = vector.load %arg7[%c0_61, %c0_62] : memref<8x104xf32, #tpu.memory_space<vmem>>, vector<8x8xf32>
    %cst_63 = arith.constant dense<0.000000e+00> : vector<16x8xf32>
    %83 = tpu.matmul %71, %82, %cst_63 {dimension_numbers = #tpu.dot_dimension_numbers<[1], [0], [0], [1], [0, 0, 1, 1], [], []>} : vector<16x8xf32>, vector<8x8xf32>, vector<16x8xf32> -> vector<16x8xf32>
    %84 = arith.addf %81, %83 : vector<16x8xf32>
    %c0_64 = arith.constant 0 : index
    %c840 = arith.constant 840 : index
    %85 = vector.load %arg12[%c0_64, %c840] : memref<1x881xf32, #tpu.memory_space<vmem>>, vector<1x8xf32>
    %86 = vector.broadcast %85 : vector<1x8xf32> to vector<16x8xf32>
    %87 = arith.addf %84, %86 : vector<16x8xf32>
    %cst_65 = arith.constant 0.000000e+00 : f32
    %88 = vector.broadcast %cst_65 : f32 to vector<16x8xf32>
    %89 = arith.maximumf %87, %88 : vector<16x8xf32>
    %90 = arith.addf %89, %71 : vector<16x8xf32>
    %c0_66 = arith.constant 0 : index
    %c8 = arith.constant 8 : index
    %91 = vector.load %arg7[%c0_66, %c8] : memref<8x104xf32, #tpu.memory_space<vmem>>, vector<8x8xf32>
    %cst_67 = arith.constant dense<0.000000e+00> : vector<16x8xf32>
    %92 = tpu.matmul %90, %91, %cst_67 {dimension_numbers = #tpu.dot_dimension_numbers<[1], [0], [0], [1], [0, 0, 1, 1], [], []>} : vector<16x8xf32>, vector<8x8xf32>, vector<16x8xf32> -> vector<16x8xf32>
    %c0_68 = arith.constant 0 : index
    %c848 = arith.constant 848 : index
    %93 = vector.load %arg12[%c0_68, %c848] : memref<1x881xf32, #tpu.memory_space<vmem>>, vector<1x8xf32>
    %94 = vector.broadcast %93 : vector<1x8xf32> to vector<16x8xf32>
    %95 = arith.addf %92, %94 : vector<16x8xf32>
    %96 = vector.extract_strided_slice %18 {offsets = [0, 576], sizes = [32, 64], strides = [1, 1]} : vector<32x640xf32> to vector<32x64xf32>
    %cst_69 = arith.constant dense<0.000000e+00> : vector<32x8xf32>
    %97 = tpu.matmul %3, %95, %cst_69 {dimension_numbers = #tpu.dot_dimension_numbers<[1], [0], [0], [1], [0, 0, 1, 1], [], []>} : vector<32x16xf32>, vector<16x8xf32>, vector<32x8xf32> -> vector<32x8xf32>
    %c0_70 = arith.constant 0 : index
    %c40_71 = arith.constant 40 : index
    %98 = vector.load %arg7[%c0_70, %c40_71] : memref<8x104xf32, #tpu.memory_space<vmem>>, vector<8x64xf32>
    %cst_72 = arith.constant dense<0.000000e+00> : vector<32x64xf32>
    %99 = tpu.matmul %97, %98, %cst_72 {dimension_numbers = #tpu.dot_dimension_numbers<[1], [0], [0], [1], [0, 0, 1, 1], [], []>} : vector<32x8xf32>, vector<8x64xf32>, vector<32x64xf32> -> vector<32x64xf32>
    %100 = arith.mulf %99, %96 : vector<32x64xf32>
    %c0_73 = arith.constant 0 : index
    %c0_74 = arith.constant 0 : index
    %101 = vector.load %arg9[%c0_73, %c0_74] : memref<64x8xf32, #tpu.memory_space<vmem>>, vector<64x8xf32>
    %cst_75 = arith.constant dense<0.000000e+00> : vector<32x8xf32>
    %102 = tpu.matmul %100, %101, %cst_75 {dimension_numbers = #tpu.dot_dimension_numbers<[1], [0], [0], [1], [0, 0, 1, 1], [], []>} : vector<32x64xf32>, vector<64x8xf32>, vector<32x8xf32> -> vector<32x8xf32>
    %cst_76 = arith.constant dense<0.000000e+00> : vector<16x8xf32>
    %103 = tpu.matmul %1, %102, %cst_76 {dimension_numbers = #tpu.dot_dimension_numbers<[1], [0], [0], [1], [0, 0, 1, 1], [], []>} : vector<16x32xf32>, vector<32x8xf32>, vector<16x8xf32> -> vector<16x8xf32>
    %104 = vector.broadcast %2 : vector<16x1xf32> to vector<16x8xf32>
    %105 = arith.mulf %103, %104 : vector<16x8xf32>
    %c0_77 = arith.constant 0 : index
    %c16_78 = arith.constant 16 : index
    %106 = vector.load %arg7[%c0_77, %c16_78] : memref<8x104xf32, #tpu.memory_space<vmem>>, vector<8x8xf32>
    %cst_79 = arith.constant dense<0.000000e+00> : vector<16x8xf32>
    %107 = tpu.matmul %95, %106, %cst_79 {dimension_numbers = #tpu.dot_dimension_numbers<[1], [0], [0], [1], [0, 0, 1, 1], [], []>} : vector<16x8xf32>, vector<8x8xf32>, vector<16x8xf32> -> vector<16x8xf32>
    %108 = arith.addf %105, %107 : vector<16x8xf32>
    %c0_80 = arith.constant 0 : index
    %c856 = arith.constant 856 : index
    %109 = vector.load %arg12[%c0_80, %c856] : memref<1x881xf32, #tpu.memory_space<vmem>>, vector<1x8xf32>
    %110 = vector.broadcast %109 : vector<1x8xf32> to vector<16x8xf32>
    %111 = arith.addf %108, %110 : vector<16x8xf32>
    %cst_81 = arith.constant 0.000000e+00 : f32
    %112 = vector.broadcast %cst_81 : f32 to vector<16x8xf32>
    %113 = arith.maximumf %111, %112 : vector<16x8xf32>
    %114 = arith.addf %113, %95 : vector<16x8xf32>
    %cst_82 = arith.constant dense<0.000000e+00> : vector<32x8xf32>
    %115 = tpu.matmul %5, %114, %cst_82 {dimension_numbers = #tpu.dot_dimension_numbers<[1], [0], [0], [1], [0, 0, 1, 1], [], []>} : vector<32x16xf32>, vector<16x8xf32>, vector<32x8xf32> -> vector<32x8xf32>
    %c0_83 = arith.constant 0 : index
    %c24 = arith.constant 24 : index
    %116 = vector.load %arg7[%c0_83, %c24] : memref<8x104xf32, #tpu.memory_space<vmem>>, vector<8x16xf32>
    %cst_84 = arith.constant dense<0.000000e+00> : vector<32x16xf32>
    %117 = tpu.matmul %115, %116, %cst_84 {dimension_numbers = #tpu.dot_dimension_numbers<[1], [0], [0], [1], [0, 0, 1, 1], [], []>} : vector<32x8xf32>, vector<8x16xf32>, vector<32x16xf32> -> vector<32x16xf32>
    %c0_85 = arith.constant 0 : index
    %c864 = arith.constant 864 : index
    %118 = vector.load %arg12[%c0_85, %c864] : memref<1x881xf32, #tpu.memory_space<vmem>>, vector<1x16xf32>
    %119 = vector.broadcast %118 : vector<1x16xf32> to vector<32x16xf32>
    %120 = arith.addf %117, %119 : vector<32x16xf32>
    %cst_86 = arith.constant 0.000000e+00 : f32
    %121 = vector.broadcast %cst_86 : f32 to vector<32x16xf32>
    %122 = arith.maximumf %120, %121 : vector<32x16xf32>
    %c0_87 = arith.constant 0 : index
    %c56 = arith.constant 56 : index
    %123 = vector.load %arg8[%c0_87, %c56] : memref<16x313xf32, #tpu.memory_space<vmem>>, vector<16x1xf32>
    %cst_88 = arith.constant dense<0.000000e+00> : vector<32x1xf32>
    %124 = tpu.matmul %122, %123, %cst_88 {dimension_numbers = #tpu.dot_dimension_numbers<[1], [0], [0], [1], [0, 0, 1, 1], [], []>} : vector<32x16xf32>, vector<16x1xf32>, vector<32x1xf32> -> vector<32x1xf32>
    %c0_89 = arith.constant 0 : index
    %c880 = arith.constant 880 : index
    %125 = vector.load %arg12[%c0_89, %c880] : memref<1x881xf32, #tpu.memory_space<vmem>>, vector<1x1xf32>
    %126 = vector.broadcast %125 : vector<1x1xf32> to vector<32x1xf32>
    %127 = arith.addf %124, %126 : vector<32x1xf32>
    %c0_90 = arith.constant 0 : index
    %c0_91 = arith.constant 0 : index
    %128 = vector.load %arg13[%c0_90, %c0_91] : memref<32x1xf32, #tpu.memory_space<vmem>>, vector<32x1xf32>
    tpu.vector_store %arg13[%c0_90, %c0_91], %127 {strides = array<i32>} : memref<32x1xf32, #tpu.memory_space<vmem>>, vector<32x1xf32>,
    return
  }
}

</mosaic_0001>

<llo_original>
// kernel: forward.1
$region0: #{forward.1}
  #allocation0 [shape = 'u32[]', space=smem, size = 0x4, offset = 0x4, fixed_abs, tag = 'smem constant byte address 0x4 - core index']
  #allocation1 [shape = 'u32[144,128]{1,0:T(1,128)}', space=vmem, size = 0x12000, scoped, tag = 'internal scratch']
  %s0 = inlined_call_operand.vmem [shape: f32[16,4], index: 0, kind: input, shape index: {}]
  %s1 = inlined_call_operand.vmem [shape: f32[32,4], index: 1, kind: input, shape index: {}]
  %s2 = inlined_call_operand.vmem [shape: f32[16,32], index: 2, kind: input, shape index: {}]
  %s3 = inlined_call_operand.vmem [shape: f32[16,1], index: 3, kind: input, shape index: {}]
  %s4 = inlined_call_operand.vmem [shape: f32[32,16], index: 4, kind: input, shape index: {}]
  %s5 = inlined_call_operand.vmem [shape: f32[32,16], index: 5, kind: input, shape index: {}]
  %s6 = inlined_call_operand.vmem [shape: f32[4,144], index: 6, kind: input, shape index: {}]
  %s7 = inlined_call_operand.vmem [shape: f32[8,104], index: 7, kind: input, shape index: {}]
  %s8 = inlined_call_operand.vmem [shape: f32[16,313], index: 8, kind: input, shape index: {}]
  %s9 = inlined_call_operand.vmem [shape: f32[64,8], index: 9, kind: input, shape index: {}]
  %s10 = inlined_call_operand.hbm [shape: f32[128,640], index: 10, kind: input, shape index: {}]
  %s11 = inlined_call_operand.vmem [shape: f32[256,16], index: 11, kind: input, shape index: {}]
  %s12 = inlined_call_operand.vmem [shape: f32[1,881], index: 12, kind: input, shape index: {}]
  %s13 = inlined_call_operand.vmem [shape: f32[32,1], index: 13, kind: output, shape index: {}]
  %s14 = sld [smem:[#allocation0]]
  $region66: #{forward.1} parent=0
    _
  %s16 = ssub.s32 1, %s14
  %s17 = scalar_select 0, %s16, %s14
  $region1: #{forward.1} parent=0
    #allocation2 [shape = 'u8[327680]{0}', space=vmem, size = 0x50000, scoped, tag = 'input window, operand 10, single buffered']
    #allocation3 [shape = 's32[1]{0}', space=sflag, size = 0x4, scoped, tag = 'scoped memory for forward.1']
    %18 = vsyncpa [#allocation3], 0
    // Predicated region
    $region2: #{forward.1} parent=1 // pred_check
      _
    $region3: #{forward.1} parent=1 // pred_check_branch
      %20 = sbr.rel (0) target = $region5
    $region4: #{forward.1} parent=1 // pred_region
      _
    $region5: #{forward.1} parent=1 // pred_fallthru
      _
    // Predicated region
    $region6: #{forward.1} parent=1 // pred_check
      _
    $region7: #{forward.1} parent=1 // pred_check_branch
      %22 = sbr.rel (0) target = $region9
    $region8: #{forward.1} parent=1 // pred_region
      _
    $region9: #{forward.1} parent=1 // pred_fallthru
      _
    // Predicated region
    $region10: #{forward.1} parent=1 // pred_check
      _
    $region11: #{forward.1} parent=1 // pred_check_branch
      %24 = sbr.rel (0) target = $region13
    $region12: #{forward.1} parent=1 // pred_region
      _
    $region13: #{forward.1} parent=1 // pred_fallthru
      _
    // Predicated region
    $region14: #{forward.1} parent=1 // pred_check
      _
    $region15: #{forward.1} parent=1 // pred_check_branch
      %26 = sbr.rel (0) target = $region17
    $region16: #{forward.1} parent=1 // pred_region
      _
    $region17: #{forward.1} parent=1 // pred_fallthru
      _
    // Predicated region
    $region18: #{forward.1} parent=1 // pred_check
      _
    $region19: #{forward.1} parent=1 // pred_check_branch
      %28 = sbr.rel (0) target = $region21
    $region20: #{forward.1} parent=1 // pred_region
      _
    $region21: #{forward.1} parent=1 // pred_fallthru
      _
    // Predicated region
    $region22: #{forward.1} parent=1 // pred_check
      _
    $region23: #{forward.1} parent=1 // pred_check_branch
      %30 = sbr.rel (0) target = $region25
    $region24: #{forward.1} parent=1 // pred_region
      _
    $region25: #{forward.1} parent=1 // pred_fallthru
      _
    // Predicated region
    $region26: #{forward.1} parent=1 // pred_check
      _
    $region27: #{forward.1} parent=1 // pred_check_branch
      %32 = sbr.rel (0) target = $region29
    $region28: #{forward.1} parent=1 // pred_region
      _
    $region29: #{forward.1} parent=1 // pred_fallthru
      _
    // Predicated region
    $region30: #{forward.1} parent=1 // pred_check
      _
    $region31: #{forward.1} parent=1 // pred_check_branch
      %34 = sbr.rel (0) target = $region33
    $region32: #{forward.1} parent=1 // pred_region
      _
    $region33: #{forward.1} parent=1 // pred_fallthru
      _
    // Predicated region
    $region34: #{forward.1} parent=1 // pred_check
      _
    $region35: #{forward.1} parent=1 // pred_check_branch
      %36 = sbr.rel (0) target = $region37
    $region36: #{forward.1} parent=1 // pred_region
      _
    $region37: #{forward.1} parent=1 // pred_fallthru
      _
    // Predicated region
    $region38: #{forward.1} parent=1 // pred_check
      _
    $region39: #{forward.1} parent=1 // pred_check_branch
      %38 = sbr.rel (0) target = $region41
    $region40: #{forward.1} parent=1 // pred_region
      _
    $region41: #{forward.1} parent=1 // pred_fallthru
      _
    // Predicated region
    $region42: #{forward.1} parent=1 // pred_check
      _
    $region43: #{forward.1} parent=1 // pred_check_branch
      %40 = sbr.rel (0) target = $region45
    $region44: #{forward.1} parent=1 // pred_region
      %s42 = ssub.s32 10240, 10240
      %43 = vsyncadd [#allocation3], %s42
      %s44 = sshll.u32 [#allocation2], 4
      %s45 = int_to_ptr.vmem [resolvable:$true] %s44
      %50 = dma.hbm_to_vmem [thread:$0]  %s10, 10240, %s45, [#allocation3], 640, 640, 40
    $region45: #{forward.1} parent=1 // pred_fallthru
      _
    // Predicated region
    $region46: #{forward.1} parent=1 // pred_check
      _
    $region47: #{forward.1} parent=1 // pred_check_branch
      %52 = sbr.rel (0) target = $region49
    $region48: #{forward.1} parent=1 // pred_region
      _
    $region49: #{forward.1} parent=1 // pred_fallthru
      _
    // Predicated region
    $region50: #{forward.1} parent=1 // pred_check
      _
    $region51: #{forward.1} parent=1 // pred_check_branch
      %54 = sbr.rel (0) target = $region53
    $region52: #{forward.1} parent=1 // pred_region
      _
    $region53: #{forward.1} parent=1 // pred_fallthru
      _
    // Predicated region
    $region54: #{forward.1} parent=1 // pred_check
      _
    $region55: #{forward.1} parent=1 // pred_check_branch
      %56 = sbr.rel (0) target = $region57
    $region56: #{forward.1} parent=1 // pred_region
      %57 = dma.done [#allocation3], 10240
    $region57: #{forward.1} parent=1 // pred_fallthru
      _
    %v58 = vld [vmem:[%s1] sm:$0xff]
    %v59 = vld [vmem:[%s1 + $0x8] sm:$0xff]
    %v60 = vld [vmem:[%s1 + $0x10] sm:$0xff]
    %v61 = vld [vmem:[%s1 + $0x18] sm:$0xff]
    %v62 = vld [vmem:[%s2] sm:$0xff]
    %v63 = vld [vmem:[%s2 + $0x8] sm:$0xff]
    %v64 = vld [vmem:[%s3] sm:$0xff]
    %v65 = vld [vmem:[%s3 + $0x8] sm:$0xff]
    %v66 = vld [vmem:[%s4] sm:$0xff]
    %v67 = vld [vmem:[%s4 + $0x8] sm:$0xff]
    %v68 = vld [vmem:[%s4 + $0x10] sm:$0xff]
    %v69 = vld [vmem:[%s4 + $0x18] sm:$0xff]
    %v70 = vld [vmem:[%s5] sm:$0xff]
    %v71 = vld [vmem:[%s5 + $0x8] sm:$0xff]
    %v72 = vld [vmem:[%s5 + $0x10] sm:$0xff]
    %v73 = vld [vmem:[%s5 + $0x18] sm:$0xff]
    %v74 = vadd.f32 %v66, %v70
    %v75 = vadd.f32 %v67, %v71
    %v76 = vadd.f32 %v68, %v72
    %v77 = vadd.f32 %v69, %v73
    %v78 = vld [vmem:[%s0] sm:$0xff]
    %v79 = vld [vmem:[%s0 + $0x8] sm:$0xff]
    %v80 = vld [vmem:[%s6] sm:$0xf]
    %v81 = vld [vmem:[%s12] sm:$0x1]
    %v83 = vlaneseq
    %v84 = vshrl.u32 %v83, 7
    %v85 = vsub.s32 0, %v84
    %v86 = vrot.slane %v81, %v85
    %vm88 = vcmask 31744
    %v90 = vsel %vm88, %v58, 0
    %v93 = vsel %vm88, %v59, 0
    %v96 = vsel %vm88, %v60, 0
    %v99 = vsel %vm88, %v61, 0
    %vm101 = vcmask 1043456
    %v103 = vsel %vm101, %v80, 0
    %105 = vmatprep.subr.mxu0 0.0
    %106 = vmatpush1.msra.mxu0 0.0
    %107 = vmatprep.subr.mxu0 0.0
    %108 = vmatpush1.msra.mxu0 0.0
    %109 = vmatprep.subr.mxu0 0.0
    %110 = vmatpush1.msra.mxu0 0.0
    %111 = vmatprep.subr.mxu0 0.0
    %112 = vmatpush1.msra.mxu0 0.0
    %113 = vmatprep.subr.mxu0 0.0
    %114 = vmatpush1.msra.mxu0 0.0
    %115 = vmatprep.subr.mxu0 0.0
    %116 = vmatpush1.msra.mxu0 0.0
    %117 = vmatprep.subr.mxu0 0.0
    %118 = vmatpush1.msra.mxu0 0.0
    %119 = vmatprep.subr.mxu0 0.0
    %120 = vmatpush1.msra.mxu0 0.0
    %121 = vmatprep.subr.mxu0 0.0
    %122 = vmatpush1.msra.mxu0 0.0
    %123 = vmatprep.subr.mxu0 0.0
    %124 = vmatpush1.msra.mxu0 0.0
    %125 = vmatprep.subr.mxu0 0.0
    %126 = vmatpush1.msra.mxu0 0.0
    %127 = vmatprep.subr.mxu0 0.0
    %128 = vmatpush1.msra.mxu0 0.0
    %129 = vmatprep.subr.mxu0 0.0
    %130 = vmatpush1.msra.mxu0 0.0
    %131 = vmatprep.subr.mxu0 0.0
    %132 = vmatpush1.msra.mxu0 0.0
    %133 = vmatprep.subr.mxu0 0.0
    %134 = vmatpush1.msra.mxu0 0.0
    %135 = vmatprep.subr.mxu0 0.0
    %136 = vmatpush1.msra.mxu0 %v103
    %137 = vmatprep.subr.mxu0 0.0
    %138 = vmatpush2.msra.mxu0 0.0
    %139 = vmatprep.subr.mxu0 0.0
    %140 = vmatpush2.msra.mxu0 0.0
    %141 = vmatprep.subr.mxu0 0.0
    %142 = vmatpush2.msra.mxu0 0.0
    %143 = vmatprep.subr.mxu0 0.0
    %144 = vmatpush2.msra.mxu0 0.0
    %145 = vmatprep.subr.mxu0 0.0
    %146 = vmatpush2.msra.mxu0 0.0
    %147 = vmatprep.subr.mxu0 0.0
    %148 = vmatpush2.msra.mxu0 0.0
    %149 = vmatprep.subr.mxu0 0.0
    %150 = vmatpush2.msra.mxu0 0.0
    %151 = vmatprep.subr.mxu0 0.0
    %152 = vmatpush2.msra.mxu0 0.0
    %153 = vmatprep.subr.mxu0 0.0
    %154 = vmatpush2.msra.mxu0 0.0
    %155 = vmatprep.subr.mxu0 0.0
    %156 = vmatpush2.msra.mxu0 0.0
    %157 = vmatprep.subr.mxu0 0.0
    %158 = vmatpush2.msra.mxu0 0.0
    %159 = vmatprep.subr.mxu0 0.0
    %160 = vmatpush2.msra.mxu0 0.0
    %161 = vmatprep.subr.mxu0 0.0
    %162 = vmatpush2.msra.mxu0 0.0
    %163 = vmatprep.subr.mxu0 0.0
    %164 = vmatpush2.msra.mxu0 0.0
    %165 = vmatprep.subr.mxu0 0.0
    %166 = vmatpush2.msra.mxu0 0.0
    %167 = vmatprep.subr.mxu0 0.0
    %168 = vmatpush2.msra.mxu0 0.0
    %169 = vmatprep.mubr.f32.mxu0 0.0
    %170 = vmatmul.mubr.f32.gmra.mxu0 %v90
    %v171 = vpop.f32.mrf.mxu0
    %v172 = vadd.f32 %v86, %v171
    %v173 = vpop.f32.mrf.mxu0
    %174 = vmatprep.mubr.f32.mxu0 0.0
    %175 = vmatmul.mubr.f32.gmra.mxu0 %v93
    %v176 = vpop.f32.mrf.mxu0
    %v177 = vadd.f32 %v86, %v176
    %v178 = vpop.f32.mrf.mxu0
    %179 = vmatprep.mubr.f32.mxu0 0.0
    %180 = vmatmul.mubr.f32.gmra.mxu0 %v96
    %v181 = vpop.f32.mrf.mxu0
    %v182 = vadd.f32 %v86, %v181
    %v183 = vpop.f32.mrf.mxu0
    %184 = vmatprep.mubr.f32.mxu0 0.0
    %185 = vmatmul.mubr.f32.gmra.mxu0 %v99
    %v186 = vpop.f32.mrf.mxu0
    %v187 = vadd.f32 %v86, %v186
    %v188 = vpop.f32.mrf.mxu0
    %189 = vdwg.mxu0
    %v190 = vmax.f32 %v172, 0.0
    %v191 = vmax.f32 %v177, 0.0
    %v192 = vmax.f32 %v182, 0.0
    %v193 = vmax.f32 %v187, 0.0
    %v194 = vld [vmem:[#allocation2] sm:$0xff]
    %v195 = vld [vmem:[#allocation2 + $0x8] sm:$0xff]
    %v196 = vld [vmem:[#allocation2 + $0x10] sm:$0xff]
    %v197 = vld [vmem:[#allocation2 + $0x18] sm:$0xff]
    %v198 = vld [vmem:[#allocation2 + $0x20] sm:$0xff]
    %v199 = vld [vmem:[#allocation2 + $0x28] sm:$0xff]
    %v200 = vld [vmem:[#allocation2 + $0x30] sm:$0xff]
    %v201 = vld [vmem:[#allocation2 + $0x38] sm:$0xff]
    %v202 = vld [vmem:[#allocation2 + $0x40] sm:$0xff]
    %v203 = vld [vmem:[#allocation2 + $0x48] sm:$0xff]
    %v204 = vld [vmem:[#allocation2 + $0x50] sm:$0xff]
    %v205 = vld [vmem:[#allocation2 + $0x58] sm:$0xff]
    %v206 = vld [vmem:[#allocation2 + $0x60] sm:$0xff]
    %v207 = vld [vmem:[#allocation2 + $0x68] sm:$0xff]
    %v208 = vld [vmem:[#allocation2 + $0x70] sm:$0xff]
    %v209 = vld [vmem:[#allocation2 + $0x78] sm:$0xff]
    %v210 = vld [vmem:[#allocation2 + $0x80] sm:$0xff]
    %v211 = vld [vmem:[#allocation2 + $0x88] sm:$0xff]
    %v212 = vld [vmem:[#allocation2 + $0x90] sm:$0xff]
    %v213 = vld [vmem:[#allocation2 + $0x98] sm:$0xff]
    %v214 = vld [vmem:[#allocation2 + $0xa0] sm:$0xff]
    %v215 = vld [vmem:[#allocation2 + $0xa8] sm:$0xff]
    %v216 = vld [vmem:[#allocation2 + $0xb0] sm:$0xff]
    %v217 = vld [vmem:[#allocation2 + $0xb8] sm:$0xff]
    %v218 = vld [vmem:[#allocation2 + $0xc0] sm:$0xff]
    %v219 = vld [vmem:[#allocation2 + $0xc8] sm:$0xff]
    %v220 = vld [vmem:[#allocation2 + $0xd0] sm:$0xff]
    %v221 = vld [vmem:[#allocation2 + $0xd8] sm:$0xff]
    %v222 = vld [vmem:[#allocation2 + $0xe0] sm:$0xff]
    %v223 = vld [vmem:[#allocation2 + $0xe8] sm:$0xff]
    %v224 = vld [vmem:[#allocation2 + $0xf0] sm:$0xff]
    %v225 = vld [vmem:[#allocation2 + $0xf8] sm:$0xff]
    %v226 = vld [vmem:[#allocation2 + $0x100] sm:$0xff]
    %v227 = vld [vmem:[#allocation2 + $0x108] sm:$0xff]
    %v228 = vld [vmem:[#allocation2 + $0x110] sm:$0xff]
    %v229 = vld [vmem:[#allocation2 + $0x118] sm:$0xff]
    %v230 = vld [vmem:[#allocation2 + $0x120] sm:$0xff]
    %v231 = vld [vmem:[#allocation2 + $0x128] sm:$0xff]
    %v232 = vld [vmem:[#allocation2 + $0x130] sm:$0xff]
    %v233 = vld [vmem:[#allocation2 + $0x138] sm:$0xff]
    %v234 = vld [vmem:[#allocation2 + $0x140] sm:$0xff]
    %v235 = vld [vmem:[#allocation2 + $0x148] sm:$0xff]
    %v236 = vld [vmem:[#allocation2 + $0x150] sm:$0xff]
    %v237 = vld [vmem:[#allocation2 + $0x158] sm:$0xff]
    %v238 = vld [vmem:[#allocation2 + $0x160] sm:$0xff]
    %v239 = vld [vmem:[#allocation2 + $0x168] sm:$0xff]
    %v240 = vld [vmem:[#allocation2 + $0x170] sm:$0xff]
    %v241 = vld [vmem:[#allocation2 + $0x178] sm:$0xff]
    %v242 = vld [vmem:[#allocation2 + $0x180] sm:$0xff]
    %v243 = vld [vmem:[#allocation2 + $0x188] sm:$0xff]
    %v244 = vld [vmem:[#allocation2 + $0x190] sm:$0xff]
    %v245 = vld [vmem:[#allocation2 + $0x198] sm:$0xff]
    %v246 = vld [vmem:[#allocation2 + $0x1a0] sm:$0xff]
    %v247 = vld [vmem:[#allocation2 + $0x1a8] sm:$0xff]
    %v248 = vld [vmem:[#allocation2 + $0x1b0] sm:$0xff]
    %v249 = vld [vmem:[#allocation2 + $0x1b8] sm:$0xff]
    %v250 = vld [vmem:[#allocation2 + $0x1c0] sm:$0xff]
    %v251 = vld [vmem:[#allocation2 + $0x1c8] sm:$0xff]
    %v252 = vld [vmem:[#allocation2 + $0x1d0] sm:$0xff]
    %v253 = vld [vmem:[#allocation2 + $0x1d8] sm:$0xff]
    %v254 = vld [vmem:[#allocation2 + $0x1e0] sm:$0xff]
    %v255 = vld [vmem:[#allocation2 + $0x1e8] sm:$0xff]
    %v256 = vld [vmem:[#allocation2 + $0x1f0] sm:$0xff]
    %v257 = vld [vmem:[#allocation2 + $0x1f8] sm:$0xff]
    %v258 = vld [vmem:[#allocation2 + $0x200] sm:$0xff]
    %v259 = vld [vmem:[#allocation2 + $0x208] sm:$0xff]
    %v260 = vld [vmem:[#allocation2 + $0x210] sm:$0xff]
    %v261 = vld [vmem:[#allocation2 + $0x218] sm:$0xff]
    %v262 = vld [vmem:[#allocation2 + $0x220] sm:$0xff]
    %v263 = vld [vmem:[#allocation2 + $0x228] sm:$0xff]
    %v264 = vld [vmem:[#allocation2 + $0x230] sm:$0xff]
    %v265 = vld [vmem:[#allocation2 + $0x238] sm:$0xff]
    %v266 = vld [vmem:[#allocation2 + $0x240] sm:$0xff]
    %v267 = vld [vmem:[#allocation2 + $0x248] sm:$0xff]
    %v268 = vld [vmem:[#allocation2 + $0x250] sm:$0xff]
    %v269 = vld [vmem:[#allocation2 + $0x258] sm:$0xff]
    %v270 = vld [vmem:[#allocation2 + $0x260] sm:$0xff]
    %v271 = vld [vmem:[#allocation2 + $0x268] sm:$0xff]
    %v272 = vld [vmem:[#allocation2 + $0x270] sm:$0xff]
    %v273 = vld [vmem:[#allocation2 + $0x278] sm:$0xff]
    %v274 = vld [vmem:[%s12 + $0x1] sm:$0x1f]
    %v276 = vlaneseq
    %v277 = vshrl.u32 %v276, 7
    %v278 = vsub.s32 0, %v277
    %v279 = vrot.slane %v274, %v278
    %v280 = vlaneseq
    %v281 = vshrl.u32 %v280, 7
    %v282 = vsub.s32 1, %v281
    %v283 = vrot.slane %v274, %v282
    %v284 = vlaneseq
    %v285 = vshrl.u32 %v284, 7
    %v286 = vsub.s32 2, %v285
    %v287 = vrot.slane %v274, %v286
    %v288 = vlaneseq
    %v289 = vshrl.u32 %v288, 7
    %v290 = vsub.s32 3, %v289
    %v291 = vrot.slane %v274, %v290
    %v292 = vlaneseq
    %v293 = vshrl.u32 %v292, 7
    %v294 = vsub.s32 4, %v293
    %v295 = vrot.slane %v274, %v294
    %301 = vmatprep.subr.mxu0 %v270
    %302 = vmatpush1.msra.mxu0 %v269
    %303 = vmatprep.subr.mxu0 %v265
    %304 = vmatpush1.msra.mxu0 %v264
    %305 = vmatprep.subr.mxu0 %v260
    %306 = vmatpush1.msra.mxu0 %v259
    %307 = vmatprep.subr.mxu0 %v255
    %308 = vmatpush1.msra.mxu0 %v254
    %309 = vmatprep.subr.mxu0 %v250
    %310 = vmatpush1.msra.mxu0 %v249
    %311 = vmatprep.subr.mxu0 %v245
    %312 = vmatpush1.msra.mxu0 %v244
    %313 = vmatprep.subr.mxu0 %v240
    %314 = vmatpush1.msra.mxu0 %v239
    %315 = vmatprep.subr.mxu0 %v235
    %316 = vmatpush1.msra.mxu0 %v234
    %317 = vmatprep.subr.mxu0 %v230
    %318 = vmatpush1.msra.mxu0 %v229
    %319 = vmatprep.subr.mxu0 %v225
    %320 = vmatpush1.msra.mxu0 %v224
    %321 = vmatprep.subr.mxu0 %v220
    %322 = vmatpush1.msra.mxu0 %v219
    %323 = vmatprep.subr.mxu0 %v215
    %324 = vmatpush1.msra.mxu0 %v214
    %325 = vmatprep.subr.mxu0 %v210
    %326 = vmatpush1.msra.mxu0 %v209
    %327 = vmatprep.subr.mxu0 %v205
    %328 = vmatpush1.msra.mxu0 %v204
    %329 = vmatprep.subr.mxu0 %v200
    %330 = vmatpush1.msra.mxu0 %v199
    %331 = vmatprep.subr.mxu0 %v195
    %332 = vmatpush1.msra.mxu0 %v194
    %333 = vmatprep.subr.mxu0 0.0
    %334 = vmatpush2.msra.mxu0 0.0
    %335 = vmatprep.subr.mxu0 0.0
    %336 = vmatpush2.msra.mxu0 0.0
    %337 = vmatprep.subr.mxu0 0.0
    %338 = vmatpush2.msra.mxu0 0.0
    %339 = vmatprep.subr.mxu0 0.0
    %340 = vmatpush2.msra.mxu0 0.0
    %341 = vmatprep.subr.mxu0 0.0
    %342 = vmatpush2.msra.mxu0 0.0
    %343 = vmatprep.subr.mxu0 0.0
    %344 = vmatpush2.msra.mxu0 0.0
    %345 = vmatprep.subr.mxu0 0.0
    %346 = vmatpush2.msra.mxu0 0.0
    %347 = vmatprep.subr.mxu0 0.0
    %348 = vmatpush2.msra.mxu0 0.0
    %349 = vmatprep.subr.mxu0 0.0
    %350 = vmatpush2.msra.mxu0 0.0
    %351 = vmatprep.subr.mxu0 0.0
    %352 = vmatpush2.msra.mxu0 0.0
    %353 = vmatprep.subr.mxu0 0.0
    %354 = vmatpush2.msra.mxu0 0.0
    %355 = vmatprep.subr.mxu0 0.0
    %356 = vmatpush2.msra.mxu0 0.0
    %357 = vmatprep.subr.mxu0 0.0
    %358 = vmatpush2.msra.mxu0 0.0
    %359 = vmatprep.subr.mxu0 0.0
    %360 = vmatpush2.msra.mxu0 0.0
    %361 = vmatprep.subr.mxu0 0.0
    %362 = vmatpush2.msra.mxu0 0.0
    %363 = vmatprep.subr.mxu0 0.0
    %364 = vmatpush2.msra.mxu0 0.0
    %365 = vmatprep.mubr.f32.mxu0 0.0
    %366 = vmatmul.mubr.f32.gmra.mxu0 %v190
    %v367 = vpop.f32.mrf.mxu0
    %v368 = vadd.f32 %v279, %v367
    %v369 = vpop.f32.mrf.mxu0
    %v370 = vadd.f32 %v283, %v369
    %371 = vmatprep.mubr.f32.mxu0 0.0
    %372 = vmatmul.mubr.f32.gmra.mxu0 %v191
    %v373 = vpop.f32.mrf.mxu0
    %v374 = vadd.f32 %v279, %v373
    %v375 = vpop.f32.mrf.mxu0
    %v376 = vadd.f32 %v283, %v375
    %377 = vmatprep.mubr.f32.mxu0 0.0
    %378 = vmatmul.mubr.f32.gmra.mxu0 %v192
    %v379 = vpop.f32.mrf.mxu0
    %v380 = vadd.f32 %v279, %v379
    %v381 = vpop.f32.mrf.mxu0
    %v382 = vadd.f32 %v283, %v381
    %383 = vmatprep.mubr.f32.mxu0 0.0
    %384 = vmatmul.mubr.f32.gmra.mxu0 %v193
    %v385 = vpop.f32.mrf.mxu0
    %v386 = vadd.f32 %v279, %v385
    %v387 = vpop.f32.mrf.mxu0
    %v388 = vadd.f32 %v283, %v387
    %389 = vdwg.mxu0
    %390 = vmatprep.subr.mxu0 %v272
    %391 = vmatpush1.msra.mxu0 %v271
    %392 = vmatprep.subr.mxu0 %v267
    %393 = vmatpush1.msra.mxu0 %v266
    %394 = vmatprep.subr.mxu0 %v262
    %395 = vmatpush1.msra.mxu0 %v261
    %396 = vmatprep.subr.mxu0 %v257
    %397 = vmatpush1.msra.mxu0 %v256
    %398 = vmatprep.subr.mxu0 %v252
    %399 = vmatpush1.msra.mxu0 %v251
    %400 = vmatprep.subr.mxu0 %v247
    %401 = vmatpush1.msra.mxu0 %v246
    %402 = vmatprep.subr.mxu0 %v242
    %403 = vmatpush1.msra.mxu0 %v241
    %404 = vmatprep.subr.mxu0 %v237
    %405 = vmatpush1.msra.mxu0 %v236
    %406 = vmatprep.subr.mxu0 %v232
    %407 = vmatpush1.msra.mxu0 %v231
    %408 = vmatprep.subr.mxu0 %v227
    %409 = vmatpush1.msra.mxu0 %v226
    %410 = vmatprep.subr.mxu0 %v222
    %411 = vmatpush1.msra.mxu0 %v221
    %412 = vmatprep.subr.mxu0 %v217
    %413 = vmatpush1.msra.mxu0 %v216
    %414 = vmatprep.subr.mxu0 %v212
    %415 = vmatpush1.msra.mxu0 %v211
    %416 = vmatprep.subr.mxu0 %v207
    %417 = vmatpush1.msra.mxu0 %v206
    %418 = vmatprep.subr.mxu0 %v202
    %419 = vmatpush1.msra.mxu0 %v201
    %420 = vmatprep.subr.mxu0 %v197
    %421 = vmatpush1.msra.mxu0 %v196
    %422 = vmatprep.subr.mxu0 0.0
    %423 = vmatpush2.msra.mxu0 0.0
    %424 = vmatprep.subr.mxu0 0.0
    %425 = vmatpush2.msra.mxu0 0.0
    %426 = vmatprep.subr.mxu0 0.0
    %427 = vmatpush2.msra.mxu0 0.0
    %428 = vmatprep.subr.mxu0 0.0
    %429 = vmatpush2.msra.mxu0 0.0
    %430 = vmatprep.subr.mxu0 0.0
    %431 = vmatpush2.msra.mxu0 0.0
    %432 = vmatprep.subr.mxu0 0.0
    %433 = vmatpush2.msra.mxu0 0.0
    %434 = vmatprep.subr.mxu0 0.0
    %435 = vmatpush2.msra.mxu0 0.0
    %436 = vmatprep.subr.mxu0 0.0
    %437 = vmatpush2.msra.mxu0 0.0
    %438 = vmatprep.subr.mxu0 0.0
    %439 = vmatpush2.msra.mxu0 0.0
    %440 = vmatprep.subr.mxu0 0.0
    %441 = vmatpush2.msra.mxu0 0.0
    %442 = vmatprep.subr.mxu0 0.0
    %443 = vmatpush2.msra.mxu0 0.0
    %444 = vmatprep.subr.mxu0 0.0
    %445 = vmatpush2.msra.mxu0 0.0
    %446 = vmatprep.subr.mxu0 0.0
    %447 = vmatpush2.msra.mxu0 0.0
    %448 = vmatprep.subr.mxu0 0.0
    %449 = vmatpush2.msra.mxu0 0.0
    %450 = vmatprep.subr.mxu0 0.0
    %451 = vmatpush2.msra.mxu0 0.0
    %452 = vmatprep.subr.mxu0 0.0
    %453 = vmatpush2.msra.mxu0 0.0
    %454 = vmatprep.mubr.f32.mxu0 0.0
    %455 = vmatmul.mubr.f32.gmra.mxu0 %v190
    %v456 = vpop.f32.mrf.mxu0
    %v457 = vadd.f32 %v287, %v456
    %v458 = vpop.f32.mrf.mxu0
    %v459 = vadd.f32 %v291, %v458
    %460 = vmatprep.mubr.f32.mxu0 0.0
    %461 = vmatmul.mubr.f32.gmra.mxu0 %v191
    %v462 = vpop.f32.mrf.mxu0
    %v463 = vadd.f32 %v287, %v462
    %v464 = vpop.f32.mrf.mxu0
    %v465 = vadd.f32 %v291, %v464
    %466 = vmatprep.mubr.f32.mxu0 0.0
    %467 = vmatmul.mubr.f32.gmra.mxu0 %v192
    %v468 = vpop.f32.mrf.mxu0
    %v469 = vadd.f32 %v287, %v468
    %v470 = vpop.f32.mrf.mxu0
    %v471 = vadd.f32 %v291, %v470
    %472 = vmatprep.mubr.f32.mxu0 0.0
    %473 = vmatmul.mubr.f32.gmra.mxu0 %v193
    %v474 = vpop.f32.mrf.mxu0
    %v475 = vadd.f32 %v287, %v474
    %v476 = vpop.f32.mrf.mxu0
    %v477 = vadd.f32 %v291, %v476
    %478 = vdwg.mxu0
    %479 = vmatprep.subr.mxu0 0.0
    %480 = vmatpush1.msra.mxu0 %v273
    %481 = vmatprep.subr.mxu0 0.0
    %482 = vmatpush1.msra.mxu0 %v268
    %483 = vmatprep.subr.mxu0 0.0
    %484 = vmatpush1.msra.mxu0 %v263
    %485 = vmatprep.subr.mxu0 0.0
    %486 = vmatpush1.msra.mxu0 %v258
    %487 = vmatprep.subr.mxu0 0.0
    %488 = vmatpush1.msra.mxu0 %v253
    %489 = vmatprep.subr.mxu0 0.0
    %490 = vmatpush1.msra.mxu0 %v248
    %491 = vmatprep.subr.mxu0 0.0
    %492 = vmatpush1.msra.mxu0 %v243
    %493 = vmatprep.subr.mxu0 0.0
    %494 = vmatpush1.msra.mxu0 %v238
    %495 = vmatprep.subr.mxu0 0.0
    %496 = vmatpush1.msra.mxu0 %v233
    %497 = vmatprep.subr.mxu0 0.0
    %498 = vmatpush1.msra.mxu0 %v228
    %499 = vmatprep.subr.mxu0 0.0
    %500 = vmatpush1.msra.mxu0 %v223
    %501 = vmatprep.subr.mxu0 0.0
    %502 = vmatpush1.msra.mxu0 %v218
    %503 = vmatprep.subr.mxu0 0.0
    %504 = vmatpush1.msra.mxu0 %v213
    %505 = vmatprep.subr.mxu0 0.0
    %506 = vmatpush1.msra.mxu0 %v208
    %507 = vmatprep.subr.mxu0 0.0
    %508 = vmatpush1.msra.mxu0 %v203
    %509 = vmatprep.subr.mxu0 0.0
    %510 = vmatpush1.msra.mxu0 %v198
    %511 = vmatprep.subr.mxu0 0.0
    %512 = vmatpush2.msra.mxu0 0.0
    %513 = vmatprep.subr.mxu0 0.0
    %514 = vmatpush2.msra.mxu0 0.0
    %515 = vmatprep.subr.mxu0 0.0
    %516 = vmatpush2.msra.mxu0 0.0
    %517 = vmatprep.subr.mxu0 0.0
    %518 = vmatpush2.msra.mxu0 0.0
    %519 = vmatprep.subr.mxu0 0.0
    %520 = vmatpush2.msra.mxu0 0.0
    %521 = vmatprep.subr.mxu0 0.0
    %522 = vmatpush2.msra.mxu0 0.0
    %523 = vmatprep.subr.mxu0 0.0
    %524 = vmatpush2.msra.mxu0 0.0
    %525 = vmatprep.subr.mxu0 0.0
    %526 = vmatpush2.msra.mxu0 0.0
    %527 = vmatprep.subr.mxu0 0.0
    %528 = vmatpush2.msra.mxu0 0.0
    %529 = vmatprep.subr.mxu0 0.0
    %530 = vmatpush2.msra.mxu0 0.0
    %531 = vmatprep.subr.mxu0 0.0
    %532 = vmatpush2.msra.mxu0 0.0
    %533 = vmatprep.subr.mxu0 0.0
    %534 = vmatpush2.msra.mxu0 0.0
    %535 = vmatprep.subr.mxu0 0.0
    %536 = vmatpush2.msra.mxu0 0.0
    %537 = vmatprep.subr.mxu0 0.0
    %538 = vmatpush2.msra.mxu0 0.0
    %539 = vmatprep.subr.mxu0 0.0
    %540 = vmatpush2.msra.mxu0 0.0
    %541 = vmatprep.subr.mxu0 0.0
    %542 = vmatpush2.msra.mxu0 0.0
    %543 = vmatprep.mubr.f32.mxu0 0.0
    %544 = vmatmul.mubr.f32.gmra.mxu0 %v190
    %v545 = vpop.f32.mrf.mxu0
    %v546 = vadd.f32 %v295, %v545
    %v547 = vpop.f32.mrf.mxu0
    %548 = vmatprep.mubr.f32.mxu0 0.0
    %549 = vmatmul.mubr.f32.gmra.mxu0 %v191
    %v550 = vpop.f32.mrf.mxu0
    %v551 = vadd.f32 %v295, %v550
    %v552 = vpop.f32.mrf.mxu0
    %553 = vmatprep.mubr.f32.mxu0 0.0
    %554 = vmatmul.mubr.f32.gmra.mxu0 %v192
    %v555 = vpop.f32.mrf.mxu0
    %v556 = vadd.f32 %v295, %v555
    %v557 = vpop.f32.mrf.mxu0
    %558 = vmatprep.mubr.f32.mxu0 0.0
    %559 = vmatmul.mubr.f32.gmra.mxu0 %v193
    %v560 = vpop.f32.mrf.mxu0
    %v561 = vadd.f32 %v295, %v560
    %v562 = vpop.f32.mrf.mxu0
    %563 = vdwg.mxu0
    %v564 = vld [vmem:[%s6 + $0x4] sm:$0xf]
    %v565 = vld [vmem:[%s12 + $0x6] sm:$0x1]
    %v567 = vlaneseq
    %v568 = vshrl.u32 %v567, 7
    %v569 = vsub.s32 0, %v568
    %v570 = vrot.slane %v565, %v569
    %v573 = vsel %vm88, %v78, 0
    %v576 = vsel %vm88, %v79, 0
    %v579 = vsel %vm101, %v564, 0
    %581 = vmatprep.subr.mxu0 0.0
    %582 = vmatpush1.msra.mxu0 0.0
    %583 = vmatprep.subr.mxu0 0.0
    %584 = vmatpush1.msra.mxu0 0.0
    %585 = vmatprep.subr.mxu0 0.0
    %586 = vmatpush1.msra.mxu0 0.0
    %587 = vmatprep.subr.mxu0 0.0
    %588 = vmatpush1.msra.mxu0 0.0
    %589 = vmatprep.subr.mxu0 0.0
    %590 = vmatpush1.msra.mxu0 0.0
    %591 = vmatprep.subr.mxu0 0.0
    %592 = vmatpush1.msra.mxu0 0.0
    %593 = vmatprep.subr.mxu0 0.0
    %594 = vmatpush1.msra.mxu0 0.0
    %595 = vmatprep.subr.mxu0 0.0
    %596 = vmatpush1.msra.mxu0 0.0
    %597 = vmatprep.subr.mxu0 0.0
    %598 = vmatpush1.msra.mxu0 0.0
    %599 = vmatprep.subr.mxu0 0.0
    %600 = vmatpush1.msra.mxu0 0.0
    %601 = vmatprep.subr.mxu0 0.0
    %602 = vmatpush1.msra.mxu0 0.0
    %603 = vmatprep.subr.mxu0 0.0
    %604 = vmatpush1.msra.mxu0 0.0
    %605 = vmatprep.subr.mxu0 0.0
    %606 = vmatpush1.msra.mxu0 0.0
    %607 = vmatprep.subr.mxu0 0.0
    %608 = vmatpush1.msra.mxu0 0.0
    %609 = vmatprep.subr.mxu0 0.0
    %610 = vmatpush1.msra.mxu0 0.0
    %611 = vmatprep.subr.mxu0 0.0
    %612 = vmatpush1.msra.mxu0 %v579
    %613 = vmatprep.subr.mxu0 0.0
    %614 = vmatpush2.msra.mxu0 0.0
    %615 = vmatprep.subr.mxu0 0.0
    %616 = vmatpush2.msra.mxu0 0.0
    %617 = vmatprep.subr.mxu0 0.0
    %618 = vmatpush2.msra.mxu0 0.0
    %619 = vmatprep.subr.mxu0 0.0
    %620 = vmatpush2.msra.mxu0 0.0
    %621 = vmatprep.subr.mxu0 0.0
    %622 = vmatpush2.msra.mxu0 0.0
    %623 = vmatprep.subr.mxu0 0.0
    %624 = vmatpush2.msra.mxu0 0.0
    %625 = vmatprep.subr.mxu0 0.0
    %626 = vmatpush2.msra.mxu0 0.0
    %627 = vmatprep.subr.mxu0 0.0
    %628 = vmatpush2.msra.mxu0 0.0
    %629 = vmatprep.subr.mxu0 0.0
    %630 = vmatpush2.msra.mxu0 0.0
    %631 = vmatprep.subr.mxu0 0.0
    %632 = vmatpush2.msra.mxu0 0.0
    %633 = vmatprep.subr.mxu0 0.0
    %634 = vmatpush2.msra.mxu0 0.0
    %635 = vmatprep.subr.mxu0 0.0
    %636 = vmatpush2.msra.mxu0 0.0
    %637 = vmatprep.subr.mxu0 0.0
    %638 = vmatpush2.msra.mxu0 0.0
    %639 = vmatprep.subr.mxu0 0.0
    %640 = vmatpush2.msra.mxu0 0.0
    %641 = vmatprep.subr.mxu0 0.0
    %642 = vmatpush2.msra.mxu0 0.0
    %643 = vmatprep.subr.mxu0 0.0
    %644 = vmatpush2.msra.mxu0 0.0
    %645 = vmatprep.mubr.f32.mxu0 0.0
    %646 = vmatmul.mubr.f32.gmra.mxu0 %v573
    %v647 = vpop.f32.mrf.mxu0
    %v648 = vadd.f32 %v570, %v647
    %v649 = vpop.f32.mrf.mxu0
    %650 = vmatprep.mubr.f32.mxu0 0.0
    %651 = vmatmul.mubr.f32.gmra.mxu0 %v576
    %v652 = vpop.f32.mrf.mxu0
    %v653 = vadd.f32 %v570, %v652
    %v654 = vpop.f32.mrf.mxu0
    %655 = vdwg.mxu0
    %vm656 = vcmask 130048
    %v658 = vsel %vm656, %v66, 0
    %v661 = vsel %vm656, %v67, 0
    %v664 = vsel %vm656, %v68, 0
    %v667 = vsel %vm656, %v69, 0
    %669 = vmatprep.subr.mxu0 0.0
    %670 = vmatpush1.msra.mxu0 0.0
    %671 = vmatprep.subr.mxu0 0.0
    %672 = vmatpush1.msra.mxu0 0.0
    %673 = vmatprep.subr.mxu0 0.0
    %674 = vmatpush1.msra.mxu0 0.0
    %675 = vmatprep.subr.mxu0 0.0
    %676 = vmatpush1.msra.mxu0 0.0
    %677 = vmatprep.subr.mxu0 0.0
    %678 = vmatpush1.msra.mxu0 0.0
    %679 = vmatprep.subr.mxu0 0.0
    %680 = vmatpush1.msra.mxu0 0.0
    %681 = vmatprep.subr.mxu0 0.0
    %682 = vmatpush1.msra.mxu0 0.0
    %683 = vmatprep.subr.mxu0 0.0
    %684 = vmatpush1.msra.mxu0 0.0
    %685 = vmatprep.subr.mxu0 0.0
    %686 = vmatpush1.msra.mxu0 0.0
    %687 = vmatprep.subr.mxu0 0.0
    %688 = vmatpush1.msra.mxu0 0.0
    %689 = vmatprep.subr.mxu0 0.0
    %690 = vmatpush1.msra.mxu0 0.0
    %691 = vmatprep.subr.mxu0 0.0
    %692 = vmatpush1.msra.mxu0 0.0
    %693 = vmatprep.subr.mxu0 0.0
    %694 = vmatpush1.msra.mxu0 0.0
    %695 = vmatprep.subr.mxu0 0.0
    %696 = vmatpush1.msra.mxu0 0.0
    %697 = vmatprep.subr.mxu0 0.0
    %698 = vmatpush1.msra.mxu0 %v653
    %699 = vmatprep.subr.mxu0 0.0
    %700 = vmatpush1.msra.mxu0 %v648
    %701 = vmatprep.subr.mxu0 0.0
    %702 = vmatpush2.msra.mxu0 0.0
    %703 = vmatprep.subr.mxu0 0.0
    %704 = vmatpush2.msra.mxu0 0.0
    %705 = vmatprep.subr.mxu0 0.0
    %706 = vmatpush2.msra.mxu0 0.0
    %707 = vmatprep.subr.mxu0 0.0
    %708 = vmatpush2.msra.mxu0 0.0
    %709 = vmatprep.subr.mxu0 0.0
    %710 = vmatpush2.msra.mxu0 0.0
    %711 = vmatprep.subr.mxu0 0.0
    %712 = vmatpush2.msra.mxu0 0.0
    %713 = vmatprep.subr.mxu0 0.0
    %714 = vmatpush2.msra.mxu0 0.0
    %715 = vmatprep.subr.mxu0 0.0
    %716 = vmatpush2.msra.mxu0 0.0
    %717 = vmatprep.subr.mxu0 0.0
    %718 = vmatpush2.msra.mxu0 0.0
    %719 = vmatprep.subr.mxu0 0.0
    %720 = vmatpush2.msra.mxu0 0.0
    %721 = vmatprep.subr.mxu0 0.0
    %722 = vmatpush2.msra.mxu0 0.0
    %723 = vmatprep.subr.mxu0 0.0
    %724 = vmatpush2.msra.mxu0 0.0
    %725 = vmatprep.subr.mxu0 0.0
    %726 = vmatpush2.msra.mxu0 0.0
    %727 = vmatprep.subr.mxu0 0.0
    %728 = vmatpush2.msra.mxu0 0.0
    %729 = vmatprep.subr.mxu0 0.0
    %730 = vmatpush2.msra.mxu0 0.0
    %731 = vmatprep.subr.mxu0 0.0
    %732 = vmatpush2.msra.mxu0 0.0
    %733 = vmatprep.mubr.f32.mxu0 0.0
    %734 = vmatmul.mubr.f32.gmra.mxu0 %v658
    %v735 = vpop.f32.mrf.mxu0
    %v736 = vadd.f32 0.0, %v735
    %v737 = vpop.f32.mrf.mxu0
    %738 = vmatprep.mubr.f32.mxu0 0.0
    %739 = vmatmul.mubr.f32.gmra.mxu0 %v661
    %v740 = vpop.f32.mrf.mxu0
    %v741 = vadd.f32 0.0, %v740
    %v742 = vpop.f32.mrf.mxu0
    %743 = vmatprep.mubr.f32.mxu0 0.0
    %744 = vmatmul.mubr.f32.gmra.mxu0 %v664
    %v745 = vpop.f32.mrf.mxu0
    %v746 = vadd.f32 0.0, %v745
    %v747 = vpop.f32.mrf.mxu0
    %748 = vmatprep.mubr.f32.mxu0 0.0
    %749 = vmatmul.mubr.f32.gmra.mxu0 %v667
    %v750 = vpop.f32.mrf.mxu0
    %v751 = vadd.f32 0.0, %v750
    %v752 = vpop.f32.mrf.mxu0
    %753 = vdwg.mxu0
    %v754 = vld [vmem:[%s8] sm:$0xff]
    %v755 = vld [vmem:[%s8 + $0x8] sm:$0xff]
    %v756 = vld [vmem:[%s8 + $0x10] sm:$0xff]
    %v757 = vld [vmem:[%s8 + $0x18] sm:$0xff]
    %v758 = vld [vmem:[%s8 + $0x20] sm:$0xff]
    %v759 = vld [vmem:[%s8 + $0x28] sm:$0xff]
    %766 = vrot.lane.b32.xlu0 %v754, 71
    %v767 = vpop.permute.xlu0 %766
    %768 = vrot.lane.b32.xlu0 %v755, 71
    %v769 = vpop.permute.xlu0 %768
    %770 = vrot.lane.b32.xlu0 %v756, 71
    %v771 = vpop.permute.xlu0 %770
    %772 = vrot.lane.b32.xlu0 %v757, 71
    %v773 = vpop.permute.xlu0 %772
    %774 = vrot.lane.b32.xlu0 %v758, 71
    %v775 = vpop.permute.xlu0 %774
    %776 = vrot.lane.b32.xlu0 %v759, 71
    %v777 = vpop.permute.xlu0 %776
    %vm778 = vcmask 580608
    %v779 = vsel %vm778, %v767, %v769
    %v780 = vsel %vm778, %v769, %v771
    %v781 = vsel %vm778, %v773, %v775
    %v782 = vsel %vm778, %v775, %v777
    %v788 = vsel %vm656, %v736, 0
    %v791 = vsel %vm656, %v741, 0
    %v794 = vsel %vm656, %v746, 0
    %v797 = vsel %vm656, %v751, 0
    %799 = vmatprep.subr.mxu0 0.0
    %800 = vmatpush1.msra.mxu0 0.0
    %801 = vmatprep.subr.mxu0 0.0
    %802 = vmatpush1.msra.mxu0 0.0
    %803 = vmatprep.subr.mxu0 0.0
    %804 = vmatpush1.msra.mxu0 0.0
    %805 = vmatprep.subr.mxu0 0.0
    %806 = vmatpush1.msra.mxu0 0.0
    %807 = vmatprep.subr.mxu0 0.0
    %808 = vmatpush1.msra.mxu0 0.0
    %809 = vmatprep.subr.mxu0 0.0
    %810 = vmatpush1.msra.mxu0 0.0
    %811 = vmatprep.subr.mxu0 0.0
    %812 = vmatpush1.msra.mxu0 0.0
    %813 = vmatprep.subr.mxu0 0.0
    %814 = vmatpush1.msra.mxu0 0.0
    %815 = vmatprep.subr.mxu0 0.0
    %816 = vmatpush1.msra.mxu0 0.0
    %817 = vmatprep.subr.mxu0 0.0
    %818 = vmatpush1.msra.mxu0 0.0
    %819 = vmatprep.subr.mxu0 0.0
    %820 = vmatpush1.msra.mxu0 0.0
    %821 = vmatprep.subr.mxu0 0.0
    %822 = vmatpush1.msra.mxu0 0.0
    %823 = vmatprep.subr.mxu0 0.0
    %824 = vmatpush1.msra.mxu0 0.0
    %825 = vmatprep.subr.mxu0 0.0
    %826 = vmatpush1.msra.mxu0 0.0
    %827 = vmatprep.subr.mxu0 %v782
    %828 = vmatpush1.msra.mxu0 %v781
    %829 = vmatprep.subr.mxu0 %v780
    %830 = vmatpush1.msra.mxu0 %v779
    %831 = vmatprep.subr.mxu0 0.0
    %832 = vmatpush2.msra.mxu0 0.0
    %833 = vmatprep.subr.mxu0 0.0
    %834 = vmatpush2.msra.mxu0 0.0
    %835 = vmatprep.subr.mxu0 0.0
    %836 = vmatpush2.msra.mxu0 0.0
    %837 = vmatprep.subr.mxu0 0.0
    %838 = vmatpush2.msra.mxu0 0.0
    %839 = vmatprep.subr.mxu0 0.0
    %840 = vmatpush2.msra.mxu0 0.0
    %841 = vmatprep.subr.mxu0 0.0
    %842 = vmatpush2.msra.mxu0 0.0
    %843 = vmatprep.subr.mxu0 0.0
    %844 = vmatpush2.msra.mxu0 0.0
    %845 = vmatprep.subr.mxu0 0.0
    %846 = vmatpush2.msra.mxu0 0.0
    %847 = vmatprep.subr.mxu0 0.0
    %848 = vmatpush2.msra.mxu0 0.0
    %849 = vmatprep.subr.mxu0 0.0
    %850 = vmatpush2.msra.mxu0 0.0
    %851 = vmatprep.subr.mxu0 0.0
    %852 = vmatpush2.msra.mxu0 0.0
    %853 = vmatprep.subr.mxu0 0.0
    %854 = vmatpush2.msra.mxu0 0.0
    %855 = vmatprep.subr.mxu0 0.0
    %856 = vmatpush2.msra.mxu0 0.0
    %857 = vmatprep.subr.mxu0 0.0
    %858 = vmatpush2.msra.mxu0 0.0
    %859 = vmatprep.subr.mxu0 0.0
    %860 = vmatpush2.msra.mxu0 0.0
    %861 = vmatprep.subr.mxu0 0.0
    %862 = vmatpush2.msra.mxu0 0.0
    %863 = vmatprep.mubr.f32.mxu0 0.0
    %864 = vmatmul.mubr.f32.gmra.mxu0 %v788
    %v865 = vpop.f32.mrf.mxu0
    %v866 = vadd.f32 0.0, %v865
    %v867 = vpop.f32.mrf.mxu0
    %v868 = vadd.f32 0.0, %v867
    %869 = vmatprep.mubr.f32.mxu0 0.0
    %870 = vmatmul.mubr.f32.gmra.mxu0 %v791
    %v871 = vpop.f32.mrf.mxu0
    %v872 = vadd.f32 0.0, %v871
    %v873 = vpop.f32.mrf.mxu0
    %v874 = vadd.f32 0.0, %v873
    %875 = vmatprep.mubr.f32.mxu0 0.0
    %876 = vmatmul.mubr.f32.gmra.mxu0 %v794
    %v877 = vpop.f32.mrf.mxu0
    %v878 = vadd.f32 0.0, %v877
    %v879 = vpop.f32.mrf.mxu0
    %v880 = vadd.f32 0.0, %v879
    %881 = vmatprep.mubr.f32.mxu0 0.0
    %882 = vmatmul.mubr.f32.gmra.mxu0 %v797
    %v883 = vpop.f32.mrf.mxu0
    %v884 = vadd.f32 0.0, %v883
    %v885 = vpop.f32.mrf.mxu0
    %v886 = vadd.f32 0.0, %v885
    %887 = vdwg.mxu0
    %v888 = vmul.f32 %v866, %v368
    %v889 = vmul.f32 %v868, %v370
    %v890 = vmul.f32 %v872, %v374
    %v891 = vmul.f32 %v874, %v376
    %v892 = vmul.f32 %v878, %v380
    %v893 = vmul.f32 %v880, %v382
    %v894 = vmul.f32 %v884, %v386
    %v895 = vmul.f32 %v886, %v388
    %v896 = vld [vmem:[%s11] sm:$0xff]
    %v897 = vld [vmem:[%s11 + $0x8] sm:$0xff]
    %v898 = vld [vmem:[%s11 + $0x10] sm:$0xff]
    %v899 = vld [vmem:[%s11 + $0x18] sm:$0xff]
    %v900 = vld [vmem:[%s11 + $0x20] sm:$0xff]
    %v901 = vld [vmem:[%s11 + $0x28] sm:$0xff]
    %v902 = vld [vmem:[%s11 + $0x30] sm:$0xff]
    %v903 = vld [vmem:[%s11 + $0x38] sm:$0xff]
    %v904 = vld [vmem:[%s11 + $0x40] sm:$0xff]
    %v905 = vld [vmem:[%s11 + $0x48] sm:$0xff]
    %v906 = vld [vmem:[%s11 + $0x50] sm:$0xff]
    %v907 = vld [vmem:[%s11 + $0x58] sm:$0xff]
    %v908 = vld [vmem:[%s11 + $0x60] sm:$0xff]
    %v909 = vld [vmem:[%s11 + $0x68] sm:$0xff]
    %v910 = vld [vmem:[%s11 + $0x70] sm:$0xff]
    %v911 = vld [vmem:[%s11 + $0x78] sm:$0xff]
    %v912 = vld [vmem:[%s11 + $0x80] sm:$0xff]
    %v913 = vld [vmem:[%s11 + $0x88] sm:$0xff]
    %v914 = vld [vmem:[%s11 + $0x90] sm:$0xff]
    %v915 = vld [vmem:[%s11 + $0x98] sm:$0xff]
    %v916 = vld [vmem:[%s11 + $0xa0] sm:$0xff]
    %v917 = vld [vmem:[%s11 + $0xa8] sm:$0xff]
    %v918 = vld [vmem:[%s11 + $0xb0] sm:$0xff]
    %v919 = vld [vmem:[%s11 + $0xb8] sm:$0xff]
    %v920 = vld [vmem:[%s11 + $0xc0] sm:$0xff]
    %v921 = vld [vmem:[%s11 + $0xc8] sm:$0xff]
    %v922 = vld [vmem:[%s11 + $0xd0] sm:$0xff]
    %v923 = vld [vmem:[%s11 + $0xd8] sm:$0xff]
    %v924 = vld [vmem:[%s11 + $0xe0] sm:$0xff]
    %v925 = vld [vmem:[%s11 + $0xe8] sm:$0xff]
    %v926 = vld [vmem:[%s11 + $0xf0] sm:$0xff]
    %v927 = vld [vmem:[%s11 + $0xf8] sm:$0xff]
    %928 = vmatprep.subr.mxu0 0.0
    %929 = vmatpush1.msra.mxu0 %v911
    %930 = vmatprep.subr.mxu0 0.0
    %931 = vmatpush1.msra.mxu0 %v910
    %932 = vmatprep.subr.mxu0 0.0
    %933 = vmatpush1.msra.mxu0 %v909
    %934 = vmatprep.subr.mxu0 0.0
    %935 = vmatpush1.msra.mxu0 %v908
    %936 = vmatprep.subr.mxu0 0.0
    %937 = vmatpush1.msra.mxu0 %v907
    %938 = vmatprep.subr.mxu0 0.0
    %939 = vmatpush1.msra.mxu0 %v906
    %940 = vmatprep.subr.mxu0 0.0
    %941 = vmatpush1.msra.mxu0 %v905
    %942 = vmatprep.subr.mxu0 0.0
    %943 = vmatpush1.msra.mxu0 %v904
    %944 = vmatprep.subr.mxu0 0.0
    %945 = vmatpush1.msra.mxu0 %v903
    %946 = vmatprep.subr.mxu0 0.0
    %947 = vmatpush1.msra.mxu0 %v902
    %948 = vmatprep.subr.mxu0 0.0
    %949 = vmatpush1.msra.mxu0 %v901
    %950 = vmatprep.subr.mxu0 0.0
    %951 = vmatpush1.msra.mxu0 %v900
    %952 = vmatprep.subr.mxu0 0.0
    %953 = vmatpush1.msra.mxu0 %v899
    %954 = vmatprep.subr.mxu0 0.0
    %955 = vmatpush1.msra.mxu0 %v898
    %956 = vmatprep.subr.mxu0 0.0
    %957 = vmatpush1.msra.mxu0 %v897
    %958 = vmatprep.subr.mxu0 0.0
    %959 = vmatpush1.msra.mxu0 %v896
    %960 = vmatprep.subr.mxu0 0.0
    %961 = vmatpush2.msra.mxu0 %v927
    %962 = vmatprep.subr.mxu0 0.0
    %963 = vmatpush2.msra.mxu0 %v926
    %964 = vmatprep.subr.mxu0 0.0
    %965 = vmatpush2.msra.mxu0 %v925
    %966 = vmatprep.subr.mxu0 0.0
    %967 = vmatpush2.msra.mxu0 %v924
    %968 = vmatprep.subr.mxu0 0.0
    %969 = vmatpush2.msra.mxu0 %v923
    %970 = vmatprep.subr.mxu0 0.0
    %971 = vmatpush2.msra.mxu0 %v922
    %972 = vmatprep.subr.mxu0 0.0
    %973 = vmatpush2.msra.mxu0 %v921
    %974 = vmatprep.subr.mxu0 0.0
    %975 = vmatpush2.msra.mxu0 %v920
    %976 = vmatprep.subr.mxu0 0.0
    %977 = vmatpush2.msra.mxu0 %v919
    %978 = vmatprep.subr.mxu0 0.0
    %979 = vmatpush2.msra.mxu0 %v918
    %980 = vmatprep.subr.mxu0 0.0
    %981 = vmatpush2.msra.mxu0 %v917
    %982 = vmatprep.subr.mxu0 0.0
    %983 = vmatpush2.msra.mxu0 %v916
    %984 = vmatprep.subr.mxu0 0.0
    %985 = vmatpush2.msra.mxu0 %v915
    %986 = vmatprep.subr.mxu0 0.0
    %987 = vmatpush2.msra.mxu0 %v914
    %988 = vmatprep.subr.mxu0 0.0
    %989 = vmatpush2.msra.mxu0 %v913
    %990 = vmatprep.subr.mxu0 0.0
    %991 = vmatpush2.msra.mxu0 %v912
    %992 = vmatprep.mubr.f32.mxu0 %v889
    %993 = vmatmul.mubr.f32.gmra.mxu0 %v888
    %v994 = vpop.f32.mrf.mxu0
    %v995 = vadd.f32 0.0, %v994
    %v996 = vpop.f32.mrf.mxu0
    %997 = vmatprep.mubr.f32.mxu0 %v891
    %998 = vmatmul.mubr.f32.gmra.mxu0 %v890
    %v999 = vpop.f32.mrf.mxu0
    %v1000 = vadd.f32 0.0, %v999
    %v1001 = vpop.f32.mrf.mxu0
    %1002 = vmatprep.mubr.f32.mxu0 %v893
    %1003 = vmatmul.mubr.f32.gmra.mxu0 %v892
    %v1004 = vpop.f32.mrf.mxu0
    %v1005 = vadd.f32 0.0, %v1004
    %v1006 = vpop.f32.mrf.mxu0
    %1007 = vmatprep.mubr.f32.mxu0 %v895
    %1008 = vmatmul.mubr.f32.gmra.mxu0 %v894
    %v1009 = vpop.f32.mrf.mxu0
    %v1010 = vadd.f32 0.0, %v1009
    %v1011 = vpop.f32.mrf.mxu0
    %1012 = vdwg.mxu0
    %vm1013 = vcmask 261120
    %v1015 = vsel %vm1013, %v62, 0
    %v1018 = vsel %vm1013, %v63, 0
    %1020 = vmatprep.subr.mxu0 0.0
    %1021 = vmatpush1.msra.mxu0 0.0
    %1022 = vmatprep.subr.mxu0 0.0
    %1023 = vmatpush1.msra.mxu0 0.0
    %1024 = vmatprep.subr.mxu0 0.0
    %1025 = vmatpush1.msra.mxu0 0.0
    %1026 = vmatprep.subr.mxu0 0.0
    %1027 = vmatpush1.msra.mxu0 0.0
    %1028 = vmatprep.subr.mxu0 0.0
    %1029 = vmatpush1.msra.mxu0 0.0
    %1030 = vmatprep.subr.mxu0 0.0
    %1031 = vmatpush1.msra.mxu0 0.0
    %1032 = vmatprep.subr.mxu0 0.0
    %1033 = vmatpush1.msra.mxu0 0.0
    %1034 = vmatprep.subr.mxu0 0.0
    %1035 = vmatpush1.msra.mxu0 0.0
    %1036 = vmatprep.subr.mxu0 0.0
    %1037 = vmatpush1.msra.mxu0 0.0
    %1038 = vmatprep.subr.mxu0 0.0
    %1039 = vmatpush1.msra.mxu0 0.0
    %1040 = vmatprep.subr.mxu0 0.0
    %1041 = vmatpush1.msra.mxu0 0.0
    %1042 = vmatprep.subr.mxu0 0.0
    %1043 = vmatpush1.msra.mxu0 0.0
    %1044 = vmatprep.subr.mxu0 0.0
    %1045 = vmatpush1.msra.mxu0 %v1010
    %1046 = vmatprep.subr.mxu0 0.0
    %1047 = vmatpush1.msra.mxu0 %v1005
    %1048 = vmatprep.subr.mxu0 0.0
    %1049 = vmatpush1.msra.mxu0 %v1000
    %1050 = vmatprep.subr.mxu0 0.0
    %1051 = vmatpush1.msra.mxu0 %v995
    %1052 = vmatprep.subr.mxu0 0.0
    %1053 = vmatpush2.msra.mxu0 0.0
    %1054 = vmatprep.subr.mxu0 0.0
    %1055 = vmatpush2.msra.mxu0 0.0
    %1056 = vmatprep.subr.mxu0 0.0
    %1057 = vmatpush2.msra.mxu0 0.0
    %1058 = vmatprep.subr.mxu0 0.0
    %1059 = vmatpush2.msra.mxu0 0.0
    %1060 = vmatprep.subr.mxu0 0.0
    %1061 = vmatpush2.msra.mxu0 0.0
    %1062 = vmatprep.subr.mxu0 0.0
    %1063 = vmatpush2.msra.mxu0 0.0
    %1064 = vmatprep.subr.mxu0 0.0
    %1065 = vmatpush2.msra.mxu0 0.0
    %1066 = vmatprep.subr.mxu0 0.0
    %1067 = vmatpush2.msra.mxu0 0.0
    %1068 = vmatprep.subr.mxu0 0.0
    %1069 = vmatpush2.msra.mxu0 0.0
    %1070 = vmatprep.subr.mxu0 0.0
    %1071 = vmatpush2.msra.mxu0 0.0
    %1072 = vmatprep.subr.mxu0 0.0
    %1073 = vmatpush2.msra.mxu0 0.0
    %1074 = vmatprep.subr.mxu0 0.0
    %1075 = vmatpush2.msra.mxu0 0.0
    %1076 = vmatprep.subr.mxu0 0.0
    %1077 = vmatpush2.msra.mxu0 0.0
    %1078 = vmatprep.subr.mxu0 0.0
    %1079 = vmatpush2.msra.mxu0 0.0
    %1080 = vmatprep.subr.mxu0 0.0
    %1081 = vmatpush2.msra.mxu0 0.0
    %1082 = vmatprep.subr.mxu0 0.0
    %1083 = vmatpush2.msra.mxu0 0.0
    %1084 = vmatprep.mubr.f32.mxu0 0.0
    %1085 = vmatmul.mubr.f32.gmra.mxu0 %v1015
    %v1086 = vpop.f32.mrf.mxu0
    %v1087 = vadd.f32 0.0, %v1086
    %v1088 = vpop.f32.mrf.mxu0
    %1089 = vmatprep.mubr.f32.mxu0 0.0
    %1090 = vmatmul.mubr.f32.gmra.mxu0 %v1018
    %v1091 = vpop.f32.mrf.mxu0
    %v1092 = vadd.f32 0.0, %v1091
    %v1093 = vpop.f32.mrf.mxu0
    %1094 = vdwg.mxu0
    %1096 = vset.pattern.permute.xlu0 0
    %1097 = vperm.xlu0 %1096, %v64
    %v1098 = vpop.permute.xlu0 %1097
    %1101 = vset.pattern.permute.xlu0 0
    %1102 = vperm.xlu0 %1101, %v65
    %v1103 = vpop.permute.xlu0 %1102
    %v1105 = vmul.f32 %v1087, %v1098
    %v1106 = vmul.f32 %v1092, %v1103
    %v1107 = vld [vmem:[%s8] sm:$0xff]
    %v1108 = vld [vmem:[%s8 + $0x18] sm:$0xff]
    %v1110 = vsel %vm656, %v648, 0
    %v1113 = vsel %vm656, %v653, 0
    %1115 = vmatprep.subr.mxu0 0.0
    %1116 = vmatpush1.msra.mxu0 0.0
    %1117 = vmatprep.subr.mxu0 0.0
    %1118 = vmatpush1.msra.mxu0 0.0
    %1119 = vmatprep.subr.mxu0 0.0
    %1120 = vmatpush1.msra.mxu0 0.0
    %1121 = vmatprep.subr.mxu0 0.0
    %1122 = vmatpush1.msra.mxu0 0.0
    %1123 = vmatprep.subr.mxu0 0.0
    %1124 = vmatpush1.msra.mxu0 0.0
    %1125 = vmatprep.subr.mxu0 0.0
    %1126 = vmatpush1.msra.mxu0 0.0
    %1127 = vmatprep.subr.mxu0 0.0
    %1128 = vmatpush1.msra.mxu0 0.0
    %1129 = vmatprep.subr.mxu0 0.0
    %1130 = vmatpush1.msra.mxu0 0.0
    %1131 = vmatprep.subr.mxu0 0.0
    %1132 = vmatpush1.msra.mxu0 0.0
    %1133 = vmatprep.subr.mxu0 0.0
    %1134 = vmatpush1.msra.mxu0 0.0
    %1135 = vmatprep.subr.mxu0 0.0
    %1136 = vmatpush1.msra.mxu0 0.0
    %1137 = vmatprep.subr.mxu0 0.0
    %1138 = vmatpush1.msra.mxu0 0.0
    %1139 = vmatprep.subr.mxu0 0.0
    %1140 = vmatpush1.msra.mxu0 0.0
    %1141 = vmatprep.subr.mxu0 0.0
    %1142 = vmatpush1.msra.mxu0 0.0
    %1143 = vmatprep.subr.mxu0 0.0
    %1144 = vmatpush1.msra.mxu0 %v1108
    %1145 = vmatprep.subr.mxu0 0.0
    %1146 = vmatpush1.msra.mxu0 %v1107
    %1147 = vmatprep.subr.mxu0 0.0
    %1148 = vmatpush2.msra.mxu0 0.0
    %1149 = vmatprep.subr.mxu0 0.0
    %1150 = vmatpush2.msra.mxu0 0.0
    %1151 = vmatprep.subr.mxu0 0.0
    %1152 = vmatpush2.msra.mxu0 0.0
    %1153 = vmatprep.subr.mxu0 0.0
    %1154 = vmatpush2.msra.mxu0 0.0
    %1155 = vmatprep.subr.mxu0 0.0
    %1156 = vmatpush2.msra.mxu0 0.0
    %1157 = vmatprep.subr.mxu0 0.0
    %1158 = vmatpush2.msra.mxu0 0.0
    %1159 = vmatprep.subr.mxu0 0.0
    %1160 = vmatpush2.msra.mxu0 0.0
    %1161 = vmatprep.subr.mxu0 0.0
    %1162 = vmatpush2.msra.mxu0 0.0
    %1163 = vmatprep.subr.mxu0 0.0
    %1164 = vmatpush2.msra.mxu0 0.0
    %1165 = vmatprep.subr.mxu0 0.0
    %1166 = vmatpush2.msra.mxu0 0.0
    %1167 = vmatprep.subr.mxu0 0.0
    %1168 = vmatpush2.msra.mxu0 0.0
    %1169 = vmatprep.subr.mxu0 0.0
    %1170 = vmatpush2.msra.mxu0 0.0
    %1171 = vmatprep.subr.mxu0 0.0
    %1172 = vmatpush2.msra.mxu0 0.0
    %1173 = vmatprep.subr.mxu0 0.0
    %1174 = vmatpush2.msra.mxu0 0.0
    %1175 = vmatprep.subr.mxu0 0.0
    %1176 = vmatpush2.msra.mxu0 0.0
    %1177 = vmatprep.subr.mxu0 0.0
    %1178 = vmatpush2.msra.mxu0 0.0
    %1179 = vmatprep.mubr.f32.mxu0 0.0
    %1180 = vmatmul.mubr.f32.gmra.mxu0 %v1110
    %v1181 = vpop.f32.mrf.mxu0
    %v1182 = vadd.f32 0.0, %v1181
    %v1183 = vpop.f32.mrf.mxu0
    %1184 = vmatprep.mubr.f32.mxu0 0.0
    %1185 = vmatmul.mubr.f32.gmra.mxu0 %v1113
    %v1186 = vpop.f32.mrf.mxu0
    %v1187 = vadd.f32 0.0, %v1186
    %v1188 = vpop.f32.mrf.mxu0
    %1189 = vdwg.mxu0
    %v1190 = vadd.f32 %v1105, %v1182
    %v1191 = vadd.f32 %v1106, %v1187
    %1192 = vrot.lane.b32.xlu0 %v570, 112
    %v1193 = vpop.permute.xlu0 %1192
    %v1195 = vadd.f32 %v1190, %v1193
    %v1196 = vadd.f32 %v1191, %v1193
    %v1197 = vmax.f32 %v1195, 0.0
    %v1198 = vmax.f32 %v1196, 0.0
    %v1199 = vadd.f32 %v1197, %v648
    %v1200 = vadd.f32 %v1198, %v653
    %1203 = vrot.lane.b32.xlu0 %v1107, 112
    %v1204 = vpop.permute.xlu0 %1203
    %1205 = vrot.lane.b32.xlu0 %v1108, 112
    %v1206 = vpop.permute.xlu0 %1205
    %1209 = vrot.lane.b32.xlu0 %v570, 96
    %v1210 = vpop.permute.xlu0 %1209
    %v1213 = vsel %vm656, %v1199, 0
    %v1216 = vsel %vm656, %v1200, 0
    %1218 = vmatprep.subr.mxu0 0.0
    %1219 = vmatpush1.msra.mxu0 0.0
    %1220 = vmatprep.subr.mxu0 0.0
    %1221 = vmatpush1.msra.mxu0 0.0
    %1222 = vmatprep.subr.mxu0 0.0
    %1223 = vmatpush1.msra.mxu0 0.0
    %1224 = vmatprep.subr.mxu0 0.0
    %1225 = vmatpush1.msra.mxu0 0.0
    %1226 = vmatprep.subr.mxu0 0.0
    %1227 = vmatpush1.msra.mxu0 0.0
    %1228 = vmatprep.subr.mxu0 0.0
    %1229 = vmatpush1.msra.mxu0 0.0
    %1230 = vmatprep.subr.mxu0 0.0
    %1231 = vmatpush1.msra.mxu0 0.0
    %1232 = vmatprep.subr.mxu0 0.0
    %1233 = vmatpush1.msra.mxu0 0.0
    %1234 = vmatprep.subr.mxu0 0.0
    %1235 = vmatpush1.msra.mxu0 0.0
    %1236 = vmatprep.subr.mxu0 0.0
    %1237 = vmatpush1.msra.mxu0 0.0
    %1238 = vmatprep.subr.mxu0 0.0
    %1239 = vmatpush1.msra.mxu0 0.0
    %1240 = vmatprep.subr.mxu0 0.0
    %1241 = vmatpush1.msra.mxu0 0.0
    %1242 = vmatprep.subr.mxu0 0.0
    %1243 = vmatpush1.msra.mxu0 0.0
    %1244 = vmatprep.subr.mxu0 0.0
    %1245 = vmatpush1.msra.mxu0 0.0
    %1246 = vmatprep.subr.mxu0 0.0
    %1247 = vmatpush1.msra.mxu0 %v1206
    %1248 = vmatprep.subr.mxu0 0.0
    %1249 = vmatpush1.msra.mxu0 %v1204
    %1250 = vmatprep.subr.mxu0 0.0
    %1251 = vmatpush2.msra.mxu0 0.0
    %1252 = vmatprep.subr.mxu0 0.0
    %1253 = vmatpush2.msra.mxu0 0.0
    %1254 = vmatprep.subr.mxu0 0.0
    %1255 = vmatpush2.msra.mxu0 0.0
    %1256 = vmatprep.subr.mxu0 0.0
    %1257 = vmatpush2.msra.mxu0 0.0
    %1258 = vmatprep.subr.mxu0 0.0
    %1259 = vmatpush2.msra.mxu0 0.0
    %1260 = vmatprep.subr.mxu0 0.0
    %1261 = vmatpush2.msra.mxu0 0.0
    %1262 = vmatprep.subr.mxu0 0.0
    %1263 = vmatpush2.msra.mxu0 0.0
    %1264 = vmatprep.subr.mxu0 0.0
    %1265 = vmatpush2.msra.mxu0 0.0
    %1266 = vmatprep.subr.mxu0 0.0
    %1267 = vmatpush2.msra.mxu0 0.0
    %1268 = vmatprep.subr.mxu0 0.0
    %1269 = vmatpush2.msra.mxu0 0.0
    %1270 = vmatprep.subr.mxu0 0.0
    %1271 = vmatpush2.msra.mxu0 0.0
    %1272 = vmatprep.subr.mxu0 0.0
    %1273 = vmatpush2.msra.mxu0 0.0
    %1274 = vmatprep.subr.mxu0 0.0
    %1275 = vmatpush2.msra.mxu0 0.0
    %1276 = vmatprep.subr.mxu0 0.0
    %1277 = vmatpush2.msra.mxu0 0.0
    %1278 = vmatprep.subr.mxu0 0.0
    %1279 = vmatpush2.msra.mxu0 0.0
    %1280 = vmatprep.subr.mxu0 0.0
    %1281 = vmatpush2.msra.mxu0 0.0
    %1282 = vmatprep.mubr.f32.mxu0 0.0
    %1283 = vmatmul.mubr.f32.gmra.mxu0 %v1213
    %v1284 = vpop.f32.mrf.mxu0
    %v1285 = vadd.f32 %v1210, %v1284
    %v1286 = vpop.f32.mrf.mxu0
    %1287 = vmatprep.mubr.f32.mxu0 0.0
    %1288 = vmatmul.mubr.f32.gmra.mxu0 %v1216
    %v1289 = vpop.f32.mrf.mxu0
    %v1290 = vadd.f32 %v1210, %v1289
    %v1291 = vpop.f32.mrf.mxu0
    %1292 = vdwg.mxu0
    %1293 = vmatprep.subr.mxu0 0.0
    %1294 = vmatpush1.msra.mxu0 0.0
    %1295 = vmatprep.subr.mxu0 0.0
    %1296 = vmatpush1.msra.mxu0 0.0
    %1297 = vmatprep.subr.mxu0 0.0
    %1298 = vmatpush1.msra.mxu0 0.0
    %1299 = vmatprep.subr.mxu0 0.0
    %1300 = vmatpush1.msra.mxu0 0.0
    %1301 = vmatprep.subr.mxu0 0.0
    %1302 = vmatpush1.msra.mxu0 0.0
    %1303 = vmatprep.subr.mxu0 0.0
    %1304 = vmatpush1.msra.mxu0 0.0
    %1305 = vmatprep.subr.mxu0 0.0
    %1306 = vmatpush1.msra.mxu0 0.0
    %1307 = vmatprep.subr.mxu0 0.0
    %1308 = vmatpush1.msra.mxu0 0.0
    %1309 = vmatprep.subr.mxu0 0.0
    %1310 = vmatpush1.msra.mxu0 0.0
    %1311 = vmatprep.subr.mxu0 0.0
    %1312 = vmatpush1.msra.mxu0 0.0
    %1313 = vmatprep.subr.mxu0 0.0
    %1314 = vmatpush1.msra.mxu0 0.0
    %1315 = vmatprep.subr.mxu0 0.0
    %1316 = vmatpush1.msra.mxu0 0.0
    %1317 = vmatprep.subr.mxu0 0.0
    %1318 = vmatpush1.msra.mxu0 0.0
    %1319 = vmatprep.subr.mxu0 0.0
    %1320 = vmatpush1.msra.mxu0 0.0
    %1321 = vmatprep.subr.mxu0 0.0
    %1322 = vmatpush1.msra.mxu0 %v1290
    %1323 = vmatprep.subr.mxu0 0.0
    %1324 = vmatpush1.msra.mxu0 %v1285
    %1325 = vmatprep.subr.mxu0 0.0
    %1326 = vmatpush2.msra.mxu0 0.0
    %1327 = vmatprep.subr.mxu0 0.0
    %1328 = vmatpush2.msra.mxu0 0.0
    %1329 = vmatprep.subr.mxu0 0.0
    %1330 = vmatpush2.msra.mxu0 0.0
    %1331 = vmatprep.subr.mxu0 0.0
    %1332 = vmatpush2.msra.mxu0 0.0
    %1333 = vmatprep.subr.mxu0 0.0
    %1334 = vmatpush2.msra.mxu0 0.0
    %1335 = vmatprep.subr.mxu0 0.0
    %1336 = vmatpush2.msra.mxu0 0.0
    %1337 = vmatprep.subr.mxu0 0.0
    %1338 = vmatpush2.msra.mxu0 0.0
    %1339 = vmatprep.subr.mxu0 0.0
    %1340 = vmatpush2.msra.mxu0 0.0
    %1341 = vmatprep.subr.mxu0 0.0
    %1342 = vmatpush2.msra.mxu0 0.0
    %1343 = vmatprep.subr.mxu0 0.0
    %1344 = vmatpush2.msra.mxu0 0.0
    %1345 = vmatprep.subr.mxu0 0.0
    %1346 = vmatpush2.msra.mxu0 0.0
    %1347 = vmatprep.subr.mxu0 0.0
    %1348 = vmatpush2.msra.mxu0 0.0
    %1349 = vmatprep.subr.mxu0 0.0
    %1350 = vmatpush2.msra.mxu0 0.0
    %1351 = vmatprep.subr.mxu0 0.0
    %1352 = vmatpush2.msra.mxu0 0.0
    %1353 = vmatprep.subr.mxu0 0.0
    %1354 = vmatpush2.msra.mxu0 0.0
    %1355 = vmatprep.subr.mxu0 0.0
    %1356 = vmatpush2.msra.mxu0 0.0
    %1357 = vmatprep.mubr.f32.mxu0 0.0
    %1358 = vmatmul.mubr.f32.gmra.mxu0 %v658
    %v1359 = vpop.f32.mrf.mxu0
    %v1360 = vadd.f32 0.0, %v1359
    %v1361 = vpop.f32.mrf.mxu0
    %1362 = vmatprep.mubr.f32.mxu0 0.0
    %1363 = vmatmul.mubr.f32.gmra.mxu0 %v661
    %v1364 = vpop.f32.mrf.mxu0
    %v1365 = vadd.f32 0.0, %v1364
    %v1366 = vpop.f32.mrf.mxu0
    %1367 = vmatprep.mubr.f32.mxu0 0.0
    %1368 = vmatmul.mubr.f32.gmra.mxu0 %v664
    %v1369 = vpop.f32.mrf.mxu0
    %v1370 = vadd.f32 0.0, %v1369
    %v1371 = vpop.f32.mrf.mxu0
    %1372 = vmatprep.mubr.f32.mxu0 0.0
    %1373 = vmatmul.mubr.f32.gmra.mxu0 %v667
    %v1374 = vpop.f32.mrf.mxu0
    %v1375 = vadd.f32 0.0, %v1374
    %v1376 = vpop.f32.mrf.mxu0
    %1377 = vdwg.mxu0
    %v1379 = vsel %vm656, %v1360, 0
    %v1382 = vsel %vm656, %v1365, 0
    %v1385 = vsel %vm656, %v1370, 0
    %v1388 = vsel %vm656, %v1375, 0
    %1390 = vmatprep.subr.mxu0 0.0
    %1391 = vmatpush1.msra.mxu0 0.0
    %1392 = vmatprep.subr.mxu0 0.0
    %1393 = vmatpush1.msra.mxu0 0.0
    %1394 = vmatprep.subr.mxu0 0.0
    %1395 = vmatpush1.msra.mxu0 0.0
    %1396 = vmatprep.subr.mxu0 0.0
    %1397 = vmatpush1.msra.mxu0 0.0
    %1398 = vmatprep.subr.mxu0 0.0
    %1399 = vmatpush1.msra.mxu0 0.0
    %1400 = vmatprep.subr.mxu0 0.0
    %1401 = vmatpush1.msra.mxu0 0.0
    %1402 = vmatprep.subr.mxu0 0.0
    %1403 = vmatpush1.msra.mxu0 0.0
    %1404 = vmatprep.subr.mxu0 0.0
    %1405 = vmatpush1.msra.mxu0 0.0
    %1406 = vmatprep.subr.mxu0 0.0
    %1407 = vmatpush1.msra.mxu0 0.0
    %1408 = vmatprep.subr.mxu0 0.0
    %1409 = vmatpush1.msra.mxu0 0.0
    %1410 = vmatprep.subr.mxu0 0.0
    %1411 = vmatpush1.msra.mxu0 0.0
    %1412 = vmatprep.subr.mxu0 0.0
    %1413 = vmatpush1.msra.mxu0 0.0
    %1414 = vmatprep.subr.mxu0 0.0
    %1415 = vmatpush1.msra.mxu0 0.0
    %1416 = vmatprep.subr.mxu0 0.0
    %1417 = vmatpush1.msra.mxu0 0.0
    %1418 = vmatprep.subr.mxu0 %v782
    %1419 = vmatpush1.msra.mxu0 %v781
    %1420 = vmatprep.subr.mxu0 %v780
    %1421 = vmatpush1.msra.mxu0 %v779
    %1422 = vmatprep.subr.mxu0 0.0
    %1423 = vmatpush2.msra.mxu0 0.0
    %1424 = vmatprep.subr.mxu0 0.0
    %1425 = vmatpush2.msra.mxu0 0.0
    %1426 = vmatprep.subr.mxu0 0.0
    %1427 = vmatpush2.msra.mxu0 0.0
    %1428 = vmatprep.subr.mxu0 0.0
    %1429 = vmatpush2.msra.mxu0 0.0
    %1430 = vmatprep.subr.mxu0 0.0
    %1431 = vmatpush2.msra.mxu0 0.0
    %1432 = vmatprep.subr.mxu0 0.0
    %1433 = vmatpush2.msra.mxu0 0.0
    %1434 = vmatprep.subr.mxu0 0.0
    %1435 = vmatpush2.msra.mxu0 0.0
    %1436 = vmatprep.subr.mxu0 0.0
    %1437 = vmatpush2.msra.mxu0 0.0
    %1438 = vmatprep.subr.mxu0 0.0
    %1439 = vmatpush2.msra.mxu0 0.0
    %1440 = vmatprep.subr.mxu0 0.0
    %1441 = vmatpush2.msra.mxu0 0.0
    %1442 = vmatprep.subr.mxu0 0.0
    %1443 = vmatpush2.msra.mxu0 0.0
    %1444 = vmatprep.subr.mxu0 0.0
    %1445 = vmatpush2.msra.mxu0 0.0
    %1446 = vmatprep.subr.mxu0 0.0
    %1447 = vmatpush2.msra.mxu0 0.0
    %1448 = vmatprep.subr.mxu0 0.0
    %1449 = vmatpush2.msra.mxu0 0.0
    %1450 = vmatprep.subr.mxu0 0.0
    %1451 = vmatpush2.msra.mxu0 0.0
    %1452 = vmatprep.subr.mxu0 0.0
    %1453 = vmatpush2.msra.mxu0 0.0
    %1454 = vmatprep.mubr.f32.mxu0 0.0
    %1455 = vmatmul.mubr.f32.gmra.mxu0 %v1379
    %v1456 = vpop.f32.mrf.mxu0
    %v1457 = vadd.f32 0.0, %v1456
    %v1458 = vpop.f32.mrf.mxu0
    %v1459 = vadd.f32 0.0, %v1458
    %1460 = vmatprep.mubr.f32.mxu0 0.0
    %1461 = vmatmul.mubr.f32.gmra.mxu0 %v1382
    %v1462 = vpop.f32.mrf.mxu0
    %v1463 = vadd.f32 0.0, %v1462
    %v1464 = vpop.f32.mrf.mxu0
    %v1465 = vadd.f32 0.0, %v1464
    %1466 = vmatprep.mubr.f32.mxu0 0.0
    %1467 = vmatmul.mubr.f32.gmra.mxu0 %v1385
    %v1468 = vpop.f32.mrf.mxu0
    %v1469 = vadd.f32 0.0, %v1468
    %v1470 = vpop.f32.mrf.mxu0
    %v1471 = vadd.f32 0.0, %v1470
    %1472 = vmatprep.mubr.f32.mxu0 0.0
    %1473 = vmatmul.mubr.f32.gmra.mxu0 %v1388
    %v1474 = vpop.f32.mrf.mxu0
    %v1475 = vadd.f32 0.0, %v1474
    %v1476 = vpop.f32.mrf.mxu0
    %v1477 = vadd.f32 0.0, %v1476
    %1478 = vdwg.mxu0
    %v1479 = vmul.f32 %v1457, %v457
    %v1480 = vmul.f32 %v1459, %v459
    %v1481 = vmul.f32 %v1463, %v463
    %v1482 = vmul.f32 %v1465, %v465
    %v1483 = vmul.f32 %v1469, %v469
    %v1484 = vmul.f32 %v1471, %v471
    %v1485 = vmul.f32 %v1475, %v475
    %v1486 = vmul.f32 %v1477, %v477
    %1487 = vmatprep.subr.mxu0 0.0
    %1488 = vmatpush1.msra.mxu0 %v911
    %1489 = vmatprep.subr.mxu0 0.0
    %1490 = vmatpush1.msra.mxu0 %v910
    %1491 = vmatprep.subr.mxu0 0.0
    %1492 = vmatpush1.msra.mxu0 %v909
    %1493 = vmatprep.subr.mxu0 0.0
    %1494 = vmatpush1.msra.mxu0 %v908
    %1495 = vmatprep.subr.mxu0 0.0
    %1496 = vmatpush1.msra.mxu0 %v907
    %1497 = vmatprep.subr.mxu0 0.0
    %1498 = vmatpush1.msra.mxu0 %v906
    %1499 = vmatprep.subr.mxu0 0.0
    %1500 = vmatpush1.msra.mxu0 %v905
    %1501 = vmatprep.subr.mxu0 0.0
    %1502 = vmatpush1.msra.mxu0 %v904
    %1503 = vmatprep.subr.mxu0 0.0
    %1504 = vmatpush1.msra.mxu0 %v903
    %1505 = vmatprep.subr.mxu0 0.0
    %1506 = vmatpush1.msra.mxu0 %v902
    %1507 = vmatprep.subr.mxu0 0.0
    %1508 = vmatpush1.msra.mxu0 %v901
    %1509 = vmatprep.subr.mxu0 0.0
    %1510 = vmatpush1.msra.mxu0 %v900
    %1511 = vmatprep.subr.mxu0 0.0
    %1512 = vmatpush1.msra.mxu0 %v899
    %1513 = vmatprep.subr.mxu0 0.0
    %1514 = vmatpush1.msra.mxu0 %v898
    %1515 = vmatprep.subr.mxu0 0.0
    %1516 = vmatpush1.msra.mxu0 %v897
    %1517 = vmatprep.subr.mxu0 0.0
    %1518 = vmatpush1.msra.mxu0 %v896
    %1519 = vmatprep.subr.mxu0 0.0
    %1520 = vmatpush2.msra.mxu0 %v927
    %1521 = vmatprep.subr.mxu0 0.0
    %1522 = vmatpush2.msra.mxu0 %v926
    %1523 = vmatprep.subr.mxu0 0.0
    %1524 = vmatpush2.msra.mxu0 %v925
    %1525 = vmatprep.subr.mxu0 0.0
    %1526 = vmatpush2.msra.mxu0 %v924
    %1527 = vmatprep.subr.mxu0 0.0
    %1528 = vmatpush2.msra.mxu0 %v923
    %1529 = vmatprep.subr.mxu0 0.0
    %1530 = vmatpush2.msra.mxu0 %v922
    %1531 = vmatprep.subr.mxu0 0.0
    %1532 = vmatpush2.msra.mxu0 %v921
    %1533 = vmatprep.subr.mxu0 0.0
    %1534 = vmatpush2.msra.mxu0 %v920
    %1535 = vmatprep.subr.mxu0 0.0
    %1536 = vmatpush2.msra.mxu0 %v919
    %1537 = vmatprep.subr.mxu0 0.0
    %1538 = vmatpush2.msra.mxu0 %v918
    %1539 = vmatprep.subr.mxu0 0.0
    %1540 = vmatpush2.msra.mxu0 %v917
    %1541 = vmatprep.subr.mxu0 0.0
    %1542 = vmatpush2.msra.mxu0 %v916
    %1543 = vmatprep.subr.mxu0 0.0
    %1544 = vmatpush2.msra.mxu0 %v915
    %1545 = vmatprep.subr.mxu0 0.0
    %1546 = vmatpush2.msra.mxu0 %v914
    %1547 = vmatprep.subr.mxu0 0.0
    %1548 = vmatpush2.msra.mxu0 %v913
    %1549 = vmatprep.subr.mxu0 0.0
    %1550 = vmatpush2.msra.mxu0 %v912
    %1551 = vmatprep.mubr.f32.mxu0 %v1480
    %1552 = vmatmul.mubr.f32.gmra.mxu0 %v1479
    %v1553 = vpop.f32.mrf.mxu0
    %v1554 = vadd.f32 0.0, %v1553
    %v1555 = vpop.f32.mrf.mxu0
    %1556 = vmatprep.mubr.f32.mxu0 %v1482
    %1557 = vmatmul.mubr.f32.gmra.mxu0 %v1481
    %v1558 = vpop.f32.mrf.mxu0
    %v1559 = vadd.f32 0.0, %v1558
    %v1560 = vpop.f32.mrf.mxu0
    %1561 = vmatprep.mubr.f32.mxu0 %v1484
    %1562 = vmatmul.mubr.f32.gmra.mxu0 %v1483
    %v1563 = vpop.f32.mrf.mxu0
    %v1564 = vadd.f32 0.0, %v1563
    %v1565 = vpop.f32.mrf.mxu0
    %1566 = vmatprep.mubr.f32.mxu0 %v1486
    %1567 = vmatmul.mubr.f32.gmra.mxu0 %v1485
    %v1568 = vpop.f32.mrf.mxu0
    %v1569 = vadd.f32 0.0, %v1568
    %v1570 = vpop.f32.mrf.mxu0
    %1571 = vdwg.mxu0
    %1572 = vmatprep.subr.mxu0 0.0
    %1573 = vmatpush1.msra.mxu0 0.0
    %1574 = vmatprep.subr.mxu0 0.0
    %1575 = vmatpush1.msra.mxu0 0.0
    %1576 = vmatprep.subr.mxu0 0.0
    %1577 = vmatpush1.msra.mxu0 0.0
    %1578 = vmatprep.subr.mxu0 0.0
    %1579 = vmatpush1.msra.mxu0 0.0
    %1580 = vmatprep.subr.mxu0 0.0
    %1581 = vmatpush1.msra.mxu0 0.0
    %1582 = vmatprep.subr.mxu0 0.0
    %1583 = vmatpush1.msra.mxu0 0.0
    %1584 = vmatprep.subr.mxu0 0.0
    %1585 = vmatpush1.msra.mxu0 0.0
    %1586 = vmatprep.subr.mxu0 0.0
    %1587 = vmatpush1.msra.mxu0 0.0
    %1588 = vmatprep.subr.mxu0 0.0
    %1589 = vmatpush1.msra.mxu0 0.0
    %1590 = vmatprep.subr.mxu0 0.0
    %1591 = vmatpush1.msra.mxu0 0.0
    %1592 = vmatprep.subr.mxu0 0.0
    %1593 = vmatpush1.msra.mxu0 0.0
    %1594 = vmatprep.subr.mxu0 0.0
    %1595 = vmatpush1.msra.mxu0 0.0
    %1596 = vmatprep.subr.mxu0 0.0
    %1597 = vmatpush1.msra.mxu0 %v1569
    %1598 = vmatprep.subr.mxu0 0.0
    %1599 = vmatpush1.msra.mxu0 %v1564
    %1600 = vmatprep.subr.mxu0 0.0
    %1601 = vmatpush1.msra.mxu0 %v1559
    %1602 = vmatprep.subr.mxu0 0.0
    %1603 = vmatpush1.msra.mxu0 %v1554
    %1604 = vmatprep.subr.mxu0 0.0
    %1605 = vmatpush2.msra.mxu0 0.0
    %1606 = vmatprep.subr.mxu0 0.0
    %1607 = vmatpush2.msra.mxu0 0.0
    %1608 = vmatprep.subr.mxu0 0.0
    %1609 = vmatpush2.msra.mxu0 0.0
    %1610 = vmatprep.subr.mxu0 0.0
    %1611 = vmatpush2.msra.mxu0 0.0
    %1612 = vmatprep.subr.mxu0 0.0
    %1613 = vmatpush2.msra.mxu0 0.0
    %1614 = vmatprep.subr.mxu0 0.0
    %1615 = vmatpush2.msra.mxu0 0.0
    %1616 = vmatprep.subr.mxu0 0.0
    %1617 = vmatpush2.msra.mxu0 0.0
    %1618 = vmatprep.subr.mxu0 0.0
    %1619 = vmatpush2.msra.mxu0 0.0
    %1620 = vmatprep.subr.mxu0 0.0
    %1621 = vmatpush2.msra.mxu0 0.0
    %1622 = vmatprep.subr.mxu0 0.0
    %1623 = vmatpush2.msra.mxu0 0.0
    %1624 = vmatprep.subr.mxu0 0.0
    %1625 = vmatpush2.msra.mxu0 0.0
    %1626 = vmatprep.subr.mxu0 0.0
    %1627 = vmatpush2.msra.mxu0 0.0
    %1628 = vmatprep.subr.mxu0 0.0
    %1629 = vmatpush2.msra.mxu0 0.0
    %1630 = vmatprep.subr.mxu0 0.0
    %1631 = vmatpush2.msra.mxu0 0.0
    %1632 = vmatprep.subr.mxu0 0.0
    %1633 = vmatpush2.msra.mxu0 0.0
    %1634 = vmatprep.subr.mxu0 0.0
    %1635 = vmatpush2.msra.mxu0 0.0
    %1636 = vmatprep.mubr.f32.mxu0 0.0
    %1637 = vmatmul.mubr.f32.gmra.mxu0 %v1015
    %v1638 = vpop.f32.mrf.mxu0
    %v1639 = vadd.f32 0.0, %v1638
    %v1640 = vpop.f32.mrf.mxu0
    %1641 = vmatprep.mubr.f32.mxu0 0.0
    %1642 = vmatmul.mubr.f32.gmra.mxu0 %v1018
    %v1643 = vpop.f32.mrf.mxu0
    %v1644 = vadd.f32 0.0, %v1643
    %v1645 = vpop.f32.mrf.mxu0
    %1646 = vdwg.mxu0
    %v1647 = vmul.f32 %v1639, %v1098
    %v1648 = vmul.f32 %v1644, %v1103
    %1649 = vrot.lane.b32.xlu0 %v1107, 96
    %v1650 = vpop.permute.xlu0 %1649
    %1651 = vrot.lane.b32.xlu0 %v1108, 96
    %v1652 = vpop.permute.xlu0 %1651
    %v1656 = vsel %vm656, %v1285, 0
    %v1659 = vsel %vm656, %v1290, 0
    %1661 = vmatprep.subr.mxu0 0.0
    %1662 = vmatpush1.msra.mxu0 0.0
    %1663 = vmatprep.subr.mxu0 0.0
    %1664 = vmatpush1.msra.mxu0 0.0
    %1665 = vmatprep.subr.mxu0 0.0
    %1666 = vmatpush1.msra.mxu0 0.0
    %1667 = vmatprep.subr.mxu0 0.0
    %1668 = vmatpush1.msra.mxu0 0.0
    %1669 = vmatprep.subr.mxu0 0.0
    %1670 = vmatpush1.msra.mxu0 0.0
    %1671 = vmatprep.subr.mxu0 0.0
    %1672 = vmatpush1.msra.mxu0 0.0
    %1673 = vmatprep.subr.mxu0 0.0
    %1674 = vmatpush1.msra.mxu0 0.0
    %1675 = vmatprep.subr.mxu0 0.0
    %1676 = vmatpush1.msra.mxu0 0.0
    %1677 = vmatprep.subr.mxu0 0.0
    %1678 = vmatpush1.msra.mxu0 0.0
    %1679 = vmatprep.subr.mxu0 0.0
    %1680 = vmatpush1.msra.mxu0 0.0
    %1681 = vmatprep.subr.mxu0 0.0
    %1682 = vmatpush1.msra.mxu0 0.0
    %1683 = vmatprep.subr.mxu0 0.0
    %1684 = vmatpush1.msra.mxu0 0.0
    %1685 = vmatprep.subr.mxu0 0.0
    %1686 = vmatpush1.msra.mxu0 0.0
    %1687 = vmatprep.subr.mxu0 0.0
    %1688 = vmatpush1.msra.mxu0 0.0
    %1689 = vmatprep.subr.mxu0 0.0
    %1690 = vmatpush1.msra.mxu0 %v1652
    %1691 = vmatprep.subr.mxu0 0.0
    %1692 = vmatpush1.msra.mxu0 %v1650
    %1693 = vmatprep.subr.mxu0 0.0
    %1694 = vmatpush2.msra.mxu0 0.0
    %1695 = vmatprep.subr.mxu0 0.0
    %1696 = vmatpush2.msra.mxu0 0.0
    %1697 = vmatprep.subr.mxu0 0.0
    %1698 = vmatpush2.msra.mxu0 0.0
    %1699 = vmatprep.subr.mxu0 0.0
    %1700 = vmatpush2.msra.mxu0 0.0
    %1701 = vmatprep.subr.mxu0 0.0
    %1702 = vmatpush2.msra.mxu0 0.0
    %1703 = vmatprep.subr.mxu0 0.0
    %1704 = vmatpush2.msra.mxu0 0.0
    %1705 = vmatprep.subr.mxu0 0.0
    %1706 = vmatpush2.msra.mxu0 0.0
    %1707 = vmatprep.subr.mxu0 0.0
    %1708 = vmatpush2.msra.mxu0 0.0
    %1709 = vmatprep.subr.mxu0 0.0
    %1710 = vmatpush2.msra.mxu0 0.0
    %1711 = vmatprep.subr.mxu0 0.0
    %1712 = vmatpush2.msra.mxu0 0.0
    %1713 = vmatprep.subr.mxu0 0.0
    %1714 = vmatpush2.msra.mxu0 0.0
    %1715 = vmatprep.subr.mxu0 0.0
    %1716 = vmatpush2.msra.mxu0 0.0
    %1717 = vmatprep.subr.mxu0 0.0
    %1718 = vmatpush2.msra.mxu0 0.0
    %1719 = vmatprep.subr.mxu0 0.0
    %1720 = vmatpush2.msra.mxu0 0.0
    %1721 = vmatprep.subr.mxu0 0.0
    %1722 = vmatpush2.msra.mxu0 0.0
    %1723 = vmatprep.subr.mxu0 0.0
    %1724 = vmatpush2.msra.mxu0 0.0
    %1725 = vmatprep.mubr.f32.mxu0 0.0
    %1726 = vmatmul.mubr.f32.gmra.mxu0 %v1656
    %v1727 = vpop.f32.mrf.mxu0
    %v1728 = vadd.f32 0.0, %v1727
    %v1729 = vpop.f32.mrf.mxu0
    %1730 = vmatprep.mubr.f32.mxu0 0.0
    %1731 = vmatmul.mubr.f32.gmra.mxu0 %v1659
    %v1732 = vpop.f32.mrf.mxu0
    %v1733 = vadd.f32 0.0, %v1732
    %v1734 = vpop.f32.mrf.mxu0
    %1735 = vdwg.mxu0
    %v1736 = vadd.f32 %v1647, %v1728
    %v1737 = vadd.f32 %v1648, %v1733
    %1738 = vrot.lane.b32.xlu0 %v570, 80
    %v1739 = vpop.permute.xlu0 %1738
    %v1741 = vadd.f32 %v1736, %v1739
    %v1742 = vadd.f32 %v1737, %v1739
    %v1743 = vmax.f32 %v1741, 0.0
    %v1744 = vmax.f32 %v1742, 0.0
    %v1745 = vadd.f32 %v1743, %v1285
    %v1746 = vadd.f32 %v1744, %v1290
    %1747 = vrot.lane.b32.xlu0 %v1107, 80
    %v1748 = vpop.permute.xlu0 %1747
    %1749 = vrot.lane.b32.xlu0 %v1108, 80
    %v1750 = vpop.permute.xlu0 %1749
    %1753 = vrot.lane.b32.xlu0 %v570, 64
    %v1754 = vpop.permute.xlu0 %1753
    %v1757 = vsel %vm656, %v1745, 0
    %v1760 = vsel %vm656, %v1746, 0
    %1762 = vmatprep.subr.mxu0 0.0
    %1763 = vmatpush1.msra.mxu0 0.0
    %1764 = vmatprep.subr.mxu0 0.0
    %1765 = vmatpush1.msra.mxu0 0.0
    %1766 = vmatprep.subr.mxu0 0.0
    %1767 = vmatpush1.msra.mxu0 0.0
    %1768 = vmatprep.subr.mxu0 0.0
    %1769 = vmatpush1.msra.mxu0 0.0
    %1770 = vmatprep.subr.mxu0 0.0
    %1771 = vmatpush1.msra.mxu0 0.0
    %1772 = vmatprep.subr.mxu0 0.0
    %1773 = vmatpush1.msra.mxu0 0.0
    %1774 = vmatprep.subr.mxu0 0.0
    %1775 = vmatpush1.msra.mxu0 0.0
    %1776 = vmatprep.subr.mxu0 0.0
    %1777 = vmatpush1.msra.mxu0 0.0
    %1778 = vmatprep.subr.mxu0 0.0
    %1779 = vmatpush1.msra.mxu0 0.0
    %1780 = vmatprep.subr.mxu0 0.0
    %1781 = vmatpush1.msra.mxu0 0.0
    %1782 = vmatprep.subr.mxu0 0.0
    %1783 = vmatpush1.msra.mxu0 0.0
    %1784 = vmatprep.subr.mxu0 0.0
    %1785 = vmatpush1.msra.mxu0 0.0
    %1786 = vmatprep.subr.mxu0 0.0
    %1787 = vmatpush1.msra.mxu0 0.0
    %1788 = vmatprep.subr.mxu0 0.0
    %1789 = vmatpush1.msra.mxu0 0.0
    %1790 = vmatprep.subr.mxu0 0.0
    %1791 = vmatpush1.msra.mxu0 %v1750
    %1792 = vmatprep.subr.mxu0 0.0
    %1793 = vmatpush1.msra.mxu0 %v1748
    %1794 = vmatprep.subr.mxu0 0.0
    %1795 = vmatpush2.msra.mxu0 0.0
    %1796 = vmatprep.subr.mxu0 0.0
    %1797 = vmatpush2.msra.mxu0 0.0
    %1798 = vmatprep.subr.mxu0 0.0
    %1799 = vmatpush2.msra.mxu0 0.0
    %1800 = vmatprep.subr.mxu0 0.0
    %1801 = vmatpush2.msra.mxu0 0.0
    %1802 = vmatprep.subr.mxu0 0.0
    %1803 = vmatpush2.msra.mxu0 0.0
    %1804 = vmatprep.subr.mxu0 0.0
    %1805 = vmatpush2.msra.mxu0 0.0
    %1806 = vmatprep.subr.mxu0 0.0
    %1807 = vmatpush2.msra.mxu0 0.0
    %1808 = vmatprep.subr.mxu0 0.0
    %1809 = vmatpush2.msra.mxu0 0.0
    %1810 = vmatprep.subr.mxu0 0.0
    %1811 = vmatpush2.msra.mxu0 0.0
    %1812 = vmatprep.subr.mxu0 0.0
    %1813 = vmatpush2.msra.mxu0 0.0
    %1814 = vmatprep.subr.mxu0 0.0
    %1815 = vmatpush2.msra.mxu0 0.0
    %1816 = vmatprep.subr.mxu0 0.0
    %1817 = vmatpush2.msra.mxu0 0.0
    %1818 = vmatprep.subr.mxu0 0.0
    %1819 = vmatpush2.msra.mxu0 0.0
    %1820 = vmatprep.subr.mxu0 0.0
    %1821 = vmatpush2.msra.mxu0 0.0
    %1822 = vmatprep.subr.mxu0 0.0
    %1823 = vmatpush2.msra.mxu0 0.0
    %1824 = vmatprep.subr.mxu0 0.0
    %1825 = vmatpush2.msra.mxu0 0.0
    %1826 = vmatprep.mubr.f32.mxu0 0.0
    %1827 = vmatmul.mubr.f32.gmra.mxu0 %v1757
    %v1828 = vpop.f32.mrf.mxu0
    %v1829 = vadd.f32 %v1754, %v1828
    %v1830 = vpop.f32.mrf.mxu0
    %1831 = vmatprep.mubr.f32.mxu0 0.0
    %1832 = vmatmul.mubr.f32.gmra.mxu0 %v1760
    %v1833 = vpop.f32.mrf.mxu0
    %v1834 = vadd.f32 %v1754, %v1833
    %v1835 = vpop.f32.mrf.mxu0
    %1836 = vdwg.mxu0
    %1837 = vmatprep.subr.mxu0 0.0
    %1838 = vmatpush1.msra.mxu0 0.0
    %1839 = vmatprep.subr.mxu0 0.0
    %1840 = vmatpush1.msra.mxu0 0.0
    %1841 = vmatprep.subr.mxu0 0.0
    %1842 = vmatpush1.msra.mxu0 0.0
    %1843 = vmatprep.subr.mxu0 0.0
    %1844 = vmatpush1.msra.mxu0 0.0
    %1845 = vmatprep.subr.mxu0 0.0
    %1846 = vmatpush1.msra.mxu0 0.0
    %1847 = vmatprep.subr.mxu0 0.0
    %1848 = vmatpush1.msra.mxu0 0.0
    %1849 = vmatprep.subr.mxu0 0.0
    %1850 = vmatpush1.msra.mxu0 0.0
    %1851 = vmatprep.subr.mxu0 0.0
    %1852 = vmatpush1.msra.mxu0 0.0
    %1853 = vmatprep.subr.mxu0 0.0
    %1854 = vmatpush1.msra.mxu0 0.0
    %1855 = vmatprep.subr.mxu0 0.0
    %1856 = vmatpush1.msra.mxu0 0.0
    %1857 = vmatprep.subr.mxu0 0.0
    %1858 = vmatpush1.msra.mxu0 0.0
    %1859 = vmatprep.subr.mxu0 0.0
    %1860 = vmatpush1.msra.mxu0 0.0
    %1861 = vmatprep.subr.mxu0 0.0
    %1862 = vmatpush1.msra.mxu0 0.0
    %1863 = vmatprep.subr.mxu0 0.0
    %1864 = vmatpush1.msra.mxu0 0.0
    %1865 = vmatprep.subr.mxu0 0.0
    %1866 = vmatpush1.msra.mxu0 %v1834
    %1867 = vmatprep.subr.mxu0 0.0
    %1868 = vmatpush1.msra.mxu0 %v1829
    %1869 = vmatprep.subr.mxu0 0.0
    %1870 = vmatpush2.msra.mxu0 0.0
    %1871 = vmatprep.subr.mxu0 0.0
    %1872 = vmatpush2.msra.mxu0 0.0
    %1873 = vmatprep.subr.mxu0 0.0
    %1874 = vmatpush2.msra.mxu0 0.0
    %1875 = vmatprep.subr.mxu0 0.0
    %1876 = vmatpush2.msra.mxu0 0.0
    %1877 = vmatprep.subr.mxu0 0.0
    %1878 = vmatpush2.msra.mxu0 0.0
    %1879 = vmatprep.subr.mxu0 0.0
    %1880 = vmatpush2.msra.mxu0 0.0
    %1881 = vmatprep.subr.mxu0 0.0
    %1882 = vmatpush2.msra.mxu0 0.0
    %1883 = vmatprep.subr.mxu0 0.0
    %1884 = vmatpush2.msra.mxu0 0.0
    %1885 = vmatprep.subr.mxu0 0.0
    %1886 = vmatpush2.msra.mxu0 0.0
    %1887 = vmatprep.subr.mxu0 0.0
    %1888 = vmatpush2.msra.mxu0 0.0
    %1889 = vmatprep.subr.mxu0 0.0
    %1890 = vmatpush2.msra.mxu0 0.0
    %1891 = vmatprep.subr.mxu0 0.0
    %1892 = vmatpush2.msra.mxu0 0.0
    %1893 = vmatprep.subr.mxu0 0.0
    %1894 = vmatpush2.msra.mxu0 0.0
    %1895 = vmatprep.subr.mxu0 0.0
    %1896 = vmatpush2.msra.mxu0 0.0
    %1897 = vmatprep.subr.mxu0 0.0
    %1898 = vmatpush2.msra.mxu0 0.0
    %1899 = vmatprep.subr.mxu0 0.0
    %1900 = vmatpush2.msra.mxu0 0.0
    %1901 = vmatprep.mubr.f32.mxu0 0.0
    %1902 = vmatmul.mubr.f32.gmra.mxu0 %v658
    %v1903 = vpop.f32.mrf.mxu0
    %v1904 = vadd.f32 0.0, %v1903
    %v1905 = vpop.f32.mrf.mxu0
    %1906 = vmatprep.mubr.f32.mxu0 0.0
    %1907 = vmatmul.mubr.f32.gmra.mxu0 %v661
    %v1908 = vpop.f32.mrf.mxu0
    %v1909 = vadd.f32 0.0, %v1908
    %v1910 = vpop.f32.mrf.mxu0
    %1911 = vmatprep.mubr.f32.mxu0 0.0
    %1912 = vmatmul.mubr.f32.gmra.mxu0 %v664
    %v1913 = vpop.f32.mrf.mxu0
    %v1914 = vadd.f32 0.0, %v1913
    %v1915 = vpop.f32.mrf.mxu0
    %1916 = vmatprep.mubr.f32.mxu0 0.0
    %1917 = vmatmul.mubr.f32.gmra.mxu0 %v667
    %v1918 = vpop.f32.mrf.mxu0
    %v1919 = vadd.f32 0.0, %v1918
    %v1920 = vpop.f32.mrf.mxu0
    %1921 = vdwg.mxu0
    %v1922 = vld [vmem:[%s7] sm:$0xff]
    %1924 = vrot.lane.b32.xlu0 %v1922, 88
    %v1925 = vpop.permute.xlu0 %1924
    %vm1927 = vcmask 64512
    %v1929 = vsel %vm1927, %v1904, 0
    %v1932 = vsel %vm1927, %v1909, 0
    %v1935 = vsel %vm1927, %v1914, 0
    %v1938 = vsel %vm1927, %v1919, 0
    %1940 = vmatprep.subr.mxu0 0.0
    %1941 = vmatpush1.msra.mxu0 0.0
    %1942 = vmatprep.subr.mxu0 0.0
    %1943 = vmatpush1.msra.mxu0 0.0
    %1944 = vmatprep.subr.mxu0 0.0
    %1945 = vmatpush1.msra.mxu0 0.0
    %1946 = vmatprep.subr.mxu0 0.0
    %1947 = vmatpush1.msra.mxu0 0.0
    %1948 = vmatprep.subr.mxu0 0.0
    %1949 = vmatpush1.msra.mxu0 0.0
    %1950 = vmatprep.subr.mxu0 0.0
    %1951 = vmatpush1.msra.mxu0 0.0
    %1952 = vmatprep.subr.mxu0 0.0
    %1953 = vmatpush1.msra.mxu0 0.0
    %1954 = vmatprep.subr.mxu0 0.0
    %1955 = vmatpush1.msra.mxu0 0.0
    %1956 = vmatprep.subr.mxu0 0.0
    %1957 = vmatpush1.msra.mxu0 0.0
    %1958 = vmatprep.subr.mxu0 0.0
    %1959 = vmatpush1.msra.mxu0 0.0
    %1960 = vmatprep.subr.mxu0 0.0
    %1961 = vmatpush1.msra.mxu0 0.0
    %1962 = vmatprep.subr.mxu0 0.0
    %1963 = vmatpush1.msra.mxu0 0.0
    %1964 = vmatprep.subr.mxu0 0.0
    %1965 = vmatpush1.msra.mxu0 0.0
    %1966 = vmatprep.subr.mxu0 0.0
    %1967 = vmatpush1.msra.mxu0 0.0
    %1968 = vmatprep.subr.mxu0 0.0
    %1969 = vmatpush1.msra.mxu0 0.0
    %1970 = vmatprep.subr.mxu0 0.0
    %1971 = vmatpush1.msra.mxu0 %v1925
    %1972 = vmatprep.subr.mxu0 0.0
    %1973 = vmatpush2.msra.mxu0 0.0
    %1974 = vmatprep.subr.mxu0 0.0
    %1975 = vmatpush2.msra.mxu0 0.0
    %1976 = vmatprep.subr.mxu0 0.0
    %1977 = vmatpush2.msra.mxu0 0.0
    %1978 = vmatprep.subr.mxu0 0.0
    %1979 = vmatpush2.msra.mxu0 0.0
    %1980 = vmatprep.subr.mxu0 0.0
    %1981 = vmatpush2.msra.mxu0 0.0
    %1982 = vmatprep.subr.mxu0 0.0
    %1983 = vmatpush2.msra.mxu0 0.0
    %1984 = vmatprep.subr.mxu0 0.0
    %1985 = vmatpush2.msra.mxu0 0.0
    %1986 = vmatprep.subr.mxu0 0.0
    %1987 = vmatpush2.msra.mxu0 0.0
    %1988 = vmatprep.subr.mxu0 0.0
    %1989 = vmatpush2.msra.mxu0 0.0
    %1990 = vmatprep.subr.mxu0 0.0
    %1991 = vmatpush2.msra.mxu0 0.0
    %1992 = vmatprep.subr.mxu0 0.0
    %1993 = vmatpush2.msra.mxu0 0.0
    %1994 = vmatprep.subr.mxu0 0.0
    %1995 = vmatpush2.msra.mxu0 0.0
    %1996 = vmatprep.subr.mxu0 0.0
    %1997 = vmatpush2.msra.mxu0 0.0
    %1998 = vmatprep.subr.mxu0 0.0
    %1999 = vmatpush2.msra.mxu0 0.0
    %2000 = vmatprep.subr.mxu0 0.0
    %2001 = vmatpush2.msra.mxu0 0.0
    %2002 = vmatprep.subr.mxu0 0.0
    %2003 = vmatpush2.msra.mxu0 0.0
    %2004 = vmatprep.mubr.f32.mxu0 0.0
    %2005 = vmatmul.mubr.f32.gmra.mxu0 %v1929
    %v2006 = vpop.f32.mrf.mxu0
    %v2007 = vadd.f32 0.0, %v2006
    %v2008 = vpop.f32.mrf.mxu0
    %2009 = vmatprep.mubr.f32.mxu0 0.0
    %2010 = vmatmul.mubr.f32.gmra.mxu0 %v1932
    %v2011 = vpop.f32.mrf.mxu0
    %v2012 = vadd.f32 0.0, %v2011
    %v2013 = vpop.f32.mrf.mxu0
    %2014 = vmatprep.mubr.f32.mxu0 0.0
    %2015 = vmatmul.mubr.f32.gmra.mxu0 %v1935
    %v2016 = vpop.f32.mrf.mxu0
    %v2017 = vadd.f32 0.0, %v2016
    %v2018 = vpop.f32.mrf.mxu0
    %2019 = vmatprep.mubr.f32.mxu0 0.0
    %2020 = vmatmul.mubr.f32.gmra.mxu0 %v1938
    %v2021 = vpop.f32.mrf.mxu0
    %v2022 = vadd.f32 0.0, %v2021
    %v2023 = vpop.f32.mrf.mxu0
    %2024 = vdwg.mxu0
    %v2025 = vmul.f32 %v2007, %v546
    %v2026 = vmul.f32 %v2012, %v551
    %v2027 = vmul.f32 %v2017, %v556
    %v2028 = vmul.f32 %v2022, %v561
    %v2029 = vld [vmem:[%s9] sm:$0xff]
    %v2030 = vld [vmem:[%s9 + $0x8] sm:$0xff]
    %v2031 = vld [vmem:[%s9 + $0x10] sm:$0xff]
    %v2032 = vld [vmem:[%s9 + $0x18] sm:$0xff]
    %v2033 = vld [vmem:[%s9 + $0x20] sm:$0xff]
    %v2034 = vld [vmem:[%s9 + $0x28] sm:$0xff]
    %v2035 = vld [vmem:[%s9 + $0x30] sm:$0xff]
    %v2036 = vld [vmem:[%s9 + $0x38] sm:$0xff]
    %vm2037 = vcmask 523264
    %v2039 = vsel %vm2037, %v2025, 0
    %v2042 = vsel %vm2037, %v2026, 0
    %v2045 = vsel %vm2037, %v2027, 0
    %v2048 = vsel %vm2037, %v2028, 0
    %2050 = vmatprep.subr.mxu0 0.0
    %2051 = vmatpush1.msra.mxu0 0.0
    %2052 = vmatprep.subr.mxu0 0.0
    %2053 = vmatpush1.msra.mxu0 0.0
    %2054 = vmatprep.subr.mxu0 0.0
    %2055 = vmatpush1.msra.mxu0 0.0
    %2056 = vmatprep.subr.mxu0 0.0
    %2057 = vmatpush1.msra.mxu0 0.0
    %2058 = vmatprep.subr.mxu0 0.0
    %2059 = vmatpush1.msra.mxu0 0.0
    %2060 = vmatprep.subr.mxu0 0.0
    %2061 = vmatpush1.msra.mxu0 0.0
    %2062 = vmatprep.subr.mxu0 0.0
    %2063 = vmatpush1.msra.mxu0 0.0
    %2064 = vmatprep.subr.mxu0 0.0
    %2065 = vmatpush1.msra.mxu0 0.0
    %2066 = vmatprep.subr.mxu0 0.0
    %2067 = vmatpush1.msra.mxu0 %v2036
    %2068 = vmatprep.subr.mxu0 0.0
    %2069 = vmatpush1.msra.mxu0 %v2035
    %2070 = vmatprep.subr.mxu0 0.0
    %2071 = vmatpush1.msra.mxu0 %v2034
    %2072 = vmatprep.subr.mxu0 0.0
    %2073 = vmatpush1.msra.mxu0 %v2033
    %2074 = vmatprep.subr.mxu0 0.0
    %2075 = vmatpush1.msra.mxu0 %v2032
    %2076 = vmatprep.subr.mxu0 0.0
    %2077 = vmatpush1.msra.mxu0 %v2031
    %2078 = vmatprep.subr.mxu0 0.0
    %2079 = vmatpush1.msra.mxu0 %v2030
    %2080 = vmatprep.subr.mxu0 0.0
    %2081 = vmatpush1.msra.mxu0 %v2029
    %2082 = vmatprep.subr.mxu0 0.0
    %2083 = vmatpush2.msra.mxu0 0.0
    %2084 = vmatprep.subr.mxu0 0.0
    %2085 = vmatpush2.msra.mxu0 0.0
    %2086 = vmatprep.subr.mxu0 0.0
    %2087 = vmatpush2.msra.mxu0 0.0
    %2088 = vmatprep.subr.mxu0 0.0
    %2089 = vmatpush2.msra.mxu0 0.0
    %2090 = vmatprep.subr.mxu0 0.0
    %2091 = vmatpush2.msra.mxu0 0.0
    %2092 = vmatprep.subr.mxu0 0.0
    %2093 = vmatpush2.msra.mxu0 0.0
    %2094 = vmatprep.subr.mxu0 0.0
    %2095 = vmatpush2.msra.mxu0 0.0
    %2096 = vmatprep.subr.mxu0 0.0
    %2097 = vmatpush2.msra.mxu0 0.0
    %2098 = vmatprep.subr.mxu0 0.0
    %2099 = vmatpush2.msra.mxu0 0.0
    %2100 = vmatprep.subr.mxu0 0.0
    %2101 = vmatpush2.msra.mxu0 0.0
    %2102 = vmatprep.subr.mxu0 0.0
    %2103 = vmatpush2.msra.mxu0 0.0
    %2104 = vmatprep.subr.mxu0 0.0
    %2105 = vmatpush2.msra.mxu0 0.0
    %2106 = vmatprep.subr.mxu0 0.0
    %2107 = vmatpush2.msra.mxu0 0.0
    %2108 = vmatprep.subr.mxu0 0.0
    %2109 = vmatpush2.msra.mxu0 0.0
    %2110 = vmatprep.subr.mxu0 0.0
    %2111 = vmatpush2.msra.mxu0 0.0
    %2112 = vmatprep.subr.mxu0 0.0
    %2113 = vmatpush2.msra.mxu0 0.0
    %2114 = vmatprep.mubr.f32.mxu0 0.0
    %2115 = vmatmul.mubr.f32.gmra.mxu0 %v2039
    %v2116 = vpop.f32.mrf.mxu0
    %v2117 = vadd.f32 0.0, %v2116
    %v2118 = vpop.f32.mrf.mxu0
    %2119 = vmatprep.mubr.f32.mxu0 0.0
    %2120 = vmatmul.mubr.f32.gmra.mxu0 %v2042
    %v2121 = vpop.f32.mrf.mxu0
    %v2122 = vadd.f32 0.0, %v2121
    %v2123 = vpop.f32.mrf.mxu0
    %2124 = vmatprep.mubr.f32.mxu0 0.0
    %2125 = vmatmul.mubr.f32.gmra.mxu0 %v2045
    %v2126 = vpop.f32.mrf.mxu0
    %v2127 = vadd.f32 0.0, %v2126
    %v2128 = vpop.f32.mrf.mxu0
    %2129 = vmatprep.mubr.f32.mxu0 0.0
    %2130 = vmatmul.mubr.f32.gmra.mxu0 %v2048
    %v2131 = vpop.f32.mrf.mxu0
    %v2132 = vadd.f32 0.0, %v2131
    %v2133 = vpop.f32.mrf.mxu0
    %2134 = vdwg.mxu0
    %2135 = vmatprep.subr.mxu0 0.0
    %2136 = vmatpush1.msra.mxu0 0.0
    %2137 = vmatprep.subr.mxu0 0.0
    %2138 = vmatpush1.msra.mxu0 0.0
    %2139 = vmatprep.subr.mxu0 0.0
    %2140 = vmatpush1.msra.mxu0 0.0
    %2141 = vmatprep.subr.mxu0 0.0
    %2142 = vmatpush1.msra.mxu0 0.0
    %2143 = vmatprep.subr.mxu0 0.0
    %2144 = vmatpush1.msra.mxu0 0.0
    %2145 = vmatprep.subr.mxu0 0.0
    %2146 = vmatpush1.msra.mxu0 0.0
    %2147 = vmatprep.subr.mxu0 0.0
    %2148 = vmatpush1.msra.mxu0 0.0
    %2149 = vmatprep.subr.mxu0 0.0
    %2150 = vmatpush1.msra.mxu0 0.0
    %2151 = vmatprep.subr.mxu0 0.0
    %2152 = vmatpush1.msra.mxu0 0.0
    %2153 = vmatprep.subr.mxu0 0.0
    %2154 = vmatpush1.msra.mxu0 0.0
    %2155 = vmatprep.subr.mxu0 0.0
    %2156 = vmatpush1.msra.mxu0 0.0
    %2157 = vmatprep.subr.mxu0 0.0
    %2158 = vmatpush1.msra.mxu0 0.0
    %2159 = vmatprep.subr.mxu0 0.0
    %2160 = vmatpush1.msra.mxu0 %v2132
    %2161 = vmatprep.subr.mxu0 0.0
    %2162 = vmatpush1.msra.mxu0 %v2127
    %2163 = vmatprep.subr.mxu0 0.0
    %2164 = vmatpush1.msra.mxu0 %v2122
    %2165 = vmatprep.subr.mxu0 0.0
    %2166 = vmatpush1.msra.mxu0 %v2117
    %2167 = vmatprep.subr.mxu0 0.0
    %2168 = vmatpush2.msra.mxu0 0.0
    %2169 = vmatprep.subr.mxu0 0.0
    %2170 = vmatpush2.msra.mxu0 0.0
    %2171 = vmatprep.subr.mxu0 0.0
    %2172 = vmatpush2.msra.mxu0 0.0
    %2173 = vmatprep.subr.mxu0 0.0
    %2174 = vmatpush2.msra.mxu0 0.0
    %2175 = vmatprep.subr.mxu0 0.0
    %2176 = vmatpush2.msra.mxu0 0.0
    %2177 = vmatprep.subr.mxu0 0.0
    %2178 = vmatpush2.msra.mxu0 0.0
    %2179 = vmatprep.subr.mxu0 0.0
    %2180 = vmatpush2.msra.mxu0 0.0
    %2181 = vmatprep.subr.mxu0 0.0
    %2182 = vmatpush2.msra.mxu0 0.0
    %2183 = vmatprep.subr.mxu0 0.0
    %2184 = vmatpush2.msra.mxu0 0.0
    %2185 = vmatprep.subr.mxu0 0.0
    %2186 = vmatpush2.msra.mxu0 0.0
    %2187 = vmatprep.subr.mxu0 0.0
    %2188 = vmatpush2.msra.mxu0 0.0
    %2189 = vmatprep.subr.mxu0 0.0
    %2190 = vmatpush2.msra.mxu0 0.0
    %2191 = vmatprep.subr.mxu0 0.0
    %2192 = vmatpush2.msra.mxu0 0.0
    %2193 = vmatprep.subr.mxu0 0.0
    %2194 = vmatpush2.msra.mxu0 0.0
    %2195 = vmatprep.subr.mxu0 0.0
    %2196 = vmatpush2.msra.mxu0 0.0
    %2197 = vmatprep.subr.mxu0 0.0
    %2198 = vmatpush2.msra.mxu0 0.0
    %2199 = vmatprep.mubr.f32.mxu0 0.0
    %2200 = vmatmul.mubr.f32.gmra.mxu0 %v1015
    %v2201 = vpop.f32.mrf.mxu0
    %v2202 = vadd.f32 0.0, %v2201
    %v2203 = vpop.f32.mrf.mxu0
    %2204 = vmatprep.mubr.f32.mxu0 0.0
    %2205 = vmatmul.mubr.f32.gmra.mxu0 %v1018
    %v2206 = vpop.f32.mrf.mxu0
    %v2207 = vadd.f32 0.0, %v2206
    %v2208 = vpop.f32.mrf.mxu0
    %2209 = vdwg.mxu0
    %v2210 = vmul.f32 %v2202, %v1098
    %v2211 = vmul.f32 %v2207, %v1103
    %v2213 = vsel %vm1927, %v1829, 0
    %v2216 = vsel %vm1927, %v1834, 0
    %2218 = vmatprep.subr.mxu0 0.0
    %2219 = vmatpush1.msra.mxu0 0.0
    %2220 = vmatprep.subr.mxu0 0.0
    %2221 = vmatpush1.msra.mxu0 0.0
    %2222 = vmatprep.subr.mxu0 0.0
    %2223 = vmatpush1.msra.mxu0 0.0
    %2224 = vmatprep.subr.mxu0 0.0
    %2225 = vmatpush1.msra.mxu0 0.0
    %2226 = vmatprep.subr.mxu0 0.0
    %2227 = vmatpush1.msra.mxu0 0.0
    %2228 = vmatprep.subr.mxu0 0.0
    %2229 = vmatpush1.msra.mxu0 0.0
    %2230 = vmatprep.subr.mxu0 0.0
    %2231 = vmatpush1.msra.mxu0 0.0
    %2232 = vmatprep.subr.mxu0 0.0
    %2233 = vmatpush1.msra.mxu0 0.0
    %2234 = vmatprep.subr.mxu0 0.0
    %2235 = vmatpush1.msra.mxu0 0.0
    %2236 = vmatprep.subr.mxu0 0.0
    %2237 = vmatpush1.msra.mxu0 0.0
    %2238 = vmatprep.subr.mxu0 0.0
    %2239 = vmatpush1.msra.mxu0 0.0
    %2240 = vmatprep.subr.mxu0 0.0
    %2241 = vmatpush1.msra.mxu0 0.0
    %2242 = vmatprep.subr.mxu0 0.0
    %2243 = vmatpush1.msra.mxu0 0.0
    %2244 = vmatprep.subr.mxu0 0.0
    %2245 = vmatpush1.msra.mxu0 0.0
    %2246 = vmatprep.subr.mxu0 0.0
    %2247 = vmatpush1.msra.mxu0 0.0
    %2248 = vmatprep.subr.mxu0 0.0
    %2249 = vmatpush1.msra.mxu0 %v1922
    %2250 = vmatprep.subr.mxu0 0.0
    %2251 = vmatpush2.msra.mxu0 0.0
    %2252 = vmatprep.subr.mxu0 0.0
    %2253 = vmatpush2.msra.mxu0 0.0
    %2254 = vmatprep.subr.mxu0 0.0
    %2255 = vmatpush2.msra.mxu0 0.0
    %2256 = vmatprep.subr.mxu0 0.0
    %2257 = vmatpush2.msra.mxu0 0.0
    %2258 = vmatprep.subr.mxu0 0.0
    %2259 = vmatpush2.msra.mxu0 0.0
    %2260 = vmatprep.subr.mxu0 0.0
    %2261 = vmatpush2.msra.mxu0 0.0
    %2262 = vmatprep.subr.mxu0 0.0
    %2263 = vmatpush2.msra.mxu0 0.0
    %2264 = vmatprep.subr.mxu0 0.0
    %2265 = vmatpush2.msra.mxu0 0.0
    %2266 = vmatprep.subr.mxu0 0.0
    %2267 = vmatpush2.msra.mxu0 0.0
    %2268 = vmatprep.subr.mxu0 0.0
    %2269 = vmatpush2.msra.mxu0 0.0
    %2270 = vmatprep.subr.mxu0 0.0
    %2271 = vmatpush2.msra.mxu0 0.0
    %2272 = vmatprep.subr.mxu0 0.0
    %2273 = vmatpush2.msra.mxu0 0.0
    %2274 = vmatprep.subr.mxu0 0.0
    %2275 = vmatpush2.msra.mxu0 0.0
    %2276 = vmatprep.subr.mxu0 0.0
    %2277 = vmatpush2.msra.mxu0 0.0
    %2278 = vmatprep.subr.mxu0 0.0
    %2279 = vmatpush2.msra.mxu0 0.0
    %2280 = vmatprep.subr.mxu0 0.0
    %2281 = vmatpush2.msra.mxu0 0.0
    %2282 = vmatprep.mubr.f32.mxu0 0.0
    %2283 = vmatmul.mubr.f32.gmra.mxu0 %v2213
    %v2284 = vpop.f32.mrf.mxu0
    %v2285 = vadd.f32 0.0, %v2284
    %v2286 = vpop.f32.mrf.mxu0
    %2287 = vmatprep.mubr.f32.mxu0 0.0
    %2288 = vmatmul.mubr.f32.gmra.mxu0 %v2216
    %v2289 = vpop.f32.mrf.mxu0
    %v2290 = vadd.f32 0.0, %v2289
    %v2291 = vpop.f32.mrf.mxu0
    %2292 = vdwg.mxu0
    %v2293 = vadd.f32 %v2210, %v2285
    %v2294 = vadd.f32 %v2211, %v2290
    %2295 = vrot.lane.b32.xlu0 %v570, 56
    %v2296 = vpop.permute.xlu0 %2295
    %v2298 = vadd.f32 %v2293, %v2296
    %v2299 = vadd.f32 %v2294, %v2296
    %v2300 = vmax.f32 %v2298, 0.0
    %v2301 = vmax.f32 %v2299, 0.0
    %v2302 = vadd.f32 %v2300, %v1829
    %v2303 = vadd.f32 %v2301, %v1834
    %2304 = vrot.lane.b32.xlu0 %v1922, 120
    %v2305 = vpop.permute.xlu0 %2304
    %2307 = vrot.lane.b32.xlu0 %v570, 48
    %v2308 = vpop.permute.xlu0 %2307
    %v2311 = vsel %vm1927, %v2302, 0
    %v2314 = vsel %vm1927, %v2303, 0
    %2316 = vmatprep.subr.mxu0 0.0
    %2317 = vmatpush1.msra.mxu0 0.0
    %2318 = vmatprep.subr.mxu0 0.0
    %2319 = vmatpush1.msra.mxu0 0.0
    %2320 = vmatprep.subr.mxu0 0.0
    %2321 = vmatpush1.msra.mxu0 0.0
    %2322 = vmatprep.subr.mxu0 0.0
    %2323 = vmatpush1.msra.mxu0 0.0
    %2324 = vmatprep.subr.mxu0 0.0
    %2325 = vmatpush1.msra.mxu0 0.0
    %2326 = vmatprep.subr.mxu0 0.0
    %2327 = vmatpush1.msra.mxu0 0.0
    %2328 = vmatprep.subr.mxu0 0.0
    %2329 = vmatpush1.msra.mxu0 0.0
    %2330 = vmatprep.subr.mxu0 0.0
    %2331 = vmatpush1.msra.mxu0 0.0
    %2332 = vmatprep.subr.mxu0 0.0
    %2333 = vmatpush1.msra.mxu0 0.0
    %2334 = vmatprep.subr.mxu0 0.0
    %2335 = vmatpush1.msra.mxu0 0.0
    %2336 = vmatprep.subr.mxu0 0.0
    %2337 = vmatpush1.msra.mxu0 0.0
    %2338 = vmatprep.subr.mxu0 0.0
    %2339 = vmatpush1.msra.mxu0 0.0
    %2340 = vmatprep.subr.mxu0 0.0
    %2341 = vmatpush1.msra.mxu0 0.0
    %2342 = vmatprep.subr.mxu0 0.0
    %2343 = vmatpush1.msra.mxu0 0.0
    %2344 = vmatprep.subr.mxu0 0.0
    %2345 = vmatpush1.msra.mxu0 0.0
    %2346 = vmatprep.subr.mxu0 0.0
    %2347 = vmatpush1.msra.mxu0 %v2305
    %2348 = vmatprep.subr.mxu0 0.0
    %2349 = vmatpush2.msra.mxu0 0.0
    %2350 = vmatprep.subr.mxu0 0.0
    %2351 = vmatpush2.msra.mxu0 0.0
    %2352 = vmatprep.subr.mxu0 0.0
    %2353 = vmatpush2.msra.mxu0 0.0
    %2354 = vmatprep.subr.mxu0 0.0
    %2355 = vmatpush2.msra.mxu0 0.0
    %2356 = vmatprep.subr.mxu0 0.0
    %2357 = vmatpush2.msra.mxu0 0.0
    %2358 = vmatprep.subr.mxu0 0.0
    %2359 = vmatpush2.msra.mxu0 0.0
    %2360 = vmatprep.subr.mxu0 0.0
    %2361 = vmatpush2.msra.mxu0 0.0
    %2362 = vmatprep.subr.mxu0 0.0
    %2363 = vmatpush2.msra.mxu0 0.0
    %2364 = vmatprep.subr.mxu0 0.0
    %2365 = vmatpush2.msra.mxu0 0.0
    %2366 = vmatprep.subr.mxu0 0.0
    %2367 = vmatpush2.msra.mxu0 0.0
    %2368 = vmatprep.subr.mxu0 0.0
    %2369 = vmatpush2.msra.mxu0 0.0
    %2370 = vmatprep.subr.mxu0 0.0
    %2371 = vmatpush2.msra.mxu0 0.0
    %2372 = vmatprep.subr.mxu0 0.0
    %2373 = vmatpush2.msra.mxu0 0.0
    %2374 = vmatprep.subr.mxu0 0.0
    %2375 = vmatpush2.msra.mxu0 0.0
    %2376 = vmatprep.subr.mxu0 0.0
    %2377 = vmatpush2.msra.mxu0 0.0
    %2378 = vmatprep.subr.mxu0 0.0
    %2379 = vmatpush2.msra.mxu0 0.0
    %2380 = vmatprep.mubr.f32.mxu0 0.0
    %2381 = vmatmul.mubr.f32.gmra.mxu0 %v2311
    %v2382 = vpop.f32.mrf.mxu0
    %v2383 = vadd.f32 %v2308, %v2382
    %v2384 = vpop.f32.mrf.mxu0
    %2385 = vmatprep.mubr.f32.mxu0 0.0
    %2386 = vmatmul.mubr.f32.gmra.mxu0 %v2314
    %v2387 = vpop.f32.mrf.mxu0
    %v2388 = vadd.f32 %v2308, %v2387
    %v2389 = vpop.f32.mrf.mxu0
    %2390 = vdwg.mxu0
    %2391 = vmatprep.subr.mxu0 0.0
    %2392 = vmatpush1.msra.mxu0 0.0
    %2393 = vmatprep.subr.mxu0 0.0
    %2394 = vmatpush1.msra.mxu0 0.0
    %2395 = vmatprep.subr.mxu0 0.0
    %2396 = vmatpush1.msra.mxu0 0.0
    %2397 = vmatprep.subr.mxu0 0.0
    %2398 = vmatpush1.msra.mxu0 0.0
    %2399 = vmatprep.subr.mxu0 0.0
    %2400 = vmatpush1.msra.mxu0 0.0
    %2401 = vmatprep.subr.mxu0 0.0
    %2402 = vmatpush1.msra.mxu0 0.0
    %2403 = vmatprep.subr.mxu0 0.0
    %2404 = vmatpush1.msra.mxu0 0.0
    %2405 = vmatprep.subr.mxu0 0.0
    %2406 = vmatpush1.msra.mxu0 0.0
    %2407 = vmatprep.subr.mxu0 0.0
    %2408 = vmatpush1.msra.mxu0 0.0
    %2409 = vmatprep.subr.mxu0 0.0
    %2410 = vmatpush1.msra.mxu0 0.0
    %2411 = vmatprep.subr.mxu0 0.0
    %2412 = vmatpush1.msra.mxu0 0.0
    %2413 = vmatprep.subr.mxu0 0.0
    %2414 = vmatpush1.msra.mxu0 0.0
    %2415 = vmatprep.subr.mxu0 0.0
    %2416 = vmatpush1.msra.mxu0 0.0
    %2417 = vmatprep.subr.mxu0 0.0
    %2418 = vmatpush1.msra.mxu0 0.0
    %2419 = vmatprep.subr.mxu0 0.0
    %2420 = vmatpush1.msra.mxu0 %v2388
    %2421 = vmatprep.subr.mxu0 0.0
    %2422 = vmatpush1.msra.mxu0 %v2383
    %2423 = vmatprep.subr.mxu0 0.0
    %2424 = vmatpush2.msra.mxu0 0.0
    %2425 = vmatprep.subr.mxu0 0.0
    %2426 = vmatpush2.msra.mxu0 0.0
    %2427 = vmatprep.subr.mxu0 0.0
    %2428 = vmatpush2.msra.mxu0 0.0
    %2429 = vmatprep.subr.mxu0 0.0
    %2430 = vmatpush2.msra.mxu0 0.0
    %2431 = vmatprep.subr.mxu0 0.0
    %2432 = vmatpush2.msra.mxu0 0.0
    %2433 = vmatprep.subr.mxu0 0.0
    %2434 = vmatpush2.msra.mxu0 0.0
    %2435 = vmatprep.subr.mxu0 0.0
    %2436 = vmatpush2.msra.mxu0 0.0
    %2437 = vmatprep.subr.mxu0 0.0
    %2438 = vmatpush2.msra.mxu0 0.0
    %2439 = vmatprep.subr.mxu0 0.0
    %2440 = vmatpush2.msra.mxu0 0.0
    %2441 = vmatprep.subr.mxu0 0.0
    %2442 = vmatpush2.msra.mxu0 0.0
    %2443 = vmatprep.subr.mxu0 0.0
    %2444 = vmatpush2.msra.mxu0 0.0
    %2445 = vmatprep.subr.mxu0 0.0
    %2446 = vmatpush2.msra.mxu0 0.0
    %2447 = vmatprep.subr.mxu0 0.0
    %2448 = vmatpush2.msra.mxu0 0.0
    %2449 = vmatprep.subr.mxu0 0.0
    %2450 = vmatpush2.msra.mxu0 0.0
    %2451 = vmatprep.subr.mxu0 0.0
    %2452 = vmatpush2.msra.mxu0 0.0
    %2453 = vmatprep.subr.mxu0 0.0
    %2454 = vmatpush2.msra.mxu0 0.0
    %2455 = vmatprep.mubr.f32.mxu0 0.0
    %2456 = vmatmul.mubr.f32.gmra.mxu0 %v658
    %v2457 = vpop.f32.mrf.mxu0
    %v2458 = vadd.f32 0.0, %v2457
    %v2459 = vpop.f32.mrf.mxu0
    %2460 = vmatprep.mubr.f32.mxu0 0.0
    %2461 = vmatmul.mubr.f32.gmra.mxu0 %v661
    %v2462 = vpop.f32.mrf.mxu0
    %v2463 = vadd.f32 0.0, %v2462
    %v2464 = vpop.f32.mrf.mxu0
    %2465 = vmatprep.mubr.f32.mxu0 0.0
    %2466 = vmatmul.mubr.f32.gmra.mxu0 %v664
    %v2467 = vpop.f32.mrf.mxu0
    %v2468 = vadd.f32 0.0, %v2467
    %v2469 = vpop.f32.mrf.mxu0
    %2470 = vmatprep.mubr.f32.mxu0 0.0
    %2471 = vmatmul.mubr.f32.gmra.mxu0 %v667
    %v2472 = vpop.f32.mrf.mxu0
    %v2473 = vadd.f32 0.0, %v2472
    %v2474 = vpop.f32.mrf.mxu0
    %2475 = vdwg.mxu0
    %v2477 = vsel %vm1927, %v2458, 0
    %v2480 = vsel %vm1927, %v2463, 0
    %v2483 = vsel %vm1927, %v2468, 0
    %v2486 = vsel %vm1927, %v2473, 0
    %2488 = vmatprep.subr.mxu0 0.0
    %2489 = vmatpush1.msra.mxu0 0.0
    %2490 = vmatprep.subr.mxu0 0.0
    %2491 = vmatpush1.msra.mxu0 0.0
    %2492 = vmatprep.subr.mxu0 0.0
    %2493 = vmatpush1.msra.mxu0 0.0
    %2494 = vmatprep.subr.mxu0 0.0
    %2495 = vmatpush1.msra.mxu0 0.0
    %2496 = vmatprep.subr.mxu0 0.0
    %2497 = vmatpush1.msra.mxu0 0.0
    %2498 = vmatprep.subr.mxu0 0.0
    %2499 = vmatpush1.msra.mxu0 0.0
    %2500 = vmatprep.subr.mxu0 0.0
    %2501 = vmatpush1.msra.mxu0 0.0
    %2502 = vmatprep.subr.mxu0 0.0
    %2503 = vmatpush1.msra.mxu0 0.0
    %2504 = vmatprep.subr.mxu0 0.0
    %2505 = vmatpush1.msra.mxu0 0.0
    %2506 = vmatprep.subr.mxu0 0.0
    %2507 = vmatpush1.msra.mxu0 0.0
    %2508 = vmatprep.subr.mxu0 0.0
    %2509 = vmatpush1.msra.mxu0 0.0
    %2510 = vmatprep.subr.mxu0 0.0
    %2511 = vmatpush1.msra.mxu0 0.0
    %2512 = vmatprep.subr.mxu0 0.0
    %2513 = vmatpush1.msra.mxu0 0.0
    %2514 = vmatprep.subr.mxu0 0.0
    %2515 = vmatpush1.msra.mxu0 0.0
    %2516 = vmatprep.subr.mxu0 0.0
    %2517 = vmatpush1.msra.mxu0 0.0
    %2518 = vmatprep.subr.mxu0 0.0
    %2519 = vmatpush1.msra.mxu0 %v1925
    %2520 = vmatprep.subr.mxu0 0.0
    %2521 = vmatpush2.msra.mxu0 0.0
    %2522 = vmatprep.subr.mxu0 0.0
    %2523 = vmatpush2.msra.mxu0 0.0
    %2524 = vmatprep.subr.mxu0 0.0
    %2525 = vmatpush2.msra.mxu0 0.0
    %2526 = vmatprep.subr.mxu0 0.0
    %2527 = vmatpush2.msra.mxu0 0.0
    %2528 = vmatprep.subr.mxu0 0.0
    %2529 = vmatpush2.msra.mxu0 0.0
    %2530 = vmatprep.subr.mxu0 0.0
    %2531 = vmatpush2.msra.mxu0 0.0
    %2532 = vmatprep.subr.mxu0 0.0
    %2533 = vmatpush2.msra.mxu0 0.0
    %2534 = vmatprep.subr.mxu0 0.0
    %2535 = vmatpush2.msra.mxu0 0.0
    %2536 = vmatprep.subr.mxu0 0.0
    %2537 = vmatpush2.msra.mxu0 0.0
    %2538 = vmatprep.subr.mxu0 0.0
    %2539 = vmatpush2.msra.mxu0 0.0
    %2540 = vmatprep.subr.mxu0 0.0
    %2541 = vmatpush2.msra.mxu0 0.0
    %2542 = vmatprep.subr.mxu0 0.0
    %2543 = vmatpush2.msra.mxu0 0.0
    %2544 = vmatprep.subr.mxu0 0.0
    %2545 = vmatpush2.msra.mxu0 0.0
    %2546 = vmatprep.subr.mxu0 0.0
    %2547 = vmatpush2.msra.mxu0 0.0
    %2548 = vmatprep.subr.mxu0 0.0
    %2549 = vmatpush2.msra.mxu0 0.0
    %2550 = vmatprep.subr.mxu0 0.0
    %2551 = vmatpush2.msra.mxu0 0.0
    %2552 = vmatprep.mubr.f32.mxu0 0.0
    %2553 = vmatmul.mubr.f32.gmra.mxu0 %v2477
    %v2554 = vpop.f32.mrf.mxu0
    %v2555 = vadd.f32 0.0, %v2554
    %v2556 = vpop.f32.mrf.mxu0
    %2557 = vmatprep.mubr.f32.mxu0 0.0
    %2558 = vmatmul.mubr.f32.gmra.mxu0 %v2480
    %v2559 = vpop.f32.mrf.mxu0
    %v2560 = vadd.f32 0.0, %v2559
    %v2561 = vpop.f32.mrf.mxu0
    %2562 = vmatprep.mubr.f32.mxu0 0.0
    %2563 = vmatmul.mubr.f32.gmra.mxu0 %v2483
    %v2564 = vpop.f32.mrf.mxu0
    %v2565 = vadd.f32 0.0, %v2564
    %v2566 = vpop.f32.mrf.mxu0
    %2567 = vmatprep.mubr.f32.mxu0 0.0
    %2568 = vmatmul.mubr.f32.gmra.mxu0 %v2486
    %v2569 = vpop.f32.mrf.mxu0
    %v2570 = vadd.f32 0.0, %v2569
    %v2571 = vpop.f32.mrf.mxu0
    %2572 = vdwg.mxu0
    %2577 = vrot.lane.b32.xlu0 %v546, 64
    %v2578 = vpop.permute.xlu0 %2577
    %2579 = vrot.lane.b32.xlu0 %v551, 64
    %v2580 = vpop.permute.xlu0 %2579
    %2581 = vrot.lane.b32.xlu0 %v556, 64
    %v2582 = vpop.permute.xlu0 %2581
    %2583 = vrot.lane.b32.xlu0 %v561, 64
    %v2584 = vpop.permute.xlu0 %2583
    %v2589 = vmul.f32 %v2555, %v2578
    %v2590 = vmul.f32 %v2560, %v2580
    %v2591 = vmul.f32 %v2565, %v2582
    %v2592 = vmul.f32 %v2570, %v2584
    %v2594 = vsel %vm2037, %v2589, 0
    %v2597 = vsel %vm2037, %v2590, 0
    %v2600 = vsel %vm2037, %v2591, 0
    %v2603 = vsel %vm2037, %v2592, 0
    %2605 = vmatprep.subr.mxu0 0.0
    %2606 = vmatpush1.msra.mxu0 0.0
    %2607 = vmatprep.subr.mxu0 0.0
    %2608 = vmatpush1.msra.mxu0 0.0
    %2609 = vmatprep.subr.mxu0 0.0
    %2610 = vmatpush1.msra.mxu0 0.0
    %2611 = vmatprep.subr.mxu0 0.0
    %2612 = vmatpush1.msra.mxu0 0.0
    %2613 = vmatprep.subr.mxu0 0.0
    %2614 = vmatpush1.msra.mxu0 0.0
    %2615 = vmatprep.subr.mxu0 0.0
    %2616 = vmatpush1.msra.mxu0 0.0
    %2617 = vmatprep.subr.mxu0 0.0
    %2618 = vmatpush1.msra.mxu0 0.0
    %2619 = vmatprep.subr.mxu0 0.0
    %2620 = vmatpush1.msra.mxu0 0.0
    %2621 = vmatprep.subr.mxu0 0.0
    %2622 = vmatpush1.msra.mxu0 %v2036
    %2623 = vmatprep.subr.mxu0 0.0
    %2624 = vmatpush1.msra.mxu0 %v2035
    %2625 = vmatprep.subr.mxu0 0.0
    %2626 = vmatpush1.msra.mxu0 %v2034
    %2627 = vmatprep.subr.mxu0 0.0
    %2628 = vmatpush1.msra.mxu0 %v2033
    %2629 = vmatprep.subr.mxu0 0.0
    %2630 = vmatpush1.msra.mxu0 %v2032
    %2631 = vmatprep.subr.mxu0 0.0
    %2632 = vmatpush1.msra.mxu0 %v2031
    %2633 = vmatprep.subr.mxu0 0.0
    %2634 = vmatpush1.msra.mxu0 %v2030
    %2635 = vmatprep.subr.mxu0 0.0
    %2636 = vmatpush1.msra.mxu0 %v2029
    %2637 = vmatprep.subr.mxu0 0.0
    %2638 = vmatpush2.msra.mxu0 0.0
    %2639 = vmatprep.subr.mxu0 0.0
    %2640 = vmatpush2.msra.mxu0 0.0
    %2641 = vmatprep.subr.mxu0 0.0
    %2642 = vmatpush2.msra.mxu0 0.0
    %2643 = vmatprep.subr.mxu0 0.0
    %2644 = vmatpush2.msra.mxu0 0.0
    %2645 = vmatprep.subr.mxu0 0.0
    %2646 = vmatpush2.msra.mxu0 0.0
    %2647 = vmatprep.subr.mxu0 0.0
    %2648 = vmatpush2.msra.mxu0 0.0
    %2649 = vmatprep.subr.mxu0 0.0
    %2650 = vmatpush2.msra.mxu0 0.0
    %2651 = vmatprep.subr.mxu0 0.0
    %2652 = vmatpush2.msra.mxu0 0.0
    %2653 = vmatprep.subr.mxu0 0.0
    %2654 = vmatpush2.msra.mxu0 0.0
    %2655 = vmatprep.subr.mxu0 0.0
    %2656 = vmatpush2.msra.mxu0 0.0
    %2657 = vmatprep.subr.mxu0 0.0
    %2658 = vmatpush2.msra.mxu0 0.0
    %2659 = vmatprep.subr.mxu0 0.0
    %2660 = vmatpush2.msra.mxu0 0.0
    %2661 = vmatprep.subr.mxu0 0.0
    %2662 = vmatpush2.msra.mxu0 0.0
    %2663 = vmatprep.subr.mxu0 0.0
    %2664 = vmatpush2.msra.mxu0 0.0
    %2665 = vmatprep.subr.mxu0 0.0
    %2666 = vmatpush2.msra.mxu0 0.0
    %2667 = vmatprep.subr.mxu0 0.0
    %2668 = vmatpush2.msra.mxu0 0.0
    %2669 = vmatprep.mubr.f32.mxu0 0.0
    %2670 = vmatmul.mubr.f32.gmra.mxu0 %v2594
    %v2671 = vpop.f32.mrf.mxu0
    %v2672 = vadd.f32 0.0, %v2671
    %v2673 = vpop.f32.mrf.mxu0
    %2674 = vmatprep.mubr.f32.mxu0 0.0
    %2675 = vmatmul.mubr.f32.gmra.mxu0 %v2597
    %v2676 = vpop.f32.mrf.mxu0
    %v2677 = vadd.f32 0.0, %v2676
    %v2678 = vpop.f32.mrf.mxu0
    %2679 = vmatprep.mubr.f32.mxu0 0.0
    %2680 = vmatmul.mubr.f32.gmra.mxu0 %v2600
    %v2681 = vpop.f32.mrf.mxu0
    %v2682 = vadd.f32 0.0, %v2681
    %v2683 = vpop.f32.mrf.mxu0
    %2684 = vmatprep.mubr.f32.mxu0 0.0
    %2685 = vmatmul.mubr.f32.gmra.mxu0 %v2603
    %v2686 = vpop.f32.mrf.mxu0
    %v2687 = vadd.f32 0.0, %v2686
    %v2688 = vpop.f32.mrf.mxu0
    %2689 = vdwg.mxu0
    %2690 = vmatprep.subr.mxu0 0.0
    %2691 = vmatpush1.msra.mxu0 0.0
    %2692 = vmatprep.subr.mxu0 0.0
    %2693 = vmatpush1.msra.mxu0 0.0
    %2694 = vmatprep.subr.mxu0 0.0
    %2695 = vmatpush1.msra.mxu0 0.0
    %2696 = vmatprep.subr.mxu0 0.0
    %2697 = vmatpush1.msra.mxu0 0.0
    %2698 = vmatprep.subr.mxu0 0.0
    %2699 = vmatpush1.msra.mxu0 0.0
    %2700 = vmatprep.subr.mxu0 0.0
    %2701 = vmatpush1.msra.mxu0 0.0
    %2702 = vmatprep.subr.mxu0 0.0
    %2703 = vmatpush1.msra.mxu0 0.0
    %2704 = vmatprep.subr.mxu0 0.0
    %2705 = vmatpush1.msra.mxu0 0.0
    %2706 = vmatprep.subr.mxu0 0.0
    %2707 = vmatpush1.msra.mxu0 0.0
    %2708 = vmatprep.subr.mxu0 0.0
    %2709 = vmatpush1.msra.mxu0 0.0
    %2710 = vmatprep.subr.mxu0 0.0
    %2711 = vmatpush1.msra.mxu0 0.0
    %2712 = vmatprep.subr.mxu0 0.0
    %2713 = vmatpush1.msra.mxu0 0.0
    %2714 = vmatprep.subr.mxu0 0.0
    %2715 = vmatpush1.msra.mxu0 %v2687
    %2716 = vmatprep.subr.mxu0 0.0
    %2717 = vmatpush1.msra.mxu0 %v2682
    %2718 = vmatprep.subr.mxu0 0.0
    %2719 = vmatpush1.msra.mxu0 %v2677
    %2720 = vmatprep.subr.mxu0 0.0
    %2721 = vmatpush1.msra.mxu0 %v2672
    %2722 = vmatprep.subr.mxu0 0.0
    %2723 = vmatpush2.msra.mxu0 0.0
    %2724 = vmatprep.subr.mxu0 0.0
    %2725 = vmatpush2.msra.mxu0 0.0
    %2726 = vmatprep.subr.mxu0 0.0
    %2727 = vmatpush2.msra.mxu0 0.0
    %2728 = vmatprep.subr.mxu0 0.0
    %2729 = vmatpush2.msra.mxu0 0.0
    %2730 = vmatprep.subr.mxu0 0.0
    %2731 = vmatpush2.msra.mxu0 0.0
    %2732 = vmatprep.subr.mxu0 0.0
    %2733 = vmatpush2.msra.mxu0 0.0
    %2734 = vmatprep.subr.mxu0 0.0
    %2735 = vmatpush2.msra.mxu0 0.0
    %2736 = vmatprep.subr.mxu0 0.0
    %2737 = vmatpush2.msra.mxu0 0.0
    %2738 = vmatprep.subr.mxu0 0.0
    %2739 = vmatpush2.msra.mxu0 0.0
    %2740 = vmatprep.subr.mxu0 0.0
    %2741 = vmatpush2.msra.mxu0 0.0
    %2742 = vmatprep.subr.mxu0 0.0
    %2743 = vmatpush2.msra.mxu0 0.0
    %2744 = vmatprep.subr.mxu0 0.0
    %2745 = vmatpush2.msra.mxu0 0.0
    %2746 = vmatprep.subr.mxu0 0.0
    %2747 = vmatpush2.msra.mxu0 0.0
    %2748 = vmatprep.subr.mxu0 0.0
    %2749 = vmatpush2.msra.mxu0 0.0
    %2750 = vmatprep.subr.mxu0 0.0
    %2751 = vmatpush2.msra.mxu0 0.0
    %2752 = vmatprep.subr.mxu0 0.0
    %2753 = vmatpush2.msra.mxu0 0.0
    %2754 = vmatprep.mubr.f32.mxu0 0.0
    %2755 = vmatmul.mubr.f32.gmra.mxu0 %v1015
    %v2756 = vpop.f32.mrf.mxu0
    %v2757 = vadd.f32 0.0, %v2756
    %v2758 = vpop.f32.mrf.mxu0
    %2759 = vmatprep.mubr.f32.mxu0 0.0
    %2760 = vmatmul.mubr.f32.gmra.mxu0 %v1018
    %v2761 = vpop.f32.mrf.mxu0
    %v2762 = vadd.f32 0.0, %v2761
    %v2763 = vpop.f32.mrf.mxu0
    %2764 = vdwg.mxu0
    %v2765 = vmul.f32 %v2757, %v1098
    %v2766 = vmul.f32 %v2762, %v1103
    %2767 = vrot.lane.b32.xlu0 %v1922, 112
    %v2768 = vpop.permute.xlu0 %2767
    %v2771 = vsel %vm1927, %v2383, 0
    %v2774 = vsel %vm1927, %v2388, 0
    %2776 = vmatprep.subr.mxu0 0.0
    %2777 = vmatpush1.msra.mxu0 0.0
    %2778 = vmatprep.subr.mxu0 0.0
    %2779 = vmatpush1.msra.mxu0 0.0
    %2780 = vmatprep.subr.mxu0 0.0
    %2781 = vmatpush1.msra.mxu0 0.0
    %2782 = vmatprep.subr.mxu0 0.0
    %2783 = vmatpush1.msra.mxu0 0.0
    %2784 = vmatprep.subr.mxu0 0.0
    %2785 = vmatpush1.msra.mxu0 0.0
    %2786 = vmatprep.subr.mxu0 0.0
    %2787 = vmatpush1.msra.mxu0 0.0
    %2788 = vmatprep.subr.mxu0 0.0
    %2789 = vmatpush1.msra.mxu0 0.0
    %2790 = vmatprep.subr.mxu0 0.0
    %2791 = vmatpush1.msra.mxu0 0.0
    %2792 = vmatprep.subr.mxu0 0.0
    %2793 = vmatpush1.msra.mxu0 0.0
    %2794 = vmatprep.subr.mxu0 0.0
    %2795 = vmatpush1.msra.mxu0 0.0
    %2796 = vmatprep.subr.mxu0 0.0
    %2797 = vmatpush1.msra.mxu0 0.0
    %2798 = vmatprep.subr.mxu0 0.0
    %2799 = vmatpush1.msra.mxu0 0.0
    %2800 = vmatprep.subr.mxu0 0.0
    %2801 = vmatpush1.msra.mxu0 0.0
    %2802 = vmatprep.subr.mxu0 0.0
    %2803 = vmatpush1.msra.mxu0 0.0
    %2804 = vmatprep.subr.mxu0 0.0
    %2805 = vmatpush1.msra.mxu0 0.0
    %2806 = vmatprep.subr.mxu0 0.0
    %2807 = vmatpush1.msra.mxu0 %v2768
    %2808 = vmatprep.subr.mxu0 0.0
    %2809 = vmatpush2.msra.mxu0 0.0
    %2810 = vmatprep.subr.mxu0 0.0
    %2811 = vmatpush2.msra.mxu0 0.0
    %2812 = vmatprep.subr.mxu0 0.0
    %2813 = vmatpush2.msra.mxu0 0.0
    %2814 = vmatprep.subr.mxu0 0.0
    %2815 = vmatpush2.msra.mxu0 0.0
    %2816 = vmatprep.subr.mxu0 0.0
    %2817 = vmatpush2.msra.mxu0 0.0
    %2818 = vmatprep.subr.mxu0 0.0
    %2819 = vmatpush2.msra.mxu0 0.0
    %2820 = vmatprep.subr.mxu0 0.0
    %2821 = vmatpush2.msra.mxu0 0.0
    %2822 = vmatprep.subr.mxu0 0.0
    %2823 = vmatpush2.msra.mxu0 0.0
    %2824 = vmatprep.subr.mxu0 0.0
    %2825 = vmatpush2.msra.mxu0 0.0
    %2826 = vmatprep.subr.mxu0 0.0
    %2827 = vmatpush2.msra.mxu0 0.0
    %2828 = vmatprep.subr.mxu0 0.0
    %2829 = vmatpush2.msra.mxu0 0.0
    %2830 = vmatprep.subr.mxu0 0.0
    %2831 = vmatpush2.msra.mxu0 0.0
    %2832 = vmatprep.subr.mxu0 0.0
    %2833 = vmatpush2.msra.mxu0 0.0
    %2834 = vmatprep.subr.mxu0 0.0
    %2835 = vmatpush2.msra.mxu0 0.0
    %2836 = vmatprep.subr.mxu0 0.0
    %2837 = vmatpush2.msra.mxu0 0.0
    %2838 = vmatprep.subr.mxu0 0.0
    %2839 = vmatpush2.msra.mxu0 0.0
    %2840 = vmatprep.mubr.f32.mxu0 0.0
    %2841 = vmatmul.mubr.f32.gmra.mxu0 %v2771
    %v2842 = vpop.f32.mrf.mxu0
    %v2843 = vadd.f32 0.0, %v2842
    %v2844 = vpop.f32.mrf.mxu0
    %2845 = vmatprep.mubr.f32.mxu0 0.0
    %2846 = vmatmul.mubr.f32.gmra.mxu0 %v2774
    %v2847 = vpop.f32.mrf.mxu0
    %v2848 = vadd.f32 0.0, %v2847
    %v2849 = vpop.f32.mrf.mxu0
    %2850 = vdwg.mxu0
    %v2851 = vadd.f32 %v2765, %v2843
    %v2852 = vadd.f32 %v2766, %v2848
    %2853 = vrot.lane.b32.xlu0 %v570, 40
    %v2854 = vpop.permute.xlu0 %2853
    %v2856 = vadd.f32 %v2851, %v2854
    %v2857 = vadd.f32 %v2852, %v2854
    %v2858 = vmax.f32 %v2856, 0.0
    %v2859 = vmax.f32 %v2857, 0.0
    %v2860 = vadd.f32 %v2858, %v2383
    %v2861 = vadd.f32 %v2859, %v2388
    %v2863 = vsel %vm656, %v74, 0
    %v2866 = vsel %vm656, %v75, 0
    %v2869 = vsel %vm656, %v76, 0
    %v2872 = vsel %vm656, %v77, 0
    %2874 = vmatprep.subr.mxu0 0.0
    %2875 = vmatpush1.msra.mxu0 0.0
    %2876 = vmatprep.subr.mxu0 0.0
    %2877 = vmatpush1.msra.mxu0 0.0
    %2878 = vmatprep.subr.mxu0 0.0
    %2879 = vmatpush1.msra.mxu0 0.0
    %2880 = vmatprep.subr.mxu0 0.0
    %2881 = vmatpush1.msra.mxu0 0.0
    %2882 = vmatprep.subr.mxu0 0.0
    %2883 = vmatpush1.msra.mxu0 0.0
    %2884 = vmatprep.subr.mxu0 0.0
    %2885 = vmatpush1.msra.mxu0 0.0
    %2886 = vmatprep.subr.mxu0 0.0
    %2887 = vmatpush1.msra.mxu0 0.0
    %2888 = vmatprep.subr.mxu0 0.0
    %2889 = vmatpush1.msra.mxu0 0.0
    %2890 = vmatprep.subr.mxu0 0.0
    %2891 = vmatpush1.msra.mxu0 0.0
    %2892 = vmatprep.subr.mxu0 0.0
    %2893 = vmatpush1.msra.mxu0 0.0
    %2894 = vmatprep.subr.mxu0 0.0
    %2895 = vmatpush1.msra.mxu0 0.0
    %2896 = vmatprep.subr.mxu0 0.0
    %2897 = vmatpush1.msra.mxu0 0.0
    %2898 = vmatprep.subr.mxu0 0.0
    %2899 = vmatpush1.msra.mxu0 0.0
    %2900 = vmatprep.subr.mxu0 0.0
    %2901 = vmatpush1.msra.mxu0 0.0
    %2902 = vmatprep.subr.mxu0 0.0
    %2903 = vmatpush1.msra.mxu0 %v2861
    %2904 = vmatprep.subr.mxu0 0.0
    %2905 = vmatpush1.msra.mxu0 %v2860
    %2906 = vmatprep.subr.mxu0 0.0
    %2907 = vmatpush2.msra.mxu0 0.0
    %2908 = vmatprep.subr.mxu0 0.0
    %2909 = vmatpush2.msra.mxu0 0.0
    %2910 = vmatprep.subr.mxu0 0.0
    %2911 = vmatpush2.msra.mxu0 0.0
    %2912 = vmatprep.subr.mxu0 0.0
    %2913 = vmatpush2.msra.mxu0 0.0
    %2914 = vmatprep.subr.mxu0 0.0
    %2915 = vmatpush2.msra.mxu0 0.0
    %2916 = vmatprep.subr.mxu0 0.0
    %2917 = vmatpush2.msra.mxu0 0.0
    %2918 = vmatprep.subr.mxu0 0.0
    %2919 = vmatpush2.msra.mxu0 0.0
    %2920 = vmatprep.subr.mxu0 0.0
    %2921 = vmatpush2.msra.mxu0 0.0
    %2922 = vmatprep.subr.mxu0 0.0
    %2923 = vmatpush2.msra.mxu0 0.0
    %2924 = vmatprep.subr.mxu0 0.0
    %2925 = vmatpush2.msra.mxu0 0.0
    %2926 = vmatprep.subr.mxu0 0.0
    %2927 = vmatpush2.msra.mxu0 0.0
    %2928 = vmatprep.subr.mxu0 0.0
    %2929 = vmatpush2.msra.mxu0 0.0
    %2930 = vmatprep.subr.mxu0 0.0
    %2931 = vmatpush2.msra.mxu0 0.0
    %2932 = vmatprep.subr.mxu0 0.0
    %2933 = vmatpush2.msra.mxu0 0.0
    %2934 = vmatprep.subr.mxu0 0.0
    %2935 = vmatpush2.msra.mxu0 0.0
    %2936 = vmatprep.subr.mxu0 0.0
    %2937 = vmatpush2.msra.mxu0 0.0
    %2938 = vmatprep.mubr.f32.mxu0 0.0
    %2939 = vmatmul.mubr.f32.gmra.mxu0 %v2863
    %v2940 = vpop.f32.mrf.mxu0
    %v2941 = vadd.f32 0.0, %v2940
    %v2942 = vpop.f32.mrf.mxu0
    %2943 = vmatprep.mubr.f32.mxu0 0.0
    %2944 = vmatmul.mubr.f32.gmra.mxu0 %v2866
    %v2945 = vpop.f32.mrf.mxu0
    %v2946 = vadd.f32 0.0, %v2945
    %v2947 = vpop.f32.mrf.mxu0
    %2948 = vmatprep.mubr.f32.mxu0 0.0
    %2949 = vmatmul.mubr.f32.gmra.mxu0 %v2869
    %v2950 = vpop.f32.mrf.mxu0
    %v2951 = vadd.f32 0.0, %v2950
    %v2952 = vpop.f32.mrf.mxu0
    %2953 = vmatprep.mubr.f32.mxu0 0.0
    %2954 = vmatmul.mubr.f32.gmra.mxu0 %v2872
    %v2955 = vpop.f32.mrf.mxu0
    %v2956 = vadd.f32 0.0, %v2955
    %v2957 = vpop.f32.mrf.mxu0
    %2958 = vdwg.mxu0
    %2959 = vrot.lane.b32.xlu0 %v1922, 104
    %v2960 = vpop.permute.xlu0 %2959
    %2962 = vrot.lane.b32.xlu0 %v570, 32
    %v2963 = vpop.permute.xlu0 %2962
    %v2966 = vsel %vm1927, %v2941, 0
    %v2969 = vsel %vm1927, %v2946, 0
    %v2972 = vsel %vm1927, %v2951, 0
    %v2975 = vsel %vm1927, %v2956, 0
    %2977 = vmatprep.subr.mxu0 0.0
    %2978 = vmatpush1.msra.mxu0 0.0
    %2979 = vmatprep.subr.mxu0 0.0
    %2980 = vmatpush1.msra.mxu0 0.0
    %2981 = vmatprep.subr.mxu0 0.0
    %2982 = vmatpush1.msra.mxu0 0.0
    %2983 = vmatprep.subr.mxu0 0.0
    %2984 = vmatpush1.msra.mxu0 0.0
    %2985 = vmatprep.subr.mxu0 0.0
    %2986 = vmatpush1.msra.mxu0 0.0
    %2987 = vmatprep.subr.mxu0 0.0
    %2988 = vmatpush1.msra.mxu0 0.0
    %2989 = vmatprep.subr.mxu0 0.0
    %2990 = vmatpush1.msra.mxu0 0.0
    %2991 = vmatprep.subr.mxu0 0.0
    %2992 = vmatpush1.msra.mxu0 0.0
    %2993 = vmatprep.subr.mxu0 0.0
    %2994 = vmatpush1.msra.mxu0 0.0
    %2995 = vmatprep.subr.mxu0 0.0
    %2996 = vmatpush1.msra.mxu0 0.0
    %2997 = vmatprep.subr.mxu0 0.0
    %2998 = vmatpush1.msra.mxu0 0.0
    %2999 = vmatprep.subr.mxu0 0.0
    %3000 = vmatpush1.msra.mxu0 0.0
    %3001 = vmatprep.subr.mxu0 0.0
    %3002 = vmatpush1.msra.mxu0 0.0
    %3003 = vmatprep.subr.mxu0 0.0
    %3004 = vmatpush1.msra.mxu0 0.0
    %3005 = vmatprep.subr.mxu0 0.0
    %3006 = vmatpush1.msra.mxu0 0.0
    %3007 = vmatprep.subr.mxu0 0.0
    %3008 = vmatpush1.msra.mxu0 %v2960
    %3009 = vmatprep.subr.mxu0 0.0
    %3010 = vmatpush2.msra.mxu0 0.0
    %3011 = vmatprep.subr.mxu0 0.0
    %3012 = vmatpush2.msra.mxu0 0.0
    %3013 = vmatprep.subr.mxu0 0.0
    %3014 = vmatpush2.msra.mxu0 0.0
    %3015 = vmatprep.subr.mxu0 0.0
    %3016 = vmatpush2.msra.mxu0 0.0
    %3017 = vmatprep.subr.mxu0 0.0
    %3018 = vmatpush2.msra.mxu0 0.0
    %3019 = vmatprep.subr.mxu0 0.0
    %3020 = vmatpush2.msra.mxu0 0.0
    %3021 = vmatprep.subr.mxu0 0.0
    %3022 = vmatpush2.msra.mxu0 0.0
    %3023 = vmatprep.subr.mxu0 0.0
    %3024 = vmatpush2.msra.mxu0 0.0
    %3025 = vmatprep.subr.mxu0 0.0
    %3026 = vmatpush2.msra.mxu0 0.0
    %3027 = vmatprep.subr.mxu0 0.0
    %3028 = vmatpush2.msra.mxu0 0.0
    %3029 = vmatprep.subr.mxu0 0.0
    %3030 = vmatpush2.msra.mxu0 0.0
    %3031 = vmatprep.subr.mxu0 0.0
    %3032 = vmatpush2.msra.mxu0 0.0
    %3033 = vmatprep.subr.mxu0 0.0
    %3034 = vmatpush2.msra.mxu0 0.0
    %3035 = vmatprep.subr.mxu0 0.0
    %3036 = vmatpush2.msra.mxu0 0.0
    %3037 = vmatprep.subr.mxu0 0.0
    %3038 = vmatpush2.msra.mxu0 0.0
    %3039 = vmatprep.subr.mxu0 0.0
    %3040 = vmatpush2.msra.mxu0 0.0
    %3041 = vmatprep.mubr.f32.mxu0 0.0
    %3042 = vmatmul.mubr.f32.gmra.mxu0 %v2966
    %v3043 = vpop.f32.mrf.mxu0
    %v3044 = vadd.f32 %v2963, %v3043
    %v3045 = vpop.f32.mrf.mxu0
    %3046 = vmatprep.mubr.f32.mxu0 0.0
    %3047 = vmatmul.mubr.f32.gmra.mxu0 %v2969
    %v3048 = vpop.f32.mrf.mxu0
    %v3049 = vadd.f32 %v2963, %v3048
    %v3050 = vpop.f32.mrf.mxu0
    %3051 = vmatprep.mubr.f32.mxu0 0.0
    %3052 = vmatmul.mubr.f32.gmra.mxu0 %v2972
    %v3053 = vpop.f32.mrf.mxu0
    %v3054 = vadd.f32 %v2963, %v3053
    %v3055 = vpop.f32.mrf.mxu0
    %3056 = vmatprep.mubr.f32.mxu0 0.0
    %3057 = vmatmul.mubr.f32.gmra.mxu0 %v2975
    %v3058 = vpop.f32.mrf.mxu0
    %v3059 = vadd.f32 %v2963, %v3058
    %v3060 = vpop.f32.mrf.mxu0
    %3061 = vdwg.mxu0
    %v3062 = vmax.f32 %v3044, 0.0
    %v3063 = vmax.f32 %v3049, 0.0
    %v3064 = vmax.f32 %v3054, 0.0
    %v3065 = vmax.f32 %v3059, 0.0
    %3066 = vrot.lane.b32.xlu0 %v1107, 72
    %v3067 = vpop.permute.xlu0 %3066
    %3068 = vrot.lane.b32.xlu0 %v1108, 72
    %v3069 = vpop.permute.xlu0 %3068
    %3072 = vrot.lane.b32.xlu0 %v570, 16
    %v3073 = vpop.permute.xlu0 %3072
    %v3076 = vsel %vm656, %v3062, 0
    %v3079 = vsel %vm656, %v3063, 0
    %v3082 = vsel %vm656, %v3064, 0
    %v3085 = vsel %vm656, %v3065, 0
    %3087 = vmatprep.subr.mxu0 0.0
    %3088 = vmatpush1.msra.mxu0 0.0
    %3089 = vmatprep.subr.mxu0 0.0
    %3090 = vmatpush1.msra.mxu0 0.0
    %3091 = vmatprep.subr.mxu0 0.0
    %3092 = vmatpush1.msra.mxu0 0.0
    %3093 = vmatprep.subr.mxu0 0.0
    %3094 = vmatpush1.msra.mxu0 0.0
    %3095 = vmatprep.subr.mxu0 0.0
    %3096 = vmatpush1.msra.mxu0 0.0
    %3097 = vmatprep.subr.mxu0 0.0
    %3098 = vmatpush1.msra.mxu0 0.0
    %3099 = vmatprep.subr.mxu0 0.0
    %3100 = vmatpush1.msra.mxu0 0.0
    %3101 = vmatprep.subr.mxu0 0.0
    %3102 = vmatpush1.msra.mxu0 0.0
    %3103 = vmatprep.subr.mxu0 0.0
    %3104 = vmatpush1.msra.mxu0 0.0
    %3105 = vmatprep.subr.mxu0 0.0
    %3106 = vmatpush1.msra.mxu0 0.0
    %3107 = vmatprep.subr.mxu0 0.0
    %3108 = vmatpush1.msra.mxu0 0.0
    %3109 = vmatprep.subr.mxu0 0.0
    %3110 = vmatpush1.msra.mxu0 0.0
    %3111 = vmatprep.subr.mxu0 0.0
    %3112 = vmatpush1.msra.mxu0 0.0
    %3113 = vmatprep.subr.mxu0 0.0
    %3114 = vmatpush1.msra.mxu0 0.0
    %3115 = vmatprep.subr.mxu0 0.0
    %3116 = vmatpush1.msra.mxu0 %v3069
    %3117 = vmatprep.subr.mxu0 0.0
    %3118 = vmatpush1.msra.mxu0 %v3067
    %3119 = vmatprep.subr.mxu0 0.0
    %3120 = vmatpush2.msra.mxu0 0.0
    %3121 = vmatprep.subr.mxu0 0.0
    %3122 = vmatpush2.msra.mxu0 0.0
    %3123 = vmatprep.subr.mxu0 0.0
    %3124 = vmatpush2.msra.mxu0 0.0
    %3125 = vmatprep.subr.mxu0 0.0
    %3126 = vmatpush2.msra.mxu0 0.0
    %3127 = vmatprep.subr.mxu0 0.0
    %3128 = vmatpush2.msra.mxu0 0.0
    %3129 = vmatprep.subr.mxu0 0.0
    %3130 = vmatpush2.msra.mxu0 0.0
    %3131 = vmatprep.subr.mxu0 0.0
    %3132 = vmatpush2.msra.mxu0 0.0
    %3133 = vmatprep.subr.mxu0 0.0
    %3134 = vmatpush2.msra.mxu0 0.0
    %3135 = vmatprep.subr.mxu0 0.0
    %3136 = vmatpush2.msra.mxu0 0.0
    %3137 = vmatprep.subr.mxu0 0.0
    %3138 = vmatpush2.msra.mxu0 0.0
    %3139 = vmatprep.subr.mxu0 0.0
    %3140 = vmatpush2.msra.mxu0 0.0
    %3141 = vmatprep.subr.mxu0 0.0
    %3142 = vmatpush2.msra.mxu0 0.0
    %3143 = vmatprep.subr.mxu0 0.0
    %3144 = vmatpush2.msra.mxu0 0.0
    %3145 = vmatprep.subr.mxu0 0.0
    %3146 = vmatpush2.msra.mxu0 0.0
    %3147 = vmatprep.subr.mxu0 0.0
    %3148 = vmatpush2.msra.mxu0 0.0
    %3149 = vmatprep.subr.mxu0 0.0
    %3150 = vmatpush2.msra.mxu0 0.0
    %3151 = vmatprep.mubr.f32.mxu0 0.0
    %3152 = vmatmul.mubr.f32.gmra.mxu0 %v3076
    %v3153 = vpop.f32.mrf.mxu0
    %v3154 = vadd.f32 %v3073, %v3153
    %v3155 = vpop.f32.mrf.mxu0
    %3156 = vmatprep.mubr.f32.mxu0 0.0
    %3157 = vmatmul.mubr.f32.gmra.mxu0 %v3079
    %v3158 = vpop.f32.mrf.mxu0
    %v3159 = vadd.f32 %v3073, %v3158
    %v3160 = vpop.f32.mrf.mxu0
    %3161 = vmatprep.mubr.f32.mxu0 0.0
    %3162 = vmatmul.mubr.f32.gmra.mxu0 %v3082
    %v3163 = vpop.f32.mrf.mxu0
    %v3164 = vadd.f32 %v3073, %v3163
    %v3165 = vpop.f32.mrf.mxu0
    %3166 = vmatprep.mubr.f32.mxu0 0.0
    %3167 = vmatmul.mubr.f32.gmra.mxu0 %v3085
    %v3168 = vpop.f32.mrf.mxu0
    %v3169 = vadd.f32 %v3073, %v3168
    %v3170 = vpop.f32.mrf.mxu0
    %3171 = vdwg.mxu0
    %vm3172 = vcmask 7168
    %3173 = vst.msk [vmem:[%s13] sm:$0xff] %vm3172, %v3154
    %3174 = vst.msk [vmem:[%s13 + $0x8] sm:$0xff] %vm3172, %v3159
    %3175 = vst.msk [vmem:[%s13 + $0x10] sm:$0xff] %vm3172, %v3164
    %3176 = vst.msk [vmem:[%s13 + $0x18] sm:$0xff] %vm3172, %v3169
    // Predicated region
    $region58: #{forward.1} parent=1 // pred_check
      _
    $region59: #{forward.1} parent=1 // pred_check_branch
      %3178 = sbr.rel (0) target = $region61
    $region60: #{forward.1} parent=1 // pred_region
      _
    $region61: #{forward.1} parent=1 // pred_fallthru
      _
    // Predicated region
    $region62: #{forward.1} parent=1 // pred_check
      _
    $region63: #{forward.1} parent=1 // pred_check_branch
      %3180 = sbr.rel (0) target = $region65
    $region64: #{forward.1} parent=1 // pred_region
      _
    $region65: #{forward.1} parent=1 // pred_fallthru
      _
    %3181 = vsyncpa [#allocation3], 1

</llo_original>
